<compile_context>
chip_gen: v5e
topology: v5e:2x2
jax: 0.10.0
libtpu: 0.0.40
codegen_flags: <defaults>
</compile_context>

<pallas_src>
import functools

import jax
import jax.numpy as jnp
from jax import lax
from jax.experimental import pallas as pl
from jax.experimental.pallas import tpu as pltpu

LANE = 128
SUB = 8


def _round_up(v, m):
    return (v + m - 1) // m * m


def _use_grouped_taps():
    """K=3*128 grouped conv2 taps on 256-wide-MXU chips (v6e/v7x+); 9 x K=128 on <=v5."""
    try:
        kind = jax.devices()[0].device_kind.lower()
    except Exception:
        return True
    return not any(old in kind for old in ("v2", "v3", "v4", "v5"))


def _bottleneck_kernel(Wa, F, Mo, group_taps,
                       x_ref, w1_ref, w2_ref, w3_ref,
                       b1_ref, b2_ref, b3_ref, mask_ref,
                       o_ref, acc_ref, t_ref):
    """One batch element per grid step.

    x_ref   : (1, Mx, Cp)   bf16  flat slab: 7 front rows, (H+2) x Wa padded image, tail pad
    w1_ref  : (Cp, Pp)      bf16  1x1 conv, BN1 scale folded in
    w2_ref  : (3, 3*Pp, Pp) bf16  grouped taps (dy, dx*Pp+cin, cout), BN2 folded in,
              or (9, Pp, Pp)      per-tap form on 128-wide-MXU chips
    w3_ref  : (Pp, Op)      bf16  1x1 conv, BN3 scale folded in
    b*_ref  : (1, C)        f32   folded BN shifts
    mask_ref: (Mx, 1)       bf16  1 on interior pixels, 0 on padding / junk rows
    o_ref   : (1, Mo, Op)   bf16  flat output slab, row r = i*Wa + j
    acc_ref : (Mo, Pp)      f32   conv2 accumulator scratch
    t_ref   : (Mx, 3*Pp)    bf16  im2col slab (grouped) or (Mx, Pp) t1 scratch
    """
    Mx = x_ref.shape[1]
    Pp = acc_ref.shape[1]

    # ---- conv1 (1x1) + bn1 shift + ReLU; border masked back to exact zero so
    #      conv2's implicit zero padding stays exact --------------------------
    xf = x_ref[0]                                                    # (Mx, Cp)
    t1 = jnp.dot(xf, w1_ref[...], preferred_element_type=jnp.float32)
    t1 = jnp.maximum(t1 + b1_ref[...], 0.0) * mask_ref[...].astype(jnp.float32)
    t1 = t1.astype(t_ref.dtype)

    if group_taps:
        # Center band (dx=1) holds t1; dx=0 / dx=2 bands are +-1-row shifted
        # copies.  The resulting (rows, 3*Pp) im2col slab turns conv2 into 3
        # K=3*Pp matmuls whose LHS row starts (F+1 + dy*Wa) are multiples of 8.
        t_ref[:, Pp:2 * Pp] = t1
        t_ref[SUB:Mx, 0:Pp] = t_ref[SUB - 1:Mx - 1, Pp:2 * Pp]              # t1[s-1]
        t_ref[0:Mx - SUB, 2 * Pp:3 * Pp] = t_ref[1:Mx - SUB + 1, Pp:2 * Pp]  # t1[s+1]
    else:
        t_ref[...] = t1

    # ---- conv2 (3x3, pad=1): accumulate into a single f32 VMEM scratch ------
    acc_ref[...] = jnp.zeros_like(acc_ref)
    if group_taps:
        for dy in range(3):
            start = (F + 1) + dy * Wa                     # static, multiple of 8
            acc_ref[...] += jnp.dot(t_ref[start:start + Mo, :], w2_ref[dy],
                                    preferred_element_type=jnp.float32)
    else:
        for t in range(9):
            start = F + (t // 3) * Wa + (t % 3)           # static
            acc_ref[...] += jnp.dot(t_ref[start:start + Mo, :], w2_ref[t],
                                    preferred_element_type=jnp.float32)
    t2 = jnp.maximum(acc_ref[...] + b2_ref[...], 0.0).astype(t_ref.dtype)

    # ---- conv3 (1x1) + bn3 shift + residual + ReLU ---------------------------
    t3 = jnp.dot(t2, w3_ref[...], preferred_element_type=jnp.float32)
    res_start = F + Wa + 1                                # static, multiple of 8
    resid = x_ref[0, res_start:res_start + Mo, :].astype(jnp.float32)
    o_ref[0] = jnp.maximum(t3 + b3_ref[...] + resid, 0.0).astype(o_ref.dtype)


@functools.partial(jax.jit, static_argnames=("group_taps",))
def bottleneck_forward(x_nchw, p, *, group_taps=True):
    """Fused BottleNeck forward.  Input NCHW f32 (PyTorch layout); output NCHW bf16."""
    N, Cin, H, W = x_nchw.shape
    P = p["w1"].shape[1]
    Cout = p["w3"].shape[1]
    assert Cin == Cout, "identity residual requires inplanes == 4*planes"

    f32, bf16 = jnp.float32, jnp.bfloat16
    Cp = _round_up(Cin, LANE)
    Pp = _round_up(P, LANE)
    Op = _round_up(Cout, LANE)
    Wa = _round_up(W + 2, SUB)       # padded-image row stride (multiple of 8)
    F = SUB - 1                      # front pad rows -> 8-aligned tap/residual starts
    D = (H + 2) * Wa                 # rows holding the spatially padded image
    Mx = D + 2 * SUB                 # slab rows (front pad + image + tail slack)
    Mo = H * Wa                      # output slab rows (row r = i*Wa + j)

    # Fold BN scales into conv weights, pad channels to 128 lanes, cast to bf16.
    w1 = jnp.pad((p["w1"] * p["s1"]).astype(bf16), ((0, Cp - Cin), (0, Pp - P)))
    w2 = jnp.pad((p["w2"] * p["s2"]).astype(bf16),
                 ((0, 0), (0, 0), (0, Pp - P), (0, Pp - P)))     # (3,3,Pp,Pp) HWIO
    if group_taps:
        w2 = w2.reshape(3, 3 * Pp, Pp)        # (dy, dx*Pp + cin, cout)
    else:
        w2 = w2.reshape(9, Pp, Pp)            # (dy*3 + dx, cin, cout)
    w3 = jnp.pad((p["w3"] * p["s3"]).astype(bf16), ((0, Pp - P), (0, Op - Cout)))
    b1 = jnp.pad(p["b1"].astype(f32), ((0, 0), (0, Pp - P)))
    b2 = jnp.pad(p["b2"].astype(f32), ((0, 0), (0, Pp - P)))
    b3 = jnp.pad(p["b3"].astype(f32), ((0, 0), (0, Op - Cout)))

    # Input: NCHW -> NHWC, 1-px zero spatial pad (conv2's padding), row stride
    # padded to Wa, channels padded to 128, flattened to a lane-dense slab with a
    # 7-row front pad so the residual / tap slices inside the kernel are 8-aligned.
    # TODO(synk): in a full network this slab (and the bf16 output slab below)
    #             stays resident between blocks; the NCHW<->slab plumbing here is
    #             only needed because the module boundary is PyTorch NCHW, and is
    #             fused by XLA inside this jit.
    x = jnp.transpose(x_nchw, (0, 2, 3, 1))
    x = jnp.pad(x, ((0, 0), (1, 1), (1, Wa - (W + 1)), (0, Cp - Cin)))
    x = x.reshape(N, D, Cp)
    x = jnp.pad(x, ((0, 0), (F, Mx - F - D), (0, 0))).astype(bf16)

    # Interior mask (bf16): 1 on real pixels, 0 on padding / junk rows.
    mask = jnp.zeros((H + 2, Wa), f32).at[1:H + 1, 1:W + 1].set(1.0)
    mask = jnp.pad(mask.reshape(D, 1), ((F, Mx - F - D), (0, 0))).astype(bf16)

    kernel = functools.partial(_bottleneck_kernel, Wa, F, Mo, group_taps)
    const = lambda *shape: pl.BlockSpec(shape, lambda b: (0,) * len(shape))
    t_cols = 3 * Pp if group_taps else Pp

    out_flat = pl.pallas_call(
        kernel,
        out_shape=jax.ShapeDtypeStruct((N, Mo, Op), bf16),       # bf16 output slab
        grid_spec=pltpu.PrefetchScalarGridSpec(
            num_scalar_prefetch=0,
            grid=(N,),
            in_specs=[
                pl.BlockSpec((1, Mx, Cp), lambda b: (b, 0, 0)),  # x (per batch)
                const(Cp, Pp),                                   # w1 (grid-resident)
                const(*w2.shape),                                # w2
                const(Pp, Op),                                   # w3
                const(1, Pp), const(1, Pp), const(1, Op),        # bn shifts
                const(Mx, 1),                                    # interior mask
            ],
            out_specs=pl.BlockSpec((1, Mo, Op), lambda b: (b, 0, 0)),
            scratch_shapes=[pltpu.VMEM((Mo, Pp), f32),           # conv2 accumulator
                            pltpu.VMEM((Mx, t_cols), bf16)],     # t1 / im2col slab
        ),
        compiler_params=pltpu.CompilerParams(
            dimension_semantics=("parallel",),                   # batch elems independent
            # ~2 MB actually used at these shapes; 32 MiB is safe on every
            # generation (v5e/v6e: 128 MiB physical, v7x: 64 MiB physical).
            vmem_limit_bytes=32 * 1024 * 1024,
        ),
    )(x, w1, w2, w3, b1, b2, b3, mask)

    # TODO(synk): weights/biases/mask are still double-buffered by the pipeliner;
    #             single-buffering them (pl.Buffered(1) or a step-0 DMA) only
    #             matters once row-band blocking (next TODO) makes VMEM tight.
    # TODO(synk): for large H*W add a spatial row-band grid axis (1-row halo) so
    #             each TensorCore gets several steps (DMA/compute overlap) and the
    #             per-step footprint stays bounded on v7x's 64 MiB VMEM;
    #             unnecessary at these block sizes.

    # Drop the junk columns of the flat slab and the padded channels.
    out = out_flat.reshape(N, H, Wa, Op)[:, :, :W, :Cout]
    return jnp.transpose(out, (0, 3, 1, 2))                      # NHWC -> NCHW (bf16)


def make_params(key, inplanes, planes):
    """Deterministic synthetic parameters (conv weights + folded BN scale/shift)."""
    eps = 1e-5
    ks = jax.random.split(key, 12)
    f32 = jnp.float32

    def bn(kg, kb, km, kv, c):
        gamma = 1.0 + 0.1 * jax.random.normal(kg, (1, c), f32)
        beta = 0.1 * jax.random.normal(kb, (1, c), f32)
        mean = 0.1 * jax.random.normal(km, (1, c), f32)
        var = 1.0 + 0.5 * jax.random.uniform(kv, (1, c), f32)
        scale = gamma / jnp.sqrt(var + eps)
        shift = beta - mean * scale
        return scale, shift

    p = {}
    p["w1"] = 0.2 * jax.random.normal(ks[0], (inplanes, planes), f32)      # 1x1, (Cin, P)
    p["w2"] = 0.2 * jax.random.normal(ks[1], (3, 3, planes, planes), f32)  # HWIO
    p["w3"] = 0.2 * jax.random.normal(ks[2], (planes, planes * 4), f32)    # 1x1, (P, 4P)
    p["s1"], p["b1"] = bn(ks[3], ks[4], ks[5], ks[6], planes)
    p["s2"], p["b2"] = bn(ks[7], ks[8], ks[9], ks[10], planes)
    p["s3"], p["b3"] = bn(ks[11], ks[3], ks[7], ks[0], planes * 4)
    return p


def reference_forward(x_nchw, p):
    """Pure-JAX reference (lax convs, f32 math) on the same bf16-quantized, BN-folded
    operands the kernel feeds to the MXU; independently checks conv taps / padding /
    residual / ReLU / layout."""
    f32, bf16 = jnp.float32, jnp.bfloat16
    dn = ("NHWC", "HWIO", "NHWC")
    hi = lax.Precision.HIGHEST
    Cin, P = p["w1"].shape
    Cout = p["w3"].shape[1]
    q = lambda a: a.astype(bf16).astype(f32)

    w1 = q(p["w1"] * p["s1"]).reshape(1, 1, Cin, P)
    w2 = q(p["w2"] * p["s2"])
    w3 = q(p["w3"] * p["s3"]).reshape(1, 1, P, Cout)

    x = q(jnp.transpose(x_nchw, (0, 2, 3, 1)))
    y = lax.conv_general_dilated(x, w1, (1, 1), "VALID",
                                 dimension_numbers=dn, precision=hi)
    y = q(jnp.maximum(y + p["b1"], 0.0))
    y = lax.conv_general_dilated(y, w2, (1, 1), ((1, 1), (1, 1)),
                                 dimension_numbers=dn, precision=hi)
    y = q(jnp.maximum(y + p["b2"], 0.0))
    y = lax.conv_general_dilated(y, w3, (1, 1), "VALID",
                                 dimension_numbers=dn, precision=hi)
    y = jnp.maximum(y + p["b3"] + x, 0.0)
    return jnp.transpose(y, (0, 3, 1, 2))


if __name__ == "__main__":
    planes = 4
    inplanes = planes * 4            # identity residual requires inplanes == 4*planes
    N, H, W = 2, 16, 16

    key = jax.random.PRNGKey(0)
    kx, kp = jax.random.split(key)
    x = jax.random.normal(kx, (N, inplanes, H, W), jnp.float32)   # NCHW like PyTorch
    params = make_params(kp, inplanes, planes)

    out = bottleneck_forward(x, params, group_taps=_use_grouped_taps())
    out = jax.block_until_ready(out)

    ref = reference_forward(x, params)
    assert out.shape == (N, inplanes, H, W), out.shape
    assert out.dtype == jnp.bfloat16, out.dtype
    # Kernel output is bf16 (per perf review); tolerance covers the final bf16
    # rounding (~2^-8 relative) on top of f32 accumulation-order differences.
    out_f32 = out.astype(jnp.float32)
    assert jnp.allclose(out_f32, ref, atol=2e-2, rtol=2e-2), \
        float(jnp.max(jnp.abs(out_f32 - ref)))

    print("KERNEL_OK")
</pallas_src>

<mosaic_0001>
module attributes {stable_mosaic.version = 11 : i64} {
  func.func @_bottleneck_kernel(%arg0: i32, %arg1: memref<1x448x128xbf16, #tpu.memory_space<vmem>>, %arg2: memref<128x128xbf16, #tpu.memory_space<vmem>>, %arg3: memref<3x384x128xbf16, #tpu.memory_space<vmem>>, %arg4: memref<128x128xbf16, #tpu.memory_space<vmem>>, %arg5: memref<1x128xf32, #tpu.memory_space<vmem>>, %arg6: memref<1x128xf32, #tpu.memory_space<vmem>>, %arg7: memref<1x128xf32, #tpu.memory_space<vmem>>, %arg8: memref<448x1xbf16, #tpu.memory_space<vmem>>, %arg9: memref<1x384x128xbf16, #tpu.memory_space<vmem>>, %arg10: memref<384x128xf32, #tpu.memory_space<vmem>>, %arg11: memref<448x384xbf16, #tpu.memory_space<vmem>>) attributes {dimension_semantics = [#tpu.dimension_semantics<parallel>], iteration_bounds = array<i64: 2>, scalar_prefetch = 0 : i64, scratch_operands = 2 : i64, tpu.core_type = #tpu.core_type<tc>, window_params = [{transform_indices = @transform_0, window_bounds = array<i64: 1, 448, 128>}, {pipeline_mode = #tpu.pipeline_mode<synchronous>, transform_indices = @transform_1, window_bounds = array<i64: 128, 128>}, {pipeline_mode = #tpu.pipeline_mode<synchronous>, transform_indices = @transform_2, window_bounds = array<i64: 3, 384, 128>}, {pipeline_mode = #tpu.pipeline_mode<synchronous>, transform_indices = @transform_3, window_bounds = array<i64: 128, 128>}, {pipeline_mode = #tpu.pipeline_mode<synchronous>, transform_indices = @transform_4, window_bounds = array<i64: 1, 128>}, {pipeline_mode = #tpu.pipeline_mode<synchronous>, transform_indices = @transform_5, window_bounds = array<i64: 1, 128>}, {pipeline_mode = #tpu.pipeline_mode<synchronous>, transform_indices = @transform_6, window_bounds = array<i64: 1, 128>}, {pipeline_mode = #tpu.pipeline_mode<synchronous>, transform_indices = @transform_7, window_bounds = array<i64: 448, 1>}, {transform_indices = @transform_8, window_bounds = array<i64: 1, 384, 128>}]} {
    %c0 = arith.constant 0 : index
    %c0_0 = arith.constant 0 : index
    %c0_1 = arith.constant 0 : index
    %0 = vector.load %arg1[%c0, %c0_0, %c0_1] : memref<1x448x128xbf16, #tpu.memory_space<vmem>>, vector<1x448x128xbf16>
    %1 = vector.shape_cast %0 : vector<1x448x128xbf16> to vector<448x128xbf16>
    %c0_2 = arith.constant 0 : index
    %c0_3 = arith.constant 0 : index
    %2 = vector.load %arg2[%c0_2, %c0_3] : memref<128x128xbf16, #tpu.memory_space<vmem>>, vector<128x128xbf16>
    %cst = arith.constant dense<0.000000e+00> : vector<448x128xf32>
    %3 = tpu.matmul %1, %2, %cst {dimension_numbers = #tpu.dot_dimension_numbers<[1], [0], [0], [1], [0, 0, 1, 1], [], []>} : vector<448x128xbf16>, vector<128x128xbf16>, vector<448x128xf32> -> vector<448x128xf32>
    %c0_4 = arith.constant 0 : index
    %c0_5 = arith.constant 0 : index
    %4 = vector.load %arg5[%c0_4, %c0_5] : memref<1x128xf32, #tpu.memory_space<vmem>>, vector<1x128xf32>
    %5 = vector.broadcast %4 : vector<1x128xf32> to vector<448x128xf32>
    %6 = arith.addf %3, %5 : vector<448x128xf32>
    %cst_6 = arith.constant 0.000000e+00 : f32
    %7 = vector.broadcast %cst_6 : f32 to vector<448x128xf32>
    %8 = arith.maximumf %6, %7 : vector<448x128xf32>
    %c0_7 = arith.constant 0 : index
    %c0_8 = arith.constant 0 : index
    %9 = vector.load %arg8[%c0_7, %c0_8] : memref<448x1xbf16, #tpu.memory_space<vmem>>, vector<448x1xbf16>
    %10 = arith.extf %9 : vector<448x1xbf16> to vector<448x1xf32>
    %11 = vector.broadcast %10 : vector<448x1xf32> to vector<448x128xf32>
    %12 = arith.mulf %8, %11 : vector<448x128xf32>
    %13 = arith.truncf %12 : vector<448x128xf32> to vector<448x128xbf16>
    %c0_9 = arith.constant 0 : index
    %c128 = arith.constant 128 : index
    %14 = vector.load %arg11[%c0_9, %c128] : memref<448x384xbf16, #tpu.memory_space<vmem>>, vector<448x128xbf16>
    tpu.vector_store %arg11[%c0_9, %c128], %13 {strides = array<i32>} : memref<448x384xbf16, #tpu.memory_space<vmem>>, vector<448x128xbf16>,
    %c7 = arith.constant 7 : index
    %c128_10 = arith.constant 128 : index
    %15 = vector.load %arg11[%c7, %c128_10] : memref<448x384xbf16, #tpu.memory_space<vmem>>, vector<440x128xbf16>
    %c8 = arith.constant 8 : index
    %c0_11 = arith.constant 0 : index
    %16 = vector.load %arg11[%c8, %c0_11] : memref<448x384xbf16, #tpu.memory_space<vmem>>, vector<440x128xbf16>
    tpu.vector_store %arg11[%c8, %c0_11], %15 {strides = array<i32>} : memref<448x384xbf16, #tpu.memory_space<vmem>>, vector<440x128xbf16>,
    %c1 = arith.constant 1 : index
    %c128_12 = arith.constant 128 : index
    %17 = vector.load %arg11[%c1, %c128_12] : memref<448x384xbf16, #tpu.memory_space<vmem>>, vector<440x128xbf16>
    %c0_13 = arith.constant 0 : index
    %c256 = arith.constant 256 : index
    %18 = vector.load %arg11[%c0_13, %c256] : memref<448x384xbf16, #tpu.memory_space<vmem>>, vector<440x128xbf16>
    tpu.vector_store %arg11[%c0_13, %c256], %17 {strides = array<i32>} : memref<448x384xbf16, #tpu.memory_space<vmem>>, vector<440x128xbf16>,
    %cst_14 = arith.constant 0.000000e+00 : f32
    %19 = vector.broadcast %cst_14 : f32 to vector<384x128xf32>
    %c0_15 = arith.constant 0 : index
    %c0_16 = arith.constant 0 : index
    %20 = vector.load %arg10[%c0_15, %c0_16] : memref<384x128xf32, #tpu.memory_space<vmem>>, vector<384x128xf32>
    tpu.vector_store %arg10[%c0_15, %c0_16], %19 {strides = array<i32>} : memref<384x128xf32, #tpu.memory_space<vmem>>, vector<384x128xf32>,
    %c0_17 = arith.constant 0 : index
    %c0_18 = arith.constant 0 : index
    %21 = vector.load %arg10[%c0_17, %c0_18] : memref<384x128xf32, #tpu.memory_space<vmem>>, vector<384x128xf32>
    %c8_19 = arith.constant 8 : index
    %c0_20 = arith.constant 0 : index
    %22 = vector.load %arg11[%c8_19, %c0_20] : memref<448x384xbf16, #tpu.memory_space<vmem>>, vector<384x384xbf16>
    %c0_21 = arith.constant 0 : index
    %c0_22 = arith.constant 0 : index
    %c0_23 = arith.constant 0 : index
    %23 = vector.load %arg3[%c0_21, %c0_22, %c0_23] : memref<3x384x128xbf16, #tpu.memory_space<vmem>>, vector<1x384x128xbf16>
    %24 = vector.shape_cast %23 : vector<1x384x128xbf16> to vector<384x128xbf16>
    %cst_24 = arith.constant dense<0.000000e+00> : vector<384x128xf32>
    %25 = tpu.matmul %22, %24, %cst_24 {dimension_numbers = #tpu.dot_dimension_numbers<[1], [0], [0], [1], [0, 0, 1, 1], [], []>} : vector<384x384xbf16>, vector<384x128xbf16>, vector<384x128xf32> -> vector<384x128xf32>
    %26 = arith.addf %21, %25 : vector<384x128xf32>
    %c0_25 = arith.constant 0 : index
    %c0_26 = arith.constant 0 : index
    %27 = vector.load %arg10[%c0_25, %c0_26] : memref<384x128xf32, #tpu.memory_space<vmem>>, vector<384x128xf32>
    tpu.vector_store %arg10[%c0_25, %c0_26], %26 {strides = array<i32>} : memref<384x128xf32, #tpu.memory_space<vmem>>, vector<384x128xf32>,
    %c0_27 = arith.constant 0 : index
    %c0_28 = arith.constant 0 : index
    %28 = vector.load %arg10[%c0_27, %c0_28] : memref<384x128xf32, #tpu.memory_space<vmem>>, vector<384x128xf32>
    %c32 = arith.constant 32 : index
    %c0_29 = arith.constant 0 : index
    %29 = vector.load %arg11[%c32, %c0_29] : memref<448x384xbf16, #tpu.memory_space<vmem>>, vector<384x384xbf16>
    %c1_30 = arith.constant 1 : index
    %c0_31 = arith.constant 0 : index
    %c0_32 = arith.constant 0 : index
    %30 = vector.load %arg3[%c1_30, %c0_31, %c0_32] : memref<3x384x128xbf16, #tpu.memory_space<vmem>>, vector<1x384x128xbf16>
    %31 = vector.shape_cast %30 : vector<1x384x128xbf16> to vector<384x128xbf16>
    %cst_33 = arith.constant dense<0.000000e+00> : vector<384x128xf32>
    %32 = tpu.matmul %29, %31, %cst_33 {dimension_numbers = #tpu.dot_dimension_numbers<[1], [0], [0], [1], [0, 0, 1, 1], [], []>} : vector<384x384xbf16>, vector<384x128xbf16>, vector<384x128xf32> -> vector<384x128xf32>
    %33 = arith.addf %28, %32 : vector<384x128xf32>
    %c0_34 = arith.constant 0 : index
    %c0_35 = arith.constant 0 : index
    %34 = vector.load %arg10[%c0_34, %c0_35] : memref<384x128xf32, #tpu.memory_space<vmem>>, vector<384x128xf32>
    tpu.vector_store %arg10[%c0_34, %c0_35], %33 {strides = array<i32>} : memref<384x128xf32, #tpu.memory_space<vmem>>, vector<384x128xf32>,
    %c0_36 = arith.constant 0 : index
    %c0_37 = arith.constant 0 : index
    %35 = vector.load %arg10[%c0_36, %c0_37] : memref<384x128xf32, #tpu.memory_space<vmem>>, vector<384x128xf32>
    %c56 = arith.constant 56 : index
    %c0_38 = arith.constant 0 : index
    %36 = vector.load %arg11[%c56, %c0_38] : memref<448x384xbf16, #tpu.memory_space<vmem>>, vector<384x384xbf16>
    %c2 = arith.constant 2 : index
    %c0_39 = arith.constant 0 : index
    %c0_40 = arith.constant 0 : index
    %37 = vector.load %arg3[%c2, %c0_39, %c0_40] : memref<3x384x128xbf16, #tpu.memory_space<vmem>>, vector<1x384x128xbf16>
    %38 = vector.shape_cast %37 : vector<1x384x128xbf16> to vector<384x128xbf16>
    %cst_41 = arith.constant dense<0.000000e+00> : vector<384x128xf32>
    %39 = tpu.matmul %36, %38, %cst_41 {dimension_numbers = #tpu.dot_dimension_numbers<[1], [0], [0], [1], [0, 0, 1, 1], [], []>} : vector<384x384xbf16>, vector<384x128xbf16>, vector<384x128xf32> -> vector<384x128xf32>
    %40 = arith.addf %35, %39 : vector<384x128xf32>
    %c0_42 = arith.constant 0 : index
    %c0_43 = arith.constant 0 : index
    %41 = vector.load %arg10[%c0_42, %c0_43] : memref<384x128xf32, #tpu.memory_space<vmem>>, vector<384x128xf32>
    tpu.vector_store %arg10[%c0_42, %c0_43], %40 {strides = array<i32>} : memref<384x128xf32, #tpu.memory_space<vmem>>, vector<384x128xf32>,
    %c0_44 = arith.constant 0 : index
    %c0_45 = arith.constant 0 : index
    %42 = vector.load %arg10[%c0_44, %c0_45] : memref<384x128xf32, #tpu.memory_space<vmem>>, vector<384x128xf32>
    %c0_46 = arith.constant 0 : index
    %c0_47 = arith.constant 0 : index
    %43 = vector.load %arg6[%c0_46, %c0_47] : memref<1x128xf32, #tpu.memory_space<vmem>>, vector<1x128xf32>
    %44 = vector.broadcast %43 : vector<1x128xf32> to vector<384x128xf32>
    %45 = arith.addf %42, %44 : vector<384x128xf32>
    %cst_48 = arith.constant 0.000000e+00 : f32
    %46 = vector.broadcast %cst_48 : f32 to vector<384x128xf32>
    %47 = arith.maximumf %45, %46 : vector<384x128xf32>
    %48 = arith.truncf %47 : vector<384x128xf32> to vector<384x128xbf16>
    %c0_49 = arith.constant 0 : index
    %c0_50 = arith.constant 0 : index
    %49 = vector.load %arg4[%c0_49, %c0_50] : memref<128x128xbf16, #tpu.memory_space<vmem>>, vector<128x128xbf16>
    %cst_51 = arith.constant dense<0.000000e+00> : vector<384x128xf32>
    %50 = tpu.matmul %48, %49, %cst_51 {dimension_numbers = #tpu.dot_dimension_numbers<[1], [0], [0], [1], [0, 0, 1, 1], [], []>} : vector<384x128xbf16>, vector<128x128xbf16>, vector<384x128xf32> -> vector<384x128xf32>
    %c0_52 = arith.constant 0 : index
    %c32_53 = arith.constant 32 : index
    %c0_54 = arith.constant 0 : index
    %51 = vector.load %arg1[%c0_52, %c32_53, %c0_54] : memref<1x448x128xbf16, #tpu.memory_space<vmem>>, vector<1x384x128xbf16>
    %52 = vector.shape_cast %51 : vector<1x384x128xbf16> to vector<384x128xbf16>
    %53 = arith.extf %52 : vector<384x128xbf16> to vector<384x128xf32>
    %c0_55 = arith.constant 0 : index
    %c0_56 = arith.constant 0 : index
    %54 = vector.load %arg7[%c0_55, %c0_56] : memref<1x128xf32, #tpu.memory_space<vmem>>, vector<1x128xf32>
    %55 = vector.broadcast %54 : vector<1x128xf32> to vector<384x128xf32>
    %56 = arith.addf %50, %55 : vector<384x128xf32>
    %57 = arith.addf %56, %53 : vector<384x128xf32>
    %cst_57 = arith.constant 0.000000e+00 : f32
    %58 = vector.broadcast %cst_57 : f32 to vector<384x128xf32>
    %59 = arith.maximumf %57, %58 : vector<384x128xf32>
    %60 = arith.truncf %59 : vector<384x128xf32> to vector<384x128xbf16>
    %c0_58 = arith.constant 0 : index
    %c0_59 = arith.constant 0 : index
    %c0_60 = arith.constant 0 : index
    %61 = vector.load %arg9[%c0_58, %c0_59, %c0_60] : memref<1x384x128xbf16, #tpu.memory_space<vmem>>, vector<1x384x128xbf16>
    %62 = vector.shape_cast %61 : vector<1x384x128xbf16> to vector<384x128xbf16>
    %63 = vector.shape_cast %60 : vector<384x128xbf16> to vector<1x384x128xbf16>
    tpu.vector_store %arg9[%c0_58, %c0_59, %c0_60], %63 {strides = array<i32>} : memref<1x384x128xbf16, #tpu.memory_space<vmem>>, vector<1x384x128xbf16>,
    return
  }
  func.func @transform_0(%arg0: i32) -> (i32, i32, i32) {
    %c0_i32 = arith.constant 0 : i32
    %c0_i32_0 = arith.constant 0 : i32
    %c0_i32_1 = arith.constant 0 : i32
    return %arg0, %c0_i32, %c0_i32_0 : i32, i32, i32
  }
  func.func @transform_1(%arg0: i32) -> (i32, i32) {
    %c0_i32 = arith.constant 0 : i32
    %c0_i32_0 = arith.constant 0 : i32
    %c0_i32_1 = arith.constant 0 : i32
    return %c0_i32, %c0_i32_0 : i32, i32
  }
  func.func @transform_2(%arg0: i32) -> (i32, i32, i32) {
    %c0_i32 = arith.constant 0 : i32
    %c0_i32_0 = arith.constant 0 : i32
    %c0_i32_1 = arith.constant 0 : i32
    %c0_i32_2 = arith.constant 0 : i32
    return %c0_i32, %c0_i32_0, %c0_i32_1 : i32, i32, i32
  }
  func.func @transform_3(%arg0: i32) -> (i32, i32) {
    %c0_i32 = arith.constant 0 : i32
    %c0_i32_0 = arith.constant 0 : i32
    %c0_i32_1 = arith.constant 0 : i32
    return %c0_i32, %c0_i32_0 : i32, i32
  }
  func.func @transform_4(%arg0: i32) -> (i32, i32) {
    %c0_i32 = arith.constant 0 : i32
    %c0_i32_0 = arith.constant 0 : i32
    %c0_i32_1 = arith.constant 0 : i32
    return %c0_i32, %c0_i32_0 : i32, i32
  }
  func.func @transform_5(%arg0: i32) -> (i32, i32) {
    %c0_i32 = arith.constant 0 : i32
    %c0_i32_0 = arith.constant 0 : i32
    %c0_i32_1 = arith.constant 0 : i32
    return %c0_i32, %c0_i32_0 : i32, i32
  }
  func.func @transform_6(%arg0: i32) -> (i32, i32) {
    %c0_i32 = arith.constant 0 : i32
    %c0_i32_0 = arith.constant 0 : i32
    %c0_i32_1 = arith.constant 0 : i32
    return %c0_i32, %c0_i32_0 : i32, i32
  }
  func.func @transform_7(%arg0: i32) -> (i32, i32) {
    %c0_i32 = arith.constant 0 : i32
    %c0_i32_0 = arith.constant 0 : i32
    %c0_i32_1 = arith.constant 0 : i32
    return %c0_i32, %c0_i32_0 : i32, i32
  }
  func.func @transform_8(%arg0: i32) -> (i32, i32, i32) {
    %c0_i32 = arith.constant 0 : i32
    %c0_i32_0 = arith.constant 0 : i32
    %c0_i32_1 = arith.constant 0 : i32
    return %arg0, %c0_i32, %c0_i32_0 : i32, i32, i32
  }
}

</mosaic_0001>

<llo_original>
// kernel: bottleneck_forward.1
$region0: #{bottleneck_forward.1}
  #allocation0 [shape = 'u32[]', space=smem, size = 0x4, offset = 0x4, fixed_abs, tag = 'smem constant byte address 0x4 - core index']
  #allocation1 [shape = 'u32[72,128]{1,0:T(1,128)}', space=vmem, size = 0x9000, scoped, tag = 'internal scratch']
  #allocation2 [shape = 'f32[384,128]{1,0:T(8,128)}', space=vmem, size = 0x30000, scoped, tag = 'scratch operand']
  #allocation3 [shape = 'bf16[448,384]{1,0:T(8,128)(2,1)}', space=vmem, size = 0x54000, scoped, tag = 'scratch operand']
  %s0 = inlined_call_operand.vmem [shape: bf16[2,448,128], index: 0, kind: input, shape index: {}]
  %s1 = inlined_call_operand.vmem [shape: bf16[128,128], index: 1, kind: input, shape index: {}]
  %s2 = inlined_call_operand.vmem [shape: bf16[3,384,128], index: 2, kind: input, shape index: {}]
  %s3 = inlined_call_operand.vmem [shape: bf16[128,128], index: 3, kind: input, shape index: {}]
  %s4 = inlined_call_operand.vmem [shape: f32[1,128], index: 4, kind: input, shape index: {}]
  %s5 = inlined_call_operand.vmem [shape: f32[1,128], index: 5, kind: input, shape index: {}]
  %s6 = inlined_call_operand.vmem [shape: f32[1,128], index: 6, kind: input, shape index: {}]
  %s7 = inlined_call_operand.vmem [shape: bf16[448,1], index: 7, kind: input, shape index: {}]
  %s8 = inlined_call_operand.vmem [shape: bf16[2,384,128], index: 8, kind: output, shape index: {}]
  %s9 = sld [smem:[#allocation0]]
  $region65: #{bottleneck_forward.1} parent=0
    _
  %s11 = ssub.s32 1, %s9
  %s12 = scalar_select 0, %s11, %s9
  loop: start=0, step=1, limit=4
  $region2: #{bottleneck_forward.1} parent=0 // loop_pre_header
    _
  $region3: #{bottleneck_forward.1} parent=0 // loop_header
    %s14 = sphi 0, %s18
    %p15 = scmp.ge.s32.totalorder %s14, 4
    %s24 = sphi 0, %s26
    %s27 = sphi 0, %s24
    %s28 = sphi 0, %s27
    %s44 = sphi 0, %s28
    %s48 = sphi 0, %s48
    %s50 = sphi 0, %s48
    %s51 = sphi 0, %s50
    %s65 = sphi 0, %s51
    %s69 = sphi 0, %s69
    %s71 = sphi 0, %s69
    %s72 = sphi 0, %s71
    %s86 = sphi 0, %s72
    %s90 = sphi 0, %s90
    %s92 = sphi 0, %s90
    %s93 = sphi 0, %s92
    %s107 = sphi 0, %s93
    %s111 = sphi 0, %s111
    %s113 = sphi 0, %s111
    %s114 = sphi 0, %s113
    %s128 = sphi 0, %s114
    %s132 = sphi 0, %s132
    %s134 = sphi 0, %s132
    %s135 = sphi 0, %s134
    %s149 = sphi 0, %s135
    %s153 = sphi 0, %s153
    %s155 = sphi 0, %s153
    %s156 = sphi 0, %s155
    %s170 = sphi 0, %s156
    %s174 = sphi 0, %s174
    %s176 = sphi 0, %s174
    %s177 = sphi 0, %s176
    %s191 = sphi 0, %s177
    %s197 = sphi 0, %s199
    %s200 = sphi 0, %s197
    %s201 = sphi 0, %s200
    %s217 = sphi 0, %s201
  $region4: #{bottleneck_forward.1} parent=0 // loop_header_branch
    %17 = sbr.rel (%p15) target = $region8
  $region5: #{bottleneck_forward.1} parent=0 // loop_body
    %s19 = ssub.s32 %s14, 1
    %s20 = ssub.s32 %s14, 2
    %s21 = sadd.s32 %s14, 1
    %s22 = ssub.s32 %s14, %s21
    %p23 = scmp.eq.s32.totalorder %s22, 0
    %s25 = sadd.s32 %s24, 1
    %s26 = scalar_select %p23, %s24, %s25
    %p29 = pneg %p23
    %p30 = scmp.eq.s32.totalorder %s14, 1
    %p31 = por %p29, %p30
    %p32 = scmp.ne.s32.totalorder %s24, %s27
    %p33 = scmp.eq.s32.totalorder %s14, 0
    %p34 = por %p32, %p33
    %p35 = scmp.ne.s32.totalorder %s24, %s27
    %p36 = scmp.eq.s32.totalorder %s19, 1
    %p37 = por %p35, %p36
    %p38 = scmp.ne.s32.totalorder %s27, %s28
    %p39 = scmp.eq.s32.totalorder %s19, 0
    %p40 = por %p38, %p39
    %p41 = scmp.ne.s32.totalorder %s27, %s28
    %p42 = scmp.eq.s32.totalorder %s20, 1
    %p43 = por %p41, %p42
    %p45 = scmp.ne.s32.totalorder %s28, %s44
    %p46 = scmp.eq.s32.totalorder %s20, 0
    %p47 = por %p45, %p46
    %s49 = sadd.s32 %s48, 1
    %p52 = scmp.eq.s32.totalorder %s14, 1
    %p53 = scmp.ne.s32.totalorder %s48, %s50
    %p54 = scmp.eq.s32.totalorder %s14, 0
    %p55 = por %p53, %p54
    %p56 = scmp.ne.s32.totalorder %s48, %s50
    %p57 = scmp.eq.s32.totalorder %s19, 1
    %p58 = por %p56, %p57
    %p59 = scmp.ne.s32.totalorder %s50, %s51
    %p60 = scmp.eq.s32.totalorder %s19, 0
    %p61 = por %p59, %p60
    %p62 = scmp.ne.s32.totalorder %s50, %s51
    %p63 = scmp.eq.s32.totalorder %s20, 1
    %p64 = por %p62, %p63
    %p66 = scmp.ne.s32.totalorder %s51, %s65
    %p67 = scmp.eq.s32.totalorder %s20, 0
    %p68 = por %p66, %p67
    %s70 = sadd.s32 %s69, 1
    %p73 = scmp.eq.s32.totalorder %s14, 1
    %p74 = scmp.ne.s32.totalorder %s69, %s71
    %p75 = scmp.eq.s32.totalorder %s14, 0
    %p76 = por %p74, %p75
    %p77 = scmp.ne.s32.totalorder %s69, %s71
    %p78 = scmp.eq.s32.totalorder %s19, 1
    %p79 = por %p77, %p78
    %p80 = scmp.ne.s32.totalorder %s71, %s72
    %p81 = scmp.eq.s32.totalorder %s19, 0
    %p82 = por %p80, %p81
    %p83 = scmp.ne.s32.totalorder %s71, %s72
    %p84 = scmp.eq.s32.totalorder %s20, 1
    %p85 = por %p83, %p84
    %p87 = scmp.ne.s32.totalorder %s72, %s86
    %p88 = scmp.eq.s32.totalorder %s20, 0
    %p89 = por %p87, %p88
    %s91 = sadd.s32 %s90, 1
    %p94 = scmp.eq.s32.totalorder %s14, 1
    %p95 = scmp.ne.s32.totalorder %s90, %s92
    %p96 = scmp.eq.s32.totalorder %s14, 0
    %p97 = por %p95, %p96
    %p98 = scmp.ne.s32.totalorder %s90, %s92
    %p99 = scmp.eq.s32.totalorder %s19, 1
    %p100 = por %p98, %p99
    %p101 = scmp.ne.s32.totalorder %s92, %s93
    %p102 = scmp.eq.s32.totalorder %s19, 0
    %p103 = por %p101, %p102
    %p104 = scmp.ne.s32.totalorder %s92, %s93
    %p105 = scmp.eq.s32.totalorder %s20, 1
    %p106 = por %p104, %p105
    %p108 = scmp.ne.s32.totalorder %s93, %s107
    %p109 = scmp.eq.s32.totalorder %s20, 0
    %p110 = por %p108, %p109
    %s112 = sadd.s32 %s111, 1
    %p115 = scmp.eq.s32.totalorder %s14, 1
    %p116 = scmp.ne.s32.totalorder %s111, %s113
    %p117 = scmp.eq.s32.totalorder %s14, 0
    %p118 = por %p116, %p117
    %p119 = scmp.ne.s32.totalorder %s111, %s113
    %p120 = scmp.eq.s32.totalorder %s19, 1
    %p121 = por %p119, %p120
    %p122 = scmp.ne.s32.totalorder %s113, %s114
    %p123 = scmp.eq.s32.totalorder %s19, 0
    %p124 = por %p122, %p123
    %p125 = scmp.ne.s32.totalorder %s113, %s114
    %p126 = scmp.eq.s32.totalorder %s20, 1
    %p127 = por %p125, %p126
    %p129 = scmp.ne.s32.totalorder %s114, %s128
    %p130 = scmp.eq.s32.totalorder %s20, 0
    %p131 = por %p129, %p130
    %s133 = sadd.s32 %s132, 1
    %p136 = scmp.eq.s32.totalorder %s14, 1
    %p137 = scmp.ne.s32.totalorder %s132, %s134
    %p138 = scmp.eq.s32.totalorder %s14, 0
    %p139 = por %p137, %p138
    %p140 = scmp.ne.s32.totalorder %s132, %s134
    %p141 = scmp.eq.s32.totalorder %s19, 1
    %p142 = por %p140, %p141
    %p143 = scmp.ne.s32.totalorder %s134, %s135
    %p144 = scmp.eq.s32.totalorder %s19, 0
    %p145 = por %p143, %p144
    %p146 = scmp.ne.s32.totalorder %s134, %s135
    %p147 = scmp.eq.s32.totalorder %s20, 1
    %p148 = por %p146, %p147
    %p150 = scmp.ne.s32.totalorder %s135, %s149
    %p151 = scmp.eq.s32.totalorder %s20, 0
    %p152 = por %p150, %p151
    %s154 = sadd.s32 %s153, 1
    %p157 = scmp.eq.s32.totalorder %s14, 1
    %p158 = scmp.ne.s32.totalorder %s153, %s155
    %p159 = scmp.eq.s32.totalorder %s14, 0
    %p160 = por %p158, %p159
    %p161 = scmp.ne.s32.totalorder %s153, %s155
    %p162 = scmp.eq.s32.totalorder %s19, 1
    %p163 = por %p161, %p162
    %p164 = scmp.ne.s32.totalorder %s155, %s156
    %p165 = scmp.eq.s32.totalorder %s19, 0
    %p166 = por %p164, %p165
    %p167 = scmp.ne.s32.totalorder %s155, %s156
    %p168 = scmp.eq.s32.totalorder %s20, 1
    %p169 = por %p167, %p168
    %p171 = scmp.ne.s32.totalorder %s156, %s170
    %p172 = scmp.eq.s32.totalorder %s20, 0
    %p173 = por %p171, %p172
    %s175 = sadd.s32 %s174, 1
    %p178 = scmp.eq.s32.totalorder %s14, 1
    %p179 = scmp.ne.s32.totalorder %s174, %s176
    %p180 = scmp.eq.s32.totalorder %s14, 0
    %p181 = por %p179, %p180
    %p182 = scmp.ne.s32.totalorder %s174, %s176
    %p183 = scmp.eq.s32.totalorder %s19, 1
    %p184 = por %p182, %p183
    %p185 = scmp.ne.s32.totalorder %s176, %s177
    %p186 = scmp.eq.s32.totalorder %s19, 0
    %p187 = por %p185, %p186
    %p188 = scmp.ne.s32.totalorder %s176, %s177
    %p189 = scmp.eq.s32.totalorder %s20, 1
    %p190 = por %p188, %p189
    %p192 = scmp.ne.s32.totalorder %s177, %s191
    %p193 = scmp.eq.s32.totalorder %s20, 0
    %p194 = por %p192, %p193
    %s195 = ssub.s32 %s14, %s21
    %p196 = scmp.eq.s32.totalorder %s195, 0
    %s198 = sadd.s32 %s197, 1
    %s199 = scalar_select %p196, %s197, %s198
    %p202 = pneg %p196
    %p203 = scmp.eq.s32.totalorder %s14, 1
    %p204 = por %p202, %p203
    %p205 = scmp.ne.s32.totalorder %s197, %s200
    %p206 = scmp.eq.s32.totalorder %s14, 0
    %p207 = por %p205, %p206
    %p208 = scmp.ne.s32.totalorder %s197, %s200
    %p209 = scmp.eq.s32.totalorder %s19, 1
    %p210 = por %p208, %p209
    %p211 = scmp.ne.s32.totalorder %s200, %s201
    %p212 = scmp.eq.s32.totalorder %s19, 0
    %p213 = por %p211, %p212
    %p214 = scmp.ne.s32.totalorder %s200, %s201
    %p215 = scmp.eq.s32.totalorder %s20, 1
    %p216 = por %p214, %p215
    %p218 = scmp.ne.s32.totalorder %s201, %s217
    %p219 = scmp.eq.s32.totalorder %s20, 0
    %p220 = por %p218, %p219
    %p221 = scmp.le.s32.totalorder 1, %s14
    %p222 = scmp.lt.s32.totalorder %s14, 3
    %p223 = pnand %p221, %p222
    %p224 = pneg %p223
    // Predicated region
    $region9: #{bottleneck_forward.1} parent=5 // pred_check
      _
    $region10: #{bottleneck_forward.1} parent=5 // pred_check_branch
      %226 = sbr.rel (%p223) target = $region12
    $region11: #{bottleneck_forward.1} parent=5 // pred_region
      %s227 = ssub.s32 %s14, 1
      // Predicated region
      $region13: #{bottleneck_forward.1} parent=11 // pred_check
        %p228 = pneg %p61
      $region14: #{bottleneck_forward.1} parent=11 // pred_check_branch
        %230 = sbr.rel (%p228) target = $region16
      $region15: #{bottleneck_forward.1} parent=11 // pred_region
        _
      $region16: #{bottleneck_forward.1} parent=11 // pred_fallthru
        _
      // Predicated region
      $region17: #{bottleneck_forward.1} parent=11 // pred_check
        %p231 = pneg %p82
      $region18: #{bottleneck_forward.1} parent=11 // pred_check_branch
        %233 = sbr.rel (%p231) target = $region20
      $region19: #{bottleneck_forward.1} parent=11 // pred_region
        _
      $region20: #{bottleneck_forward.1} parent=11 // pred_fallthru
        _
      // Predicated region
      $region21: #{bottleneck_forward.1} parent=11 // pred_check
        %p234 = pneg %p103
      $region22: #{bottleneck_forward.1} parent=11 // pred_check_branch
        %236 = sbr.rel (%p234) target = $region24
      $region23: #{bottleneck_forward.1} parent=11 // pred_region
        _
      $region24: #{bottleneck_forward.1} parent=11 // pred_fallthru
        _
      // Predicated region
      $region25: #{bottleneck_forward.1} parent=11 // pred_check
        %p237 = pneg %p124
      $region26: #{bottleneck_forward.1} parent=11 // pred_check_branch
        %239 = sbr.rel (%p237) target = $region28
      $region27: #{bottleneck_forward.1} parent=11 // pred_region
        _
      $region28: #{bottleneck_forward.1} parent=11 // pred_fallthru
        _
      // Predicated region
      $region29: #{bottleneck_forward.1} parent=11 // pred_check
        %p240 = pneg %p145
      $region30: #{bottleneck_forward.1} parent=11 // pred_check_branch
        %242 = sbr.rel (%p240) target = $region32
      $region31: #{bottleneck_forward.1} parent=11 // pred_region
        _
      $region32: #{bottleneck_forward.1} parent=11 // pred_fallthru
        _
      // Predicated region
      $region33: #{bottleneck_forward.1} parent=11 // pred_check
        %p243 = pneg %p166
      $region34: #{bottleneck_forward.1} parent=11 // pred_check_branch
        %245 = sbr.rel (%p243) target = $region36
      $region35: #{bottleneck_forward.1} parent=11 // pred_region
        _
      $region36: #{bottleneck_forward.1} parent=11 // pred_fallthru
        _
      // Predicated region
      $region37: #{bottleneck_forward.1} parent=11 // pred_check
        %p246 = pneg %p187
      $region38: #{bottleneck_forward.1} parent=11 // pred_check_branch
        %248 = sbr.rel (%p246) target = $region40
      $region39: #{bottleneck_forward.1} parent=11 // pred_region
        _
      $region40: #{bottleneck_forward.1} parent=11 // pred_fallthru
        _
    $region12: #{bottleneck_forward.1} parent=5 // pred_fallthru
      _
    %p249 = scmp.lt.s32.totalorder %s14, 2
    // Predicated region
    $region41: #{bottleneck_forward.1} parent=5 // pred_check
      %p250 = pneg %p249
    $region42: #{bottleneck_forward.1} parent=5 // pred_check_branch
      %252 = sbr.rel (%p250) target = $region44
    $region43: #{bottleneck_forward.1} parent=5 // pred_region
      // Predicated region
      $region45: #{bottleneck_forward.1} parent=43 // pred_check
        %p253 = pneg %p34
      $region46: #{bottleneck_forward.1} parent=43 // pred_check_branch
        %255 = sbr.rel (%p253) target = $region48
      $region47: #{bottleneck_forward.1} parent=43 // pred_region
        %p256 = scmp.lt.s32.totalorder %s14, 1
        %s257 = scalar_select %p256, %s14, 1
        %s258 = smul.addr %s257, 56
        %s259 = smul.addr %s258, 4
        %s260 = scalar_lea.vmem %s0, %s259
      $region48: #{bottleneck_forward.1} parent=43 // pred_fallthru
        _
    $region44: #{bottleneck_forward.1} parent=5 // pred_fallthru
      _
    %p261 = scmp.le.s32.totalorder 1, %s14
    %p262 = scmp.lt.s32.totalorder %s14, 3
    %p263 = pnand %p261, %p262
    %p264 = pneg %p263
    // Predicated region
    $region49: #{bottleneck_forward.1} parent=5 // pred_check
      _
    $region50: #{bottleneck_forward.1} parent=5 // pred_check_branch
      %266 = sbr.rel (%p263) target = $region52
    $region51: #{bottleneck_forward.1} parent=5 // pred_region
      %s267 = ssub.s32 %s14, 1
      %p268 = scmp.lt.s32.totalorder %s19, 1
      %s269 = scalar_select %p268, %s19, 1
      %s270 = smul.addr %s269, 56
      %s271 = smul.addr %s270, 4
      %s272 = scalar_lea.vmem %s0, %s271
      %p273 = pneg %p40
      %p274 = pneg %p37
      %p275 = pneg %p61
      %p276 = pneg %p58
      %p277 = pneg %p82
      %p278 = pneg %p79
      %p279 = pneg %p103
      %p280 = pneg %p100
      %p281 = pneg %p124
      %p282 = pneg %p121
      %p283 = pneg %p145
      %p284 = pneg %p142
      %p285 = pneg %p166
      %p286 = pneg %p163
      %p287 = pneg %p187
      %p288 = pneg %p184
      %p289 = pneg %p213
      %p290 = pneg %p210
      %p291 = scmp.lt.s32.totalorder %s19, 1
      %s292 = scalar_select %p291, %s19, 1
      %s293 = smul.addr %s292, 48
      %s294 = smul.addr %s293, 4
      %s295 = scalar_lea.vmem %s8, %s294
      %p296 = scmp.lt.s32.totalorder %s19, 1
      %s297 = scalar_select %p296, %s19, 1
      %s298 = smul.addr %s297, 56
      %s299 = smul.addr %s298, 4
      %s300 = scalar_lea.vmem %s0, %s299
      %p301 = scmp.lt.s32.totalorder %s19, 1
      %s302 = scalar_select %p301, %s19, 1
      %s303 = smul.addr %s302, 48
      %s304 = smul.addr %s303, 4
      %s305 = scalar_lea.vmem %s8, %s304
      %v306 = vld [vmem:[%s300] sm:$0xf]
      %v307 = vld [vmem:[%s300 + $0x4] sm:$0xf]
      %v308 = vld [vmem:[%s300 + $0x8] sm:$0xf]
      %v309 = vld [vmem:[%s300 + $0xc] sm:$0xf]
      %v310 = vld [vmem:[%s300 + $0x10] sm:$0xf]
      %v311 = vld [vmem:[%s300 + $0x14] sm:$0xf]
      %v312 = vld [vmem:[%s300 + $0x18] sm:$0xf]
      %v313 = vld [vmem:[%s300 + $0x1c] sm:$0xf]
      %v314 = vld [vmem:[%s300 + $0x20] sm:$0xf]
      %v315 = vld [vmem:[%s300 + $0x24] sm:$0xf]
      %v316 = vld [vmem:[%s300 + $0x28] sm:$0xf]
      %v317 = vld [vmem:[%s300 + $0x2c] sm:$0xf]
      %v318 = vld [vmem:[%s300 + $0x30] sm:$0xf]
      %v319 = vld [vmem:[%s300 + $0x34] sm:$0xf]
      %v320 = vld [vmem:[%s300 + $0x38] sm:$0xf]
      %v321 = vld [vmem:[%s300 + $0x3c] sm:$0xf]
      %v322 = vld [vmem:[%s300 + $0x40] sm:$0xf]
      %v323 = vld [vmem:[%s300 + $0x44] sm:$0xf]
      %v324 = vld [vmem:[%s300 + $0x48] sm:$0xf]
      %v325 = vld [vmem:[%s300 + $0x4c] sm:$0xf]
      %v326 = vld [vmem:[%s300 + $0x50] sm:$0xf]
      %v327 = vld [vmem:[%s300 + $0x54] sm:$0xf]
      %v328 = vld [vmem:[%s300 + $0x58] sm:$0xf]
      %v329 = vld [vmem:[%s300 + $0x5c] sm:$0xf]
      %v330 = vld [vmem:[%s300 + $0x60] sm:$0xf]
      %v331 = vld [vmem:[%s300 + $0x64] sm:$0xf]
      %v332 = vld [vmem:[%s300 + $0x68] sm:$0xf]
      %v333 = vld [vmem:[%s300 + $0x6c] sm:$0xf]
      %v334 = vld [vmem:[%s300 + $0x70] sm:$0xf]
      %v335 = vld [vmem:[%s300 + $0x74] sm:$0xf]
      %v336 = vld [vmem:[%s300 + $0x78] sm:$0xf]
      %v337 = vld [vmem:[%s300 + $0x7c] sm:$0xf]
      %v338 = vld [vmem:[%s300 + $0x80] sm:$0xf]
      %v339 = vld [vmem:[%s300 + $0x84] sm:$0xf]
      %v340 = vld [vmem:[%s300 + $0x88] sm:$0xf]
      %v341 = vld [vmem:[%s300 + $0x8c] sm:$0xf]
      %v342 = vld [vmem:[%s300 + $0x90] sm:$0xf]
      %v343 = vld [vmem:[%s300 + $0x94] sm:$0xf]
      %v344 = vld [vmem:[%s300 + $0x98] sm:$0xf]
      %v345 = vld [vmem:[%s300 + $0x9c] sm:$0xf]
      %v346 = vld [vmem:[%s300 + $0xa0] sm:$0xf]
      %v347 = vld [vmem:[%s300 + $0xa4] sm:$0xf]
      %v348 = vld [vmem:[%s300 + $0xa8] sm:$0xf]
      %v349 = vld [vmem:[%s300 + $0xac] sm:$0xf]
      %v350 = vld [vmem:[%s300 + $0xb0] sm:$0xf]
      %v351 = vld [vmem:[%s300 + $0xb4] sm:$0xf]
      %v352 = vld [vmem:[%s300 + $0xb8] sm:$0xf]
      %v353 = vld [vmem:[%s300 + $0xbc] sm:$0xf]
      %v354 = vld [vmem:[%s300 + $0xc0] sm:$0xf]
      %v355 = vld [vmem:[%s300 + $0xc4] sm:$0xf]
      %v356 = vld [vmem:[%s300 + $0xc8] sm:$0xf]
      %v357 = vld [vmem:[%s300 + $0xcc] sm:$0xf]
      %v358 = vld [vmem:[%s300 + $0xd0] sm:$0xf]
      %v359 = vld [vmem:[%s300 + $0xd4] sm:$0xf]
      %v360 = vld [vmem:[%s300 + $0xd8] sm:$0xf]
      %v361 = vld [vmem:[%s300 + $0xdc] sm:$0xf]
      %v362 = vld [vmem:[%s1] sm:$0xf]
      %v363 = vld [vmem:[%s1 + $0x4] sm:$0xf]
      %v364 = vld [vmem:[%s1 + $0x8] sm:$0xf]
      %v365 = vld [vmem:[%s1 + $0xc] sm:$0xf]
      %v366 = vld [vmem:[%s1 + $0x10] sm:$0xf]
      %v367 = vld [vmem:[%s1 + $0x14] sm:$0xf]
      %v368 = vld [vmem:[%s1 + $0x18] sm:$0xf]
      %v369 = vld [vmem:[%s1 + $0x1c] sm:$0xf]
      %v370 = vld [vmem:[%s1 + $0x20] sm:$0xf]
      %v371 = vld [vmem:[%s1 + $0x24] sm:$0xf]
      %v372 = vld [vmem:[%s1 + $0x28] sm:$0xf]
      %v373 = vld [vmem:[%s1 + $0x2c] sm:$0xf]
      %v374 = vld [vmem:[%s1 + $0x30] sm:$0xf]
      %v375 = vld [vmem:[%s1 + $0x34] sm:$0xf]
      %v376 = vld [vmem:[%s1 + $0x38] sm:$0xf]
      %v377 = vld [vmem:[%s1 + $0x3c] sm:$0xf]
      %v378 = vld [vmem:[%s4] sm:$0x1]
      %v380 = vperm.slane %v378, 0
      %v438 = vunpack.c.l.b16 %v306
      %v439 = vunpack.c.l.b16 %v307
      %v440 = vunpack.c.l.b16 %v308
      %v441 = vunpack.c.l.b16 %v309
      %v442 = vunpack.c.l.b16 %v310
      %v443 = vunpack.c.l.b16 %v311
      %v444 = vunpack.c.l.b16 %v312
      %v445 = vunpack.c.l.b16 %v313
      %v446 = vunpack.c.l.b16 %v314
      %v447 = vunpack.c.l.b16 %v315
      %v448 = vunpack.c.l.b16 %v316
      %v449 = vunpack.c.l.b16 %v317
      %v450 = vunpack.c.l.b16 %v318
      %v451 = vunpack.c.l.b16 %v319
      %v452 = vunpack.c.l.b16 %v320
      %v453 = vunpack.c.l.b16 %v321
      %v454 = vunpack.c.l.b16 %v322
      %v455 = vunpack.c.l.b16 %v323
      %v456 = vunpack.c.l.b16 %v324
      %v457 = vunpack.c.l.b16 %v325
      %v458 = vunpack.c.l.b16 %v326
      %v459 = vunpack.c.l.b16 %v327
      %v460 = vunpack.c.l.b16 %v328
      %v461 = vunpack.c.l.b16 %v329
      %v462 = vunpack.c.l.b16 %v330
      %v463 = vunpack.c.l.b16 %v331
      %v464 = vunpack.c.l.b16 %v332
      %v465 = vunpack.c.l.b16 %v333
      %v466 = vunpack.c.l.b16 %v334
      %v467 = vunpack.c.l.b16 %v335
      %v468 = vunpack.c.l.b16 %v336
      %v469 = vunpack.c.l.b16 %v337
      %v470 = vunpack.c.l.b16 %v338
      %v471 = vunpack.c.l.b16 %v339
      %v472 = vunpack.c.l.b16 %v340
      %v473 = vunpack.c.l.b16 %v341
      %v474 = vunpack.c.l.b16 %v342
      %v475 = vunpack.c.l.b16 %v343
      %v476 = vunpack.c.l.b16 %v344
      %v477 = vunpack.c.l.b16 %v345
      %v478 = vunpack.c.l.b16 %v346
      %v479 = vunpack.c.l.b16 %v347
      %v480 = vunpack.c.l.b16 %v348
      %v481 = vunpack.c.l.b16 %v349
      %v482 = vunpack.c.l.b16 %v350
      %v483 = vunpack.c.l.b16 %v351
      %v484 = vunpack.c.l.b16 %v352
      %v485 = vunpack.c.l.b16 %v353
      %v486 = vunpack.c.l.b16 %v354
      %v487 = vunpack.c.l.b16 %v355
      %v488 = vunpack.c.l.b16 %v356
      %v489 = vunpack.c.l.b16 %v357
      %v490 = vunpack.c.l.b16 %v358
      %v491 = vunpack.c.l.b16 %v359
      %v492 = vunpack.c.l.b16 %v360
      %v493 = vunpack.c.l.b16 %v361
      %v494 = vpack.c.b16 %v439, %v438
      %v495 = vpack.c.b16 %v441, %v440
      %v496 = vpack.c.b16 %v443, %v442
      %v497 = vpack.c.b16 %v445, %v444
      %v498 = vpack.c.b16 %v447, %v446
      %v499 = vpack.c.b16 %v449, %v448
      %v500 = vpack.c.b16 %v451, %v450
      %v501 = vpack.c.b16 %v453, %v452
      %v502 = vpack.c.b16 %v455, %v454
      %v503 = vpack.c.b16 %v457, %v456
      %v504 = vpack.c.b16 %v459, %v458
      %v505 = vpack.c.b16 %v461, %v460
      %v506 = vpack.c.b16 %v463, %v462
      %v507 = vpack.c.b16 %v465, %v464
      %v508 = vpack.c.b16 %v467, %v466
      %v509 = vpack.c.b16 %v469, %v468
      %v510 = vpack.c.b16 %v471, %v470
      %v511 = vpack.c.b16 %v473, %v472
      %v512 = vpack.c.b16 %v475, %v474
      %v513 = vpack.c.b16 %v477, %v476
      %v514 = vpack.c.b16 %v479, %v478
      %v515 = vpack.c.b16 %v481, %v480
      %v516 = vpack.c.b16 %v483, %v482
      %v517 = vpack.c.b16 %v485, %v484
      %v518 = vpack.c.b16 %v487, %v486
      %v519 = vpack.c.b16 %v489, %v488
      %v520 = vpack.c.b16 %v491, %v490
      %v521 = vpack.c.b16 %v493, %v492
      %v566 = vunpack.c.l.b16 %v362
      %v567 = vunpack.c.l.b16 %v363
      %v568 = vunpack.c.l.b16 %v364
      %v569 = vunpack.c.l.b16 %v365
      %v570 = vunpack.c.l.b16 %v366
      %v571 = vunpack.c.l.b16 %v367
      %v572 = vunpack.c.l.b16 %v368
      %v573 = vunpack.c.l.b16 %v369
      %v574 = vunpack.c.l.b16 %v370
      %v575 = vunpack.c.l.b16 %v371
      %v576 = vunpack.c.l.b16 %v372
      %v577 = vunpack.c.l.b16 %v373
      %v578 = vunpack.c.l.b16 %v374
      %v579 = vunpack.c.l.b16 %v375
      %v580 = vunpack.c.l.b16 %v376
      %v581 = vunpack.c.l.b16 %v377
      %v582 = vpack.c.b16 %v567, %v566
      %v583 = vpack.c.b16 %v569, %v568
      %v584 = vpack.c.b16 %v571, %v570
      %v585 = vpack.c.b16 %v573, %v572
      %v586 = vpack.c.b16 %v575, %v574
      %v587 = vpack.c.b16 %v577, %v576
      %v588 = vpack.c.b16 %v579, %v578
      %v589 = vpack.c.b16 %v581, %v580
      %598 = vmatpush.bf16.msra.mxu0 %v589
      %599 = vmatpush.bf16.msra.mxu0 %v588
      %600 = vmatpush.bf16.msra.mxu0 %v587
      %601 = vmatpush.bf16.msra.mxu0 %v586
      %602 = vmatpush.bf16.msra.mxu0 %v585
      %603 = vmatpush.bf16.msra.mxu0 %v584
      %604 = vmatpush.bf16.msra.mxu0 %v583
      %605 = vmatpush.bf16.msra.mxu0 %v582
      %606 = vmatmul.bf16.gmra.mxu0 %v494
      %v607 = vpop.f32.mrf.mxu0
      %v608 = vadd.f32 %v380, %v607
      %v609 = vpop.f32.mrf.mxu0
      %v610 = vadd.f32 %v380, %v609
      %611 = vmatmul.bf16.gmra.mxu0 %v495
      %v612 = vpop.f32.mrf.mxu0
      %v613 = vadd.f32 %v380, %v612
      %v614 = vpop.f32.mrf.mxu0
      %v615 = vadd.f32 %v380, %v614
      %616 = vmatmul.bf16.gmra.mxu0 %v496
      %v617 = vpop.f32.mrf.mxu0
      %v618 = vadd.f32 %v380, %v617
      %v619 = vpop.f32.mrf.mxu0
      %v620 = vadd.f32 %v380, %v619
      %621 = vmatmul.bf16.gmra.mxu0 %v497
      %v622 = vpop.f32.mrf.mxu0
      %v623 = vadd.f32 %v380, %v622
      %v624 = vpop.f32.mrf.mxu0
      %v625 = vadd.f32 %v380, %v624
      %626 = vmatmul.bf16.gmra.mxu0 %v498
      %v627 = vpop.f32.mrf.mxu0
      %v628 = vadd.f32 %v380, %v627
      %v629 = vpop.f32.mrf.mxu0
      %v630 = vadd.f32 %v380, %v629
      %631 = vmatmul.bf16.gmra.mxu0 %v499
      %v632 = vpop.f32.mrf.mxu0
      %v633 = vadd.f32 %v380, %v632
      %v634 = vpop.f32.mrf.mxu0
      %v635 = vadd.f32 %v380, %v634
      %636 = vmatmul.bf16.gmra.mxu0 %v500
      %v637 = vpop.f32.mrf.mxu0
      %v638 = vadd.f32 %v380, %v637
      %v639 = vpop.f32.mrf.mxu0
      %v640 = vadd.f32 %v380, %v639
      %641 = vmatmul.bf16.gmra.mxu0 %v501
      %v642 = vpop.f32.mrf.mxu0
      %v643 = vadd.f32 %v380, %v642
      %v644 = vpop.f32.mrf.mxu0
      %v645 = vadd.f32 %v380, %v644
      %646 = vmatmul.bf16.gmra.mxu0 %v502
      %v647 = vpop.f32.mrf.mxu0
      %v648 = vadd.f32 %v380, %v647
      %v649 = vpop.f32.mrf.mxu0
      %v650 = vadd.f32 %v380, %v649
      %651 = vmatmul.bf16.gmra.mxu0 %v503
      %v652 = vpop.f32.mrf.mxu0
      %v653 = vadd.f32 %v380, %v652
      %v654 = vpop.f32.mrf.mxu0
      %v655 = vadd.f32 %v380, %v654
      %656 = vmatmul.bf16.gmra.mxu0 %v504
      %v657 = vpop.f32.mrf.mxu0
      %v658 = vadd.f32 %v380, %v657
      %v659 = vpop.f32.mrf.mxu0
      %v660 = vadd.f32 %v380, %v659
      %661 = vmatmul.bf16.gmra.mxu0 %v505
      %v662 = vpop.f32.mrf.mxu0
      %v663 = vadd.f32 %v380, %v662
      %v664 = vpop.f32.mrf.mxu0
      %v665 = vadd.f32 %v380, %v664
      %666 = vmatmul.bf16.gmra.mxu0 %v506
      %v667 = vpop.f32.mrf.mxu0
      %v668 = vadd.f32 %v380, %v667
      %v669 = vpop.f32.mrf.mxu0
      %v670 = vadd.f32 %v380, %v669
      %671 = vmatmul.bf16.gmra.mxu0 %v507
      %v672 = vpop.f32.mrf.mxu0
      %v673 = vadd.f32 %v380, %v672
      %v674 = vpop.f32.mrf.mxu0
      %v675 = vadd.f32 %v380, %v674
      %676 = vmatmul.bf16.gmra.mxu0 %v508
      %v677 = vpop.f32.mrf.mxu0
      %v678 = vadd.f32 %v380, %v677
      %v679 = vpop.f32.mrf.mxu0
      %v680 = vadd.f32 %v380, %v679
      %681 = vmatmul.bf16.gmra.mxu0 %v509
      %v682 = vpop.f32.mrf.mxu0
      %v683 = vadd.f32 %v380, %v682
      %v684 = vpop.f32.mrf.mxu0
      %v685 = vadd.f32 %v380, %v684
      %686 = vmatmul.bf16.gmra.mxu0 %v510
      %v687 = vpop.f32.mrf.mxu0
      %v688 = vadd.f32 %v380, %v687
      %v689 = vpop.f32.mrf.mxu0
      %v690 = vadd.f32 %v380, %v689
      %691 = vmatmul.bf16.gmra.mxu0 %v511
      %v692 = vpop.f32.mrf.mxu0
      %v693 = vadd.f32 %v380, %v692
      %v694 = vpop.f32.mrf.mxu0
      %v695 = vadd.f32 %v380, %v694
      %696 = vmatmul.bf16.gmra.mxu0 %v512
      %v697 = vpop.f32.mrf.mxu0
      %v698 = vadd.f32 %v380, %v697
      %v699 = vpop.f32.mrf.mxu0
      %v700 = vadd.f32 %v380, %v699
      %701 = vmatmul.bf16.gmra.mxu0 %v513
      %v702 = vpop.f32.mrf.mxu0
      %v703 = vadd.f32 %v380, %v702
      %v704 = vpop.f32.mrf.mxu0
      %v705 = vadd.f32 %v380, %v704
      %706 = vmatmul.bf16.gmra.mxu0 %v514
      %v707 = vpop.f32.mrf.mxu0
      %v708 = vadd.f32 %v380, %v707
      %v709 = vpop.f32.mrf.mxu0
      %v710 = vadd.f32 %v380, %v709
      %711 = vmatmul.bf16.gmra.mxu0 %v515
      %v712 = vpop.f32.mrf.mxu0
      %v713 = vadd.f32 %v380, %v712
      %v714 = vpop.f32.mrf.mxu0
      %v715 = vadd.f32 %v380, %v714
      %716 = vmatmul.bf16.gmra.mxu0 %v516
      %v717 = vpop.f32.mrf.mxu0
      %v718 = vadd.f32 %v380, %v717
      %v719 = vpop.f32.mrf.mxu0
      %v720 = vadd.f32 %v380, %v719
      %721 = vmatmul.bf16.gmra.mxu0 %v517
      %v722 = vpop.f32.mrf.mxu0
      %v723 = vadd.f32 %v380, %v722
      %v724 = vpop.f32.mrf.mxu0
      %v725 = vadd.f32 %v380, %v724
      %726 = vmatmul.bf16.gmra.mxu0 %v518
      %v727 = vpop.f32.mrf.mxu0
      %v728 = vadd.f32 %v380, %v727
      %v729 = vpop.f32.mrf.mxu0
      %v730 = vadd.f32 %v380, %v729
      %731 = vmatmul.bf16.gmra.mxu0 %v519
      %v732 = vpop.f32.mrf.mxu0
      %v733 = vadd.f32 %v380, %v732
      %v734 = vpop.f32.mrf.mxu0
      %v735 = vadd.f32 %v380, %v734
      %736 = vmatmul.bf16.gmra.mxu0 %v520
      %v737 = vpop.f32.mrf.mxu0
      %v738 = vadd.f32 %v380, %v737
      %v739 = vpop.f32.mrf.mxu0
      %v740 = vadd.f32 %v380, %v739
      %741 = vmatmul.bf16.gmra.mxu0 %v521
      %v742 = vpop.f32.mrf.mxu0
      %v743 = vadd.f32 %v380, %v742
      %v744 = vpop.f32.mrf.mxu0
      %v745 = vadd.f32 %v380, %v744
      %746 = vdwg.mxu0
      %v747 = vmax.f32 %v608, 0.0
      %v748 = vmax.f32 %v610, 0.0
      %v749 = vmax.f32 %v613, 0.0
      %v750 = vmax.f32 %v615, 0.0
      %v751 = vmax.f32 %v618, 0.0
      %v752 = vmax.f32 %v620, 0.0
      %v753 = vmax.f32 %v623, 0.0
      %v754 = vmax.f32 %v625, 0.0
      %v755 = vmax.f32 %v628, 0.0
      %v756 = vmax.f32 %v630, 0.0
      %v757 = vmax.f32 %v633, 0.0
      %v758 = vmax.f32 %v635, 0.0
      %v759 = vmax.f32 %v638, 0.0
      %v760 = vmax.f32 %v640, 0.0
      %v761 = vmax.f32 %v643, 0.0
      %v762 = vmax.f32 %v645, 0.0
      %v763 = vmax.f32 %v648, 0.0
      %v764 = vmax.f32 %v650, 0.0
      %v765 = vmax.f32 %v653, 0.0
      %v766 = vmax.f32 %v655, 0.0
      %v767 = vmax.f32 %v658, 0.0
      %v768 = vmax.f32 %v660, 0.0
      %v769 = vmax.f32 %v663, 0.0
      %v770 = vmax.f32 %v665, 0.0
      %v771 = vmax.f32 %v668, 0.0
      %v772 = vmax.f32 %v670, 0.0
      %v773 = vmax.f32 %v673, 0.0
      %v774 = vmax.f32 %v675, 0.0
      %v775 = vmax.f32 %v678, 0.0
      %v776 = vmax.f32 %v680, 0.0
      %v777 = vmax.f32 %v683, 0.0
      %v778 = vmax.f32 %v685, 0.0
      %v779 = vmax.f32 %v688, 0.0
      %v780 = vmax.f32 %v690, 0.0
      %v781 = vmax.f32 %v693, 0.0
      %v782 = vmax.f32 %v695, 0.0
      %v783 = vmax.f32 %v698, 0.0
      %v784 = vmax.f32 %v700, 0.0
      %v785 = vmax.f32 %v703, 0.0
      %v786 = vmax.f32 %v705, 0.0
      %v787 = vmax.f32 %v708, 0.0
      %v788 = vmax.f32 %v710, 0.0
      %v789 = vmax.f32 %v713, 0.0
      %v790 = vmax.f32 %v715, 0.0
      %v791 = vmax.f32 %v718, 0.0
      %v792 = vmax.f32 %v720, 0.0
      %v793 = vmax.f32 %v723, 0.0
      %v794 = vmax.f32 %v725, 0.0
      %v795 = vmax.f32 %v728, 0.0
      %v796 = vmax.f32 %v730, 0.0
      %v797 = vmax.f32 %v733, 0.0
      %v798 = vmax.f32 %v735, 0.0
      %v799 = vmax.f32 %v738, 0.0
      %v800 = vmax.f32 %v740, 0.0
      %v801 = vmax.f32 %v743, 0.0
      %v802 = vmax.f32 %v745, 0.0
      %v803 = vld [vmem:[%s7] sm:$0xf]
      %v804 = vld [vmem:[%s7 + $0x4] sm:$0xf]
      %v805 = vld [vmem:[%s7 + $0x8] sm:$0xf]
      %v806 = vld [vmem:[%s7 + $0xc] sm:$0xf]
      %v807 = vld [vmem:[%s7 + $0x10] sm:$0xf]
      %v808 = vld [vmem:[%s7 + $0x14] sm:$0xf]
      %v809 = vld [vmem:[%s7 + $0x18] sm:$0xf]
      %v810 = vld [vmem:[%s7 + $0x1c] sm:$0xf]
      %v811 = vld [vmem:[%s7 + $0x20] sm:$0xf]
      %v812 = vld [vmem:[%s7 + $0x24] sm:$0xf]
      %v813 = vld [vmem:[%s7 + $0x28] sm:$0xf]
      %v814 = vld [vmem:[%s7 + $0x2c] sm:$0xf]
      %v815 = vld [vmem:[%s7 + $0x30] sm:$0xf]
      %v816 = vld [vmem:[%s7 + $0x34] sm:$0xf]
      %v817 = vld [vmem:[%s7 + $0x38] sm:$0xf]
      %v818 = vld [vmem:[%s7 + $0x3c] sm:$0xf]
      %v819 = vld [vmem:[%s7 + $0x40] sm:$0xf]
      %v820 = vld [vmem:[%s7 + $0x44] sm:$0xf]
      %v821 = vld [vmem:[%s7 + $0x48] sm:$0xf]
      %v822 = vld [vmem:[%s7 + $0x4c] sm:$0xf]
      %v823 = vld [vmem:[%s7 + $0x50] sm:$0xf]
      %v824 = vld [vmem:[%s7 + $0x54] sm:$0xf]
      %v825 = vld [vmem:[%s7 + $0x58] sm:$0xf]
      %v826 = vld [vmem:[%s7 + $0x5c] sm:$0xf]
      %v827 = vld [vmem:[%s7 + $0x60] sm:$0xf]
      %v828 = vld [vmem:[%s7 + $0x64] sm:$0xf]
      %v829 = vld [vmem:[%s7 + $0x68] sm:$0xf]
      %v830 = vld [vmem:[%s7 + $0x6c] sm:$0xf]
      %v831 = vld [vmem:[%s7 + $0x70] sm:$0xf]
      %v832 = vld [vmem:[%s7 + $0x74] sm:$0xf]
      %v833 = vld [vmem:[%s7 + $0x78] sm:$0xf]
      %v834 = vld [vmem:[%s7 + $0x7c] sm:$0xf]
      %v835 = vld [vmem:[%s7 + $0x80] sm:$0xf]
      %v836 = vld [vmem:[%s7 + $0x84] sm:$0xf]
      %v837 = vld [vmem:[%s7 + $0x88] sm:$0xf]
      %v838 = vld [vmem:[%s7 + $0x8c] sm:$0xf]
      %v839 = vld [vmem:[%s7 + $0x90] sm:$0xf]
      %v840 = vld [vmem:[%s7 + $0x94] sm:$0xf]
      %v841 = vld [vmem:[%s7 + $0x98] sm:$0xf]
      %v842 = vld [vmem:[%s7 + $0x9c] sm:$0xf]
      %v843 = vld [vmem:[%s7 + $0xa0] sm:$0xf]
      %v844 = vld [vmem:[%s7 + $0xa4] sm:$0xf]
      %v845 = vld [vmem:[%s7 + $0xa8] sm:$0xf]
      %v846 = vld [vmem:[%s7 + $0xac] sm:$0xf]
      %v847 = vld [vmem:[%s7 + $0xb0] sm:$0xf]
      %v848 = vld [vmem:[%s7 + $0xb4] sm:$0xf]
      %v849 = vld [vmem:[%s7 + $0xb8] sm:$0xf]
      %v850 = vld [vmem:[%s7 + $0xbc] sm:$0xf]
      %v851 = vld [vmem:[%s7 + $0xc0] sm:$0xf]
      %v852 = vld [vmem:[%s7 + $0xc4] sm:$0xf]
      %v853 = vld [vmem:[%s7 + $0xc8] sm:$0xf]
      %v854 = vld [vmem:[%s7 + $0xcc] sm:$0xf]
      %v855 = vld [vmem:[%s7 + $0xd0] sm:$0xf]
      %v856 = vld [vmem:[%s7 + $0xd4] sm:$0xf]
      %v857 = vld [vmem:[%s7 + $0xd8] sm:$0xf]
      %v858 = vld [vmem:[%s7 + $0xdc] sm:$0xf]
      %v859 = vunpack.c.l.bf16 %v803
      %v860 = vunpack.c.l.bf16 %v804
      %v861 = vunpack.c.l.bf16 %v805
      %v862 = vunpack.c.l.bf16 %v806
      %v863 = vunpack.c.l.bf16 %v807
      %v864 = vunpack.c.l.bf16 %v808
      %v865 = vunpack.c.l.bf16 %v809
      %v866 = vunpack.c.l.bf16 %v810
      %v867 = vunpack.c.l.bf16 %v811
      %v868 = vunpack.c.l.bf16 %v812
      %v869 = vunpack.c.l.bf16 %v813
      %v870 = vunpack.c.l.bf16 %v814
      %v871 = vunpack.c.l.bf16 %v815
      %v872 = vunpack.c.l.bf16 %v816
      %v873 = vunpack.c.l.bf16 %v817
      %v874 = vunpack.c.l.bf16 %v818
      %v875 = vunpack.c.l.bf16 %v819
      %v876 = vunpack.c.l.bf16 %v820
      %v877 = vunpack.c.l.bf16 %v821
      %v878 = vunpack.c.l.bf16 %v822
      %v879 = vunpack.c.l.bf16 %v823
      %v880 = vunpack.c.l.bf16 %v824
      %v881 = vunpack.c.l.bf16 %v825
      %v882 = vunpack.c.l.bf16 %v826
      %v883 = vunpack.c.l.bf16 %v827
      %v884 = vunpack.c.l.bf16 %v828
      %v885 = vunpack.c.l.bf16 %v829
      %v886 = vunpack.c.l.bf16 %v830
      %v887 = vunpack.c.l.bf16 %v831
      %v888 = vunpack.c.l.bf16 %v832
      %v889 = vunpack.c.l.bf16 %v833
      %v890 = vunpack.c.l.bf16 %v834
      %v891 = vunpack.c.l.bf16 %v835
      %v892 = vunpack.c.l.bf16 %v836
      %v893 = vunpack.c.l.bf16 %v837
      %v894 = vunpack.c.l.bf16 %v838
      %v895 = vunpack.c.l.bf16 %v839
      %v896 = vunpack.c.l.bf16 %v840
      %v897 = vunpack.c.l.bf16 %v841
      %v898 = vunpack.c.l.bf16 %v842
      %v899 = vunpack.c.l.bf16 %v843
      %v900 = vunpack.c.l.bf16 %v844
      %v901 = vunpack.c.l.bf16 %v845
      %v902 = vunpack.c.l.bf16 %v846
      %v903 = vunpack.c.l.bf16 %v847
      %v904 = vunpack.c.l.bf16 %v848
      %v905 = vunpack.c.l.bf16 %v849
      %v906 = vunpack.c.l.bf16 %v850
      %v907 = vunpack.c.l.bf16 %v851
      %v908 = vunpack.c.l.bf16 %v852
      %v909 = vunpack.c.l.bf16 %v853
      %v910 = vunpack.c.l.bf16 %v854
      %v911 = vunpack.c.l.bf16 %v855
      %v912 = vunpack.c.l.bf16 %v856
      %v913 = vunpack.c.l.bf16 %v857
      %v914 = vunpack.c.l.bf16 %v858
      %916 = vset.pattern.permute.xlu0 0
      %917 = vperm.xlu0 %916, %v859
      %v918 = vpop.permute.xlu0 %917
      %921 = vset.pattern.permute.xlu0 0
      %922 = vperm.xlu0 %921, %v860
      %v923 = vpop.permute.xlu0 %922
      %926 = vset.pattern.permute.xlu0 0
      %927 = vperm.xlu0 %926, %v861
      %v928 = vpop.permute.xlu0 %927
      %931 = vset.pattern.permute.xlu0 0
      %932 = vperm.xlu0 %931, %v862
      %v933 = vpop.permute.xlu0 %932
      %936 = vset.pattern.permute.xlu0 0
      %937 = vperm.xlu0 %936, %v863
      %v938 = vpop.permute.xlu0 %937
      %941 = vset.pattern.permute.xlu0 0
      %942 = vperm.xlu0 %941, %v864
      %v943 = vpop.permute.xlu0 %942
      %946 = vset.pattern.permute.xlu0 0
      %947 = vperm.xlu0 %946, %v865
      %v948 = vpop.permute.xlu0 %947
      %951 = vset.pattern.permute.xlu0 0
      %952 = vperm.xlu0 %951, %v866
      %v953 = vpop.permute.xlu0 %952
      %956 = vset.pattern.permute.xlu0 0
      %957 = vperm.xlu0 %956, %v867
      %v958 = vpop.permute.xlu0 %957
      %961 = vset.pattern.permute.xlu0 0
      %962 = vperm.xlu0 %961, %v868
      %v963 = vpop.permute.xlu0 %962
      %966 = vset.pattern.permute.xlu0 0
      %967 = vperm.xlu0 %966, %v869
      %v968 = vpop.permute.xlu0 %967
      %971 = vset.pattern.permute.xlu0 0
      %972 = vperm.xlu0 %971, %v870
      %v973 = vpop.permute.xlu0 %972
      %976 = vset.pattern.permute.xlu0 0
      %977 = vperm.xlu0 %976, %v871
      %v978 = vpop.permute.xlu0 %977
      %981 = vset.pattern.permute.xlu0 0
      %982 = vperm.xlu0 %981, %v872
      %v983 = vpop.permute.xlu0 %982
      %986 = vset.pattern.permute.xlu0 0
      %987 = vperm.xlu0 %986, %v873
      %v988 = vpop.permute.xlu0 %987
      %991 = vset.pattern.permute.xlu0 0
      %992 = vperm.xlu0 %991, %v874
      %v993 = vpop.permute.xlu0 %992
      %996 = vset.pattern.permute.xlu0 0
      %997 = vperm.xlu0 %996, %v875
      %v998 = vpop.permute.xlu0 %997
      %1001 = vset.pattern.permute.xlu0 0
      %1002 = vperm.xlu0 %1001, %v876
      %v1003 = vpop.permute.xlu0 %1002
      %1006 = vset.pattern.permute.xlu0 0
      %1007 = vperm.xlu0 %1006, %v877
      %v1008 = vpop.permute.xlu0 %1007
      %1011 = vset.pattern.permute.xlu0 0
      %1012 = vperm.xlu0 %1011, %v878
      %v1013 = vpop.permute.xlu0 %1012
      %1016 = vset.pattern.permute.xlu0 0
      %1017 = vperm.xlu0 %1016, %v879
      %v1018 = vpop.permute.xlu0 %1017
      %1021 = vset.pattern.permute.xlu0 0
      %1022 = vperm.xlu0 %1021, %v880
      %v1023 = vpop.permute.xlu0 %1022
      %1026 = vset.pattern.permute.xlu0 0
      %1027 = vperm.xlu0 %1026, %v881
      %v1028 = vpop.permute.xlu0 %1027
      %1031 = vset.pattern.permute.xlu0 0
      %1032 = vperm.xlu0 %1031, %v882
      %v1033 = vpop.permute.xlu0 %1032
      %1036 = vset.pattern.permute.xlu0 0
      %1037 = vperm.xlu0 %1036, %v883
      %v1038 = vpop.permute.xlu0 %1037
      %1041 = vset.pattern.permute.xlu0 0
      %1042 = vperm.xlu0 %1041, %v884
      %v1043 = vpop.permute.xlu0 %1042
      %1046 = vset.pattern.permute.xlu0 0
      %1047 = vperm.xlu0 %1046, %v885
      %v1048 = vpop.permute.xlu0 %1047
      %1051 = vset.pattern.permute.xlu0 0
      %1052 = vperm.xlu0 %1051, %v886
      %v1053 = vpop.permute.xlu0 %1052
      %1056 = vset.pattern.permute.xlu0 0
      %1057 = vperm.xlu0 %1056, %v887
      %v1058 = vpop.permute.xlu0 %1057
      %1061 = vset.pattern.permute.xlu0 0
      %1062 = vperm.xlu0 %1061, %v888
      %v1063 = vpop.permute.xlu0 %1062
      %1066 = vset.pattern.permute.xlu0 0
      %1067 = vperm.xlu0 %1066, %v889
      %v1068 = vpop.permute.xlu0 %1067
      %1071 = vset.pattern.permute.xlu0 0
      %1072 = vperm.xlu0 %1071, %v890
      %v1073 = vpop.permute.xlu0 %1072
      %1076 = vset.pattern.permute.xlu0 0
      %1077 = vperm.xlu0 %1076, %v891
      %v1078 = vpop.permute.xlu0 %1077
      %1081 = vset.pattern.permute.xlu0 0
      %1082 = vperm.xlu0 %1081, %v892
      %v1083 = vpop.permute.xlu0 %1082
      %1086 = vset.pattern.permute.xlu0 0
      %1087 = vperm.xlu0 %1086, %v893
      %v1088 = vpop.permute.xlu0 %1087
      %1091 = vset.pattern.permute.xlu0 0
      %1092 = vperm.xlu0 %1091, %v894
      %v1093 = vpop.permute.xlu0 %1092
      %1096 = vset.pattern.permute.xlu0 0
      %1097 = vperm.xlu0 %1096, %v895
      %v1098 = vpop.permute.xlu0 %1097
      %1101 = vset.pattern.permute.xlu0 0
      %1102 = vperm.xlu0 %1101, %v896
      %v1103 = vpop.permute.xlu0 %1102
      %1106 = vset.pattern.permute.xlu0 0
      %1107 = vperm.xlu0 %1106, %v897
      %v1108 = vpop.permute.xlu0 %1107
      %1111 = vset.pattern.permute.xlu0 0
      %1112 = vperm.xlu0 %1111, %v898
      %v1113 = vpop.permute.xlu0 %1112
      %1116 = vset.pattern.permute.xlu0 0
      %1117 = vperm.xlu0 %1116, %v899
      %v1118 = vpop.permute.xlu0 %1117
      %1121 = vset.pattern.permute.xlu0 0
      %1122 = vperm.xlu0 %1121, %v900
      %v1123 = vpop.permute.xlu0 %1122
      %1126 = vset.pattern.permute.xlu0 0
      %1127 = vperm.xlu0 %1126, %v901
      %v1128 = vpop.permute.xlu0 %1127
      %1131 = vset.pattern.permute.xlu0 0
      %1132 = vperm.xlu0 %1131, %v902
      %v1133 = vpop.permute.xlu0 %1132
      %1136 = vset.pattern.permute.xlu0 0
      %1137 = vperm.xlu0 %1136, %v903
      %v1138 = vpop.permute.xlu0 %1137
      %1141 = vset.pattern.permute.xlu0 0
      %1142 = vperm.xlu0 %1141, %v904
      %v1143 = vpop.permute.xlu0 %1142
      %1146 = vset.pattern.permute.xlu0 0
      %1147 = vperm.xlu0 %1146, %v905
      %v1148 = vpop.permute.xlu0 %1147
      %1151 = vset.pattern.permute.xlu0 0
      %1152 = vperm.xlu0 %1151, %v906
      %v1153 = vpop.permute.xlu0 %1152
      %1156 = vset.pattern.permute.xlu0 0
      %1157 = vperm.xlu0 %1156, %v907
      %v1158 = vpop.permute.xlu0 %1157
      %1161 = vset.pattern.permute.xlu0 0
      %1162 = vperm.xlu0 %1161, %v908
      %v1163 = vpop.permute.xlu0 %1162
      %1166 = vset.pattern.permute.xlu0 0
      %1167 = vperm.xlu0 %1166, %v909
      %v1168 = vpop.permute.xlu0 %1167
      %1171 = vset.pattern.permute.xlu0 0
      %1172 = vperm.xlu0 %1171, %v910
      %v1173 = vpop.permute.xlu0 %1172
      %1176 = vset.pattern.permute.xlu0 0
      %1177 = vperm.xlu0 %1176, %v911
      %v1178 = vpop.permute.xlu0 %1177
      %1181 = vset.pattern.permute.xlu0 0
      %1182 = vperm.xlu0 %1181, %v912
      %v1183 = vpop.permute.xlu0 %1182
      %1186 = vset.pattern.permute.xlu0 0
      %1187 = vperm.xlu0 %1186, %v913
      %v1188 = vpop.permute.xlu0 %1187
      %1191 = vset.pattern.permute.xlu0 0
      %1192 = vperm.xlu0 %1191, %v914
      %v1193 = vpop.permute.xlu0 %1192
      %v1195 = vmul.f32 %v747, %v918
      %v1196 = vmul.f32 %v748, %v923
      %v1197 = vmul.f32 %v749, %v928
      %v1198 = vmul.f32 %v750, %v933
      %v1199 = vmul.f32 %v751, %v938
      %v1200 = vmul.f32 %v752, %v943
      %v1201 = vmul.f32 %v753, %v948
      %v1202 = vmul.f32 %v754, %v953
      %v1203 = vmul.f32 %v755, %v958
      %v1204 = vmul.f32 %v756, %v963
      %v1205 = vmul.f32 %v757, %v968
      %v1206 = vmul.f32 %v758, %v973
      %v1207 = vmul.f32 %v759, %v978
      %v1208 = vmul.f32 %v760, %v983
      %v1209 = vmul.f32 %v761, %v988
      %v1210 = vmul.f32 %v762, %v993
      %v1211 = vmul.f32 %v763, %v998
      %v1212 = vmul.f32 %v764, %v1003
      %v1213 = vmul.f32 %v765, %v1008
      %v1214 = vmul.f32 %v766, %v1013
      %v1215 = vmul.f32 %v767, %v1018
      %v1216 = vmul.f32 %v768, %v1023
      %v1217 = vmul.f32 %v769, %v1028
      %v1218 = vmul.f32 %v770, %v1033
      %v1219 = vmul.f32 %v771, %v1038
      %v1220 = vmul.f32 %v772, %v1043
      %v1221 = vmul.f32 %v773, %v1048
      %v1222 = vmul.f32 %v774, %v1053
      %v1223 = vmul.f32 %v775, %v1058
      %v1224 = vmul.f32 %v776, %v1063
      %v1225 = vmul.f32 %v777, %v1068
      %v1226 = vmul.f32 %v778, %v1073
      %v1227 = vmul.f32 %v779, %v1078
      %v1228 = vmul.f32 %v780, %v1083
      %v1229 = vmul.f32 %v781, %v1088
      %v1230 = vmul.f32 %v782, %v1093
      %v1231 = vmul.f32 %v783, %v1098
      %v1232 = vmul.f32 %v784, %v1103
      %v1233 = vmul.f32 %v785, %v1108
      %v1234 = vmul.f32 %v786, %v1113
      %v1235 = vmul.f32 %v787, %v1118
      %v1236 = vmul.f32 %v788, %v1123
      %v1237 = vmul.f32 %v789, %v1128
      %v1238 = vmul.f32 %v790, %v1133
      %v1239 = vmul.f32 %v791, %v1138
      %v1240 = vmul.f32 %v792, %v1143
      %v1241 = vmul.f32 %v793, %v1148
      %v1242 = vmul.f32 %v794, %v1153
      %v1243 = vmul.f32 %v795, %v1158
      %v1244 = vmul.f32 %v796, %v1163
      %v1245 = vmul.f32 %v797, %v1168
      %v1246 = vmul.f32 %v798, %v1173
      %v1247 = vmul.f32 %v799, %v1178
      %v1248 = vmul.f32 %v800, %v1183
      %v1249 = vmul.f32 %v801, %v1188
      %v1250 = vmul.f32 %v802, %v1193
      %v1251 = vpack.c.bf16 %v1195, %v1195
      %v1252 = vpack.c.bf16 %v1196, %v1196
      %v1253 = vpack.c.bf16 %v1197, %v1197
      %v1254 = vpack.c.bf16 %v1198, %v1198
      %v1255 = vpack.c.bf16 %v1199, %v1199
      %v1256 = vpack.c.bf16 %v1200, %v1200
      %v1257 = vpack.c.bf16 %v1201, %v1201
      %v1258 = vpack.c.bf16 %v1202, %v1202
      %v1259 = vpack.c.bf16 %v1203, %v1203
      %v1260 = vpack.c.bf16 %v1204, %v1204
      %v1261 = vpack.c.bf16 %v1205, %v1205
      %v1262 = vpack.c.bf16 %v1206, %v1206
      %v1263 = vpack.c.bf16 %v1207, %v1207
      %v1264 = vpack.c.bf16 %v1208, %v1208
      %v1265 = vpack.c.bf16 %v1209, %v1209
      %v1266 = vpack.c.bf16 %v1210, %v1210
      %v1267 = vpack.c.bf16 %v1211, %v1211
      %v1268 = vpack.c.bf16 %v1212, %v1212
      %v1269 = vpack.c.bf16 %v1213, %v1213
      %v1270 = vpack.c.bf16 %v1214, %v1214
      %v1271 = vpack.c.bf16 %v1215, %v1215
      %v1272 = vpack.c.bf16 %v1216, %v1216
      %v1273 = vpack.c.bf16 %v1217, %v1217
      %v1274 = vpack.c.bf16 %v1218, %v1218
      %v1275 = vpack.c.bf16 %v1219, %v1219
      %v1276 = vpack.c.bf16 %v1220, %v1220
      %v1277 = vpack.c.bf16 %v1221, %v1221
      %v1278 = vpack.c.bf16 %v1222, %v1222
      %v1279 = vpack.c.bf16 %v1223, %v1223
      %v1280 = vpack.c.bf16 %v1224, %v1224
      %v1281 = vpack.c.bf16 %v1225, %v1225
      %v1282 = vpack.c.bf16 %v1226, %v1226
      %v1283 = vpack.c.bf16 %v1227, %v1227
      %v1284 = vpack.c.bf16 %v1228, %v1228
      %v1285 = vpack.c.bf16 %v1229, %v1229
      %v1286 = vpack.c.bf16 %v1230, %v1230
      %v1287 = vpack.c.bf16 %v1231, %v1231
      %v1288 = vpack.c.bf16 %v1232, %v1232
      %v1289 = vpack.c.bf16 %v1233, %v1233
      %v1290 = vpack.c.bf16 %v1234, %v1234
      %v1291 = vpack.c.bf16 %v1235, %v1235
      %v1292 = vpack.c.bf16 %v1236, %v1236
      %v1293 = vpack.c.bf16 %v1237, %v1237
      %v1294 = vpack.c.bf16 %v1238, %v1238
      %v1295 = vpack.c.bf16 %v1239, %v1239
      %v1296 = vpack.c.bf16 %v1240, %v1240
      %v1297 = vpack.c.bf16 %v1241, %v1241
      %v1298 = vpack.c.bf16 %v1242, %v1242
      %v1299 = vpack.c.bf16 %v1243, %v1243
      %v1300 = vpack.c.bf16 %v1244, %v1244
      %v1301 = vpack.c.bf16 %v1245, %v1245
      %v1302 = vpack.c.bf16 %v1246, %v1246
      %v1303 = vpack.c.bf16 %v1247, %v1247
      %v1304 = vpack.c.bf16 %v1248, %v1248
      %v1305 = vpack.c.bf16 %v1249, %v1249
      %v1306 = vpack.c.bf16 %v1250, %v1250
      %1307 = vst [vmem:[#allocation3 + $0x4] sm:$0xf] %v1251
      %1308 = vst [vmem:[#allocation3 + $0x10] sm:$0xf] %v1252
      %1309 = vst [vmem:[#allocation3 + $0x1c] sm:$0xf] %v1253
      %1310 = vst [vmem:[#allocation3 + $0x28] sm:$0xf] %v1254
      %1311 = vst [vmem:[#allocation3 + $0x34] sm:$0xf] %v1255
      %1312 = vst [vmem:[#allocation3 + $0x40] sm:$0xf] %v1256
      %1313 = vst [vmem:[#allocation3 + $0x4c] sm:$0xf] %v1257
      %1314 = vst [vmem:[#allocation3 + $0x58] sm:$0xf] %v1258
      %1315 = vst [vmem:[#allocation3 + $0x64] sm:$0xf] %v1259
      %1316 = vst [vmem:[#allocation3 + $0x70] sm:$0xf] %v1260
      %1317 = vst [vmem:[#allocation3 + $0x7c] sm:$0xf] %v1261
      %1318 = vst [vmem:[#allocation3 + $0x88] sm:$0xf] %v1262
      %1319 = vst [vmem:[#allocation3 + $0x94] sm:$0xf] %v1263
      %1320 = vst [vmem:[#allocation3 + $0xa0] sm:$0xf] %v1264
      %1321 = vst [vmem:[#allocation3 + $0xac] sm:$0xf] %v1265
      %1322 = vst [vmem:[#allocation3 + $0xb8] sm:$0xf] %v1266
      %1323 = vst [vmem:[#allocation3 + $0xc4] sm:$0xf] %v1267
      %1324 = vst [vmem:[#allocation3 + $0xd0] sm:$0xf] %v1268
      %1325 = vst [vmem:[#allocation3 + $0xdc] sm:$0xf] %v1269
      %1326 = vst [vmem:[#allocation3 + $0xe8] sm:$0xf] %v1270
      %1327 = vst [vmem:[#allocation3 + $0xf4] sm:$0xf] %v1271
      %1328 = vst [vmem:[#allocation3 + $0x100] sm:$0xf] %v1272
      %1329 = vst [vmem:[#allocation3 + $0x10c] sm:$0xf] %v1273
      %1330 = vst [vmem:[#allocation3 + $0x118] sm:$0xf] %v1274
      %1331 = vst [vmem:[#allocation3 + $0x124] sm:$0xf] %v1275
      %1332 = vst [vmem:[#allocation3 + $0x130] sm:$0xf] %v1276
      %1333 = vst [vmem:[#allocation3 + $0x13c] sm:$0xf] %v1277
      %1334 = vst [vmem:[#allocation3 + $0x148] sm:$0xf] %v1278
      %1335 = vst [vmem:[#allocation3 + $0x154] sm:$0xf] %v1279
      %1336 = vst [vmem:[#allocation3 + $0x160] sm:$0xf] %v1280
      %1337 = vst [vmem:[#allocation3 + $0x16c] sm:$0xf] %v1281
      %1338 = vst [vmem:[#allocation3 + $0x178] sm:$0xf] %v1282
      %1339 = vst [vmem:[#allocation3 + $0x184] sm:$0xf] %v1283
      %1340 = vst [vmem:[#allocation3 + $0x190] sm:$0xf] %v1284
      %1341 = vst [vmem:[#allocation3 + $0x19c] sm:$0xf] %v1285
      %1342 = vst [vmem:[#allocation3 + $0x1a8] sm:$0xf] %v1286
      %1343 = vst [vmem:[#allocation3 + $0x1b4] sm:$0xf] %v1287
      %1344 = vst [vmem:[#allocation3 + $0x1c0] sm:$0xf] %v1288
      %1345 = vst [vmem:[#allocation3 + $0x1cc] sm:$0xf] %v1289
      %1346 = vst [vmem:[#allocation3 + $0x1d8] sm:$0xf] %v1290
      %1347 = vst [vmem:[#allocation3 + $0x1e4] sm:$0xf] %v1291
      %1348 = vst [vmem:[#allocation3 + $0x1f0] sm:$0xf] %v1292
      %1349 = vst [vmem:[#allocation3 + $0x1fc] sm:$0xf] %v1293
      %1350 = vst [vmem:[#allocation3 + $0x208] sm:$0xf] %v1294
      %1351 = vst [vmem:[#allocation3 + $0x214] sm:$0xf] %v1295
      %1352 = vst [vmem:[#allocation3 + $0x220] sm:$0xf] %v1296
      %1353 = vst [vmem:[#allocation3 + $0x22c] sm:$0xf] %v1297
      %1354 = vst [vmem:[#allocation3 + $0x238] sm:$0xf] %v1298
      %1355 = vst [vmem:[#allocation3 + $0x244] sm:$0xf] %v1299
      %1356 = vst [vmem:[#allocation3 + $0x250] sm:$0xf] %v1300
      %1357 = vst [vmem:[#allocation3 + $0x25c] sm:$0xf] %v1301
      %1358 = vst [vmem:[#allocation3 + $0x268] sm:$0xf] %v1302
      %1359 = vst [vmem:[#allocation3 + $0x274] sm:$0xf] %v1303
      %1360 = vst [vmem:[#allocation3 + $0x280] sm:$0xf] %v1304
      %1361 = vst [vmem:[#allocation3 + $0x28c] sm:$0xf] %v1305
      %1362 = vst [vmem:[#allocation3 + $0x298] sm:$0xf] %v1306
      %v1363 = vld [vmem:[#allocation3 + $0x4] sm:$0x8]
      %v1364 = vld [vmem:[#allocation3 + $0x10] sm:$0xf]
      %v1365 = vld [vmem:[#allocation3 + $0x1c] sm:$0xf]
      %v1366 = vld [vmem:[#allocation3 + $0x28] sm:$0xf]
      %v1367 = vld [vmem:[#allocation3 + $0x34] sm:$0xf]
      %v1368 = vld [vmem:[#allocation3 + $0x40] sm:$0xf]
      %v1369 = vld [vmem:[#allocation3 + $0x4c] sm:$0xf]
      %v1370 = vld [vmem:[#allocation3 + $0x58] sm:$0xf]
      %v1371 = vld [vmem:[#allocation3 + $0x64] sm:$0xf]
      %v1372 = vld [vmem:[#allocation3 + $0x70] sm:$0xf]
      %v1373 = vld [vmem:[#allocation3 + $0x7c] sm:$0xf]
      %v1374 = vld [vmem:[#allocation3 + $0x88] sm:$0xf]
      %v1375 = vld [vmem:[#allocation3 + $0x94] sm:$0xf]
      %v1376 = vld [vmem:[#allocation3 + $0xa0] sm:$0xf]
      %v1377 = vld [vmem:[#allocation3 + $0xac] sm:$0xf]
      %v1378 = vld [vmem:[#allocation3 + $0xb8] sm:$0xf]
      %v1379 = vld [vmem:[#allocation3 + $0xc4] sm:$0xf]
      %v1380 = vld [vmem:[#allocation3 + $0xd0] sm:$0xf]
      %v1381 = vld [vmem:[#allocation3 + $0xdc] sm:$0xf]
      %v1382 = vld [vmem:[#allocation3 + $0xe8] sm:$0xf]
      %v1383 = vld [vmem:[#allocation3 + $0xf4] sm:$0xf]
      %v1384 = vld [vmem:[#allocation3 + $0x100] sm:$0xf]
      %v1385 = vld [vmem:[#allocation3 + $0x10c] sm:$0xf]
      %v1386 = vld [vmem:[#allocation3 + $0x118] sm:$0xf]
      %v1387 = vld [vmem:[#allocation3 + $0x124] sm:$0xf]
      %v1388 = vld [vmem:[#allocation3 + $0x130] sm:$0xf]
      %v1389 = vld [vmem:[#allocation3 + $0x13c] sm:$0xf]
      %v1390 = vld [vmem:[#allocation3 + $0x148] sm:$0xf]
      %v1391 = vld [vmem:[#allocation3 + $0x154] sm:$0xf]
      %v1392 = vld [vmem:[#allocation3 + $0x160] sm:$0xf]
      %v1393 = vld [vmem:[#allocation3 + $0x16c] sm:$0xf]
      %v1394 = vld [vmem:[#allocation3 + $0x178] sm:$0xf]
      %v1395 = vld [vmem:[#allocation3 + $0x184] sm:$0xf]
      %v1396 = vld [vmem:[#allocation3 + $0x190] sm:$0xf]
      %v1397 = vld [vmem:[#allocation3 + $0x19c] sm:$0xf]
      %v1398 = vld [vmem:[#allocation3 + $0x1a8] sm:$0xf]
      %v1399 = vld [vmem:[#allocation3 + $0x1b4] sm:$0xf]
      %v1400 = vld [vmem:[#allocation3 + $0x1c0] sm:$0xf]
      %v1401 = vld [vmem:[#allocation3 + $0x1cc] sm:$0xf]
      %v1402 = vld [vmem:[#allocation3 + $0x1d8] sm:$0xf]
      %v1403 = vld [vmem:[#allocation3 + $0x1e4] sm:$0xf]
      %v1404 = vld [vmem:[#allocation3 + $0x1f0] sm:$0xf]
      %v1405 = vld [vmem:[#allocation3 + $0x1fc] sm:$0xf]
      %v1406 = vld [vmem:[#allocation3 + $0x208] sm:$0xf]
      %v1407 = vld [vmem:[#allocation3 + $0x214] sm:$0xf]
      %v1408 = vld [vmem:[#allocation3 + $0x220] sm:$0xf]
      %v1409 = vld [vmem:[#allocation3 + $0x22c] sm:$0xf]
      %v1410 = vld [vmem:[#allocation3 + $0x238] sm:$0xf]
      %v1411 = vld [vmem:[#allocation3 + $0x244] sm:$0xf]
      %v1412 = vld [vmem:[#allocation3 + $0x250] sm:$0xf]
      %v1413 = vld [vmem:[#allocation3 + $0x25c] sm:$0xf]
      %v1414 = vld [vmem:[#allocation3 + $0x268] sm:$0xf]
      %v1415 = vld [vmem:[#allocation3 + $0x274] sm:$0xf]
      %v1416 = vld [vmem:[#allocation3 + $0x280] sm:$0xf]
      %v1417 = vld [vmem:[#allocation3 + $0x28c] sm:$0xf]
      %v1418 = vld [vmem:[#allocation3 + $0x298] sm:$0xf]
      %vm1419 = vsmask.f32 256
      %vm1420 = vsmask.f32 4368
      %vm1421 = vmor %vm1419, %vm1420
      %v1423 = vshrl.u32 %v1363, 16
      %v1425 = vrot.slane %v1423, 7
      %v1426 = vrot.slane %v1425, 4
      %v1428 = vshrl.u32 %v1364, 16
      %v1430 = vrot.slane %v1428, 7
      %v1431 = vshll.u32 %v1364, 16
      %v1433 = vor.u32 %v1430, %v1431
      %v1434 = vsel %vm1421, %v1426, %v1433
      %v1435 = vrot.slane %v1430, 4
      %v1437 = vshrl.u32 %v1365, 16
      %v1439 = vrot.slane %v1437, 7
      %v1440 = vshll.u32 %v1365, 16
      %v1442 = vor.u32 %v1439, %v1440
      %v1443 = vsel %vm1421, %v1435, %v1442
      %v1444 = vrot.slane %v1439, 4
      %v1446 = vshrl.u32 %v1366, 16
      %v1448 = vrot.slane %v1446, 7
      %v1449 = vshll.u32 %v1366, 16
      %v1451 = vor.u32 %v1448, %v1449
      %v1452 = vsel %vm1421, %v1444, %v1451
      %v1453 = vrot.slane %v1448, 4
      %v1455 = vshrl.u32 %v1367, 16
      %v1457 = vrot.slane %v1455, 7
      %v1458 = vshll.u32 %v1367, 16
      %v1460 = vor.u32 %v1457, %v1458
      %v1461 = vsel %vm1421, %v1453, %v1460
      %v1462 = vrot.slane %v1457, 4
      %v1464 = vshrl.u32 %v1368, 16
      %v1466 = vrot.slane %v1464, 7
      %v1467 = vshll.u32 %v1368, 16
      %v1469 = vor.u32 %v1466, %v1467
      %v1470 = vsel %vm1421, %v1462, %v1469
      %v1471 = vrot.slane %v1466, 4
      %v1473 = vshrl.u32 %v1369, 16
      %v1475 = vrot.slane %v1473, 7
      %v1476 = vshll.u32 %v1369, 16
      %v1478 = vor.u32 %v1475, %v1476
      %v1479 = vsel %vm1421, %v1471, %v1478
      %v1480 = vrot.slane %v1475, 4
      %v1482 = vshrl.u32 %v1370, 16
      %v1484 = vrot.slane %v1482, 7
      %v1485 = vshll.u32 %v1370, 16
      %v1487 = vor.u32 %v1484, %v1485
      %v1488 = vsel %vm1421, %v1480, %v1487
      %v1489 = vrot.slane %v1484, 4
      %v1491 = vshrl.u32 %v1371, 16
      %v1493 = vrot.slane %v1491, 7
      %v1494 = vshll.u32 %v1371, 16
      %v1496 = vor.u32 %v1493, %v1494
      %v1497 = vsel %vm1421, %v1489, %v1496
      %v1498 = vrot.slane %v1493, 4
      %v1500 = vshrl.u32 %v1372, 16
      %v1502 = vrot.slane %v1500, 7
      %v1503 = vshll.u32 %v1372, 16
      %v1505 = vor.u32 %v1502, %v1503
      %v1506 = vsel %vm1421, %v1498, %v1505
      %v1507 = vrot.slane %v1502, 4
      %v1509 = vshrl.u32 %v1373, 16
      %v1511 = vrot.slane %v1509, 7
      %v1512 = vshll.u32 %v1373, 16
      %v1514 = vor.u32 %v1511, %v1512
      %v1515 = vsel %vm1421, %v1507, %v1514
      %v1516 = vrot.slane %v1511, 4
      %v1518 = vshrl.u32 %v1374, 16
      %v1520 = vrot.slane %v1518, 7
      %v1521 = vshll.u32 %v1374, 16
      %v1523 = vor.u32 %v1520, %v1521
      %v1524 = vsel %vm1421, %v1516, %v1523
      %v1525 = vrot.slane %v1520, 4
      %v1527 = vshrl.u32 %v1375, 16
      %v1529 = vrot.slane %v1527, 7
      %v1530 = vshll.u32 %v1375, 16
      %v1532 = vor.u32 %v1529, %v1530
      %v1533 = vsel %vm1421, %v1525, %v1532
      %v1534 = vrot.slane %v1529, 4
      %v1536 = vshrl.u32 %v1376, 16
      %v1538 = vrot.slane %v1536, 7
      %v1539 = vshll.u32 %v1376, 16
      %v1541 = vor.u32 %v1538, %v1539
      %v1542 = vsel %vm1421, %v1534, %v1541
      %v1543 = vrot.slane %v1538, 4
      %v1545 = vshrl.u32 %v1377, 16
      %v1547 = vrot.slane %v1545, 7
      %v1548 = vshll.u32 %v1377, 16
      %v1550 = vor.u32 %v1547, %v1548
      %v1551 = vsel %vm1421, %v1543, %v1550
      %v1552 = vrot.slane %v1547, 4
      %v1554 = vshrl.u32 %v1378, 16
      %v1556 = vrot.slane %v1554, 7
      %v1557 = vshll.u32 %v1378, 16
      %v1559 = vor.u32 %v1556, %v1557
      %v1560 = vsel %vm1421, %v1552, %v1559
      %v1561 = vrot.slane %v1556, 4
      %v1563 = vshrl.u32 %v1379, 16
      %v1565 = vrot.slane %v1563, 7
      %v1566 = vshll.u32 %v1379, 16
      %v1568 = vor.u32 %v1565, %v1566
      %v1569 = vsel %vm1421, %v1561, %v1568
      %v1570 = vrot.slane %v1565, 4
      %v1572 = vshrl.u32 %v1380, 16
      %v1574 = vrot.slane %v1572, 7
      %v1575 = vshll.u32 %v1380, 16
      %v1577 = vor.u32 %v1574, %v1575
      %v1578 = vsel %vm1421, %v1570, %v1577
      %v1579 = vrot.slane %v1574, 4
      %v1581 = vshrl.u32 %v1381, 16
      %v1583 = vrot.slane %v1581, 7
      %v1584 = vshll.u32 %v1381, 16
      %v1586 = vor.u32 %v1583, %v1584
      %v1587 = vsel %vm1421, %v1579, %v1586
      %v1588 = vrot.slane %v1583, 4
      %v1590 = vshrl.u32 %v1382, 16
      %v1592 = vrot.slane %v1590, 7
      %v1593 = vshll.u32 %v1382, 16
      %v1595 = vor.u32 %v1592, %v1593
      %v1596 = vsel %vm1421, %v1588, %v1595
      %v1597 = vrot.slane %v1592, 4
      %v1599 = vshrl.u32 %v1383, 16
      %v1601 = vrot.slane %v1599, 7
      %v1602 = vshll.u32 %v1383, 16
      %v1604 = vor.u32 %v1601, %v1602
      %v1605 = vsel %vm1421, %v1597, %v1604
      %v1606 = vrot.slane %v1601, 4
      %v1608 = vshrl.u32 %v1384, 16
      %v1610 = vrot.slane %v1608, 7
      %v1611 = vshll.u32 %v1384, 16
      %v1613 = vor.u32 %v1610, %v1611
      %v1614 = vsel %vm1421, %v1606, %v1613
      %v1615 = vrot.slane %v1610, 4
      %v1617 = vshrl.u32 %v1385, 16
      %v1619 = vrot.slane %v1617, 7
      %v1620 = vshll.u32 %v1385, 16
      %v1622 = vor.u32 %v1619, %v1620
      %v1623 = vsel %vm1421, %v1615, %v1622
      %v1624 = vrot.slane %v1619, 4
      %v1626 = vshrl.u32 %v1386, 16
      %v1628 = vrot.slane %v1626, 7
      %v1629 = vshll.u32 %v1386, 16
      %v1631 = vor.u32 %v1628, %v1629
      %v1632 = vsel %vm1421, %v1624, %v1631
      %v1633 = vrot.slane %v1628, 4
      %v1635 = vshrl.u32 %v1387, 16
      %v1637 = vrot.slane %v1635, 7
      %v1638 = vshll.u32 %v1387, 16
      %v1640 = vor.u32 %v1637, %v1638
      %v1641 = vsel %vm1421, %v1633, %v1640
      %v1642 = vrot.slane %v1637, 4
      %v1644 = vshrl.u32 %v1388, 16
      %v1646 = vrot.slane %v1644, 7
      %v1647 = vshll.u32 %v1388, 16
      %v1649 = vor.u32 %v1646, %v1647
      %v1650 = vsel %vm1421, %v1642, %v1649
      %v1651 = vrot.slane %v1646, 4
      %v1653 = vshrl.u32 %v1389, 16
      %v1655 = vrot.slane %v1653, 7
      %v1656 = vshll.u32 %v1389, 16
      %v1658 = vor.u32 %v1655, %v1656
      %v1659 = vsel %vm1421, %v1651, %v1658
      %v1660 = vrot.slane %v1655, 4
      %v1662 = vshrl.u32 %v1390, 16
      %v1664 = vrot.slane %v1662, 7
      %v1665 = vshll.u32 %v1390, 16
      %v1667 = vor.u32 %v1664, %v1665
      %v1668 = vsel %vm1421, %v1660, %v1667
      %v1669 = vrot.slane %v1664, 4
      %v1671 = vshrl.u32 %v1391, 16
      %v1673 = vrot.slane %v1671, 7
      %v1674 = vshll.u32 %v1391, 16
      %v1676 = vor.u32 %v1673, %v1674
      %v1677 = vsel %vm1421, %v1669, %v1676
      %v1678 = vrot.slane %v1673, 4
      %v1680 = vshrl.u32 %v1392, 16
      %v1682 = vrot.slane %v1680, 7
      %v1683 = vshll.u32 %v1392, 16
      %v1685 = vor.u32 %v1682, %v1683
      %v1686 = vsel %vm1421, %v1678, %v1685
      %v1687 = vrot.slane %v1682, 4
      %v1689 = vshrl.u32 %v1393, 16
      %v1691 = vrot.slane %v1689, 7
      %v1692 = vshll.u32 %v1393, 16
      %v1694 = vor.u32 %v1691, %v1692
      %v1695 = vsel %vm1421, %v1687, %v1694
      %v1696 = vrot.slane %v1691, 4
      %v1698 = vshrl.u32 %v1394, 16
      %v1700 = vrot.slane %v1698, 7
      %v1701 = vshll.u32 %v1394, 16
      %v1703 = vor.u32 %v1700, %v1701
      %v1704 = vsel %vm1421, %v1696, %v1703
      %v1705 = vrot.slane %v1700, 4
      %v1707 = vshrl.u32 %v1395, 16
      %v1709 = vrot.slane %v1707, 7
      %v1710 = vshll.u32 %v1395, 16
      %v1712 = vor.u32 %v1709, %v1710
      %v1713 = vsel %vm1421, %v1705, %v1712
      %v1714 = vrot.slane %v1709, 4
      %v1716 = vshrl.u32 %v1396, 16
      %v1718 = vrot.slane %v1716, 7
      %v1719 = vshll.u32 %v1396, 16
      %v1721 = vor.u32 %v1718, %v1719
      %v1722 = vsel %vm1421, %v1714, %v1721
      %v1723 = vrot.slane %v1718, 4
      %v1725 = vshrl.u32 %v1397, 16
      %v1727 = vrot.slane %v1725, 7
      %v1728 = vshll.u32 %v1397, 16
      %v1730 = vor.u32 %v1727, %v1728
      %v1731 = vsel %vm1421, %v1723, %v1730
      %v1732 = vrot.slane %v1727, 4
      %v1734 = vshrl.u32 %v1398, 16
      %v1736 = vrot.slane %v1734, 7
      %v1737 = vshll.u32 %v1398, 16
      %v1739 = vor.u32 %v1736, %v1737
      %v1740 = vsel %vm1421, %v1732, %v1739
      %v1741 = vrot.slane %v1736, 4
      %v1743 = vshrl.u32 %v1399, 16
      %v1745 = vrot.slane %v1743, 7
      %v1746 = vshll.u32 %v1399, 16
      %v1748 = vor.u32 %v1745, %v1746
      %v1749 = vsel %vm1421, %v1741, %v1748
      %v1750 = vrot.slane %v1745, 4
      %v1752 = vshrl.u32 %v1400, 16
      %v1754 = vrot.slane %v1752, 7
      %v1755 = vshll.u32 %v1400, 16
      %v1757 = vor.u32 %v1754, %v1755
      %v1758 = vsel %vm1421, %v1750, %v1757
      %v1759 = vrot.slane %v1754, 4
      %v1761 = vshrl.u32 %v1401, 16
      %v1763 = vrot.slane %v1761, 7
      %v1764 = vshll.u32 %v1401, 16
      %v1766 = vor.u32 %v1763, %v1764
      %v1767 = vsel %vm1421, %v1759, %v1766
      %v1768 = vrot.slane %v1763, 4
      %v1770 = vshrl.u32 %v1402, 16
      %v1772 = vrot.slane %v1770, 7
      %v1773 = vshll.u32 %v1402, 16
      %v1775 = vor.u32 %v1772, %v1773
      %v1776 = vsel %vm1421, %v1768, %v1775
      %v1777 = vrot.slane %v1772, 4
      %v1779 = vshrl.u32 %v1403, 16
      %v1781 = vrot.slane %v1779, 7
      %v1782 = vshll.u32 %v1403, 16
      %v1784 = vor.u32 %v1781, %v1782
      %v1785 = vsel %vm1421, %v1777, %v1784
      %v1786 = vrot.slane %v1781, 4
      %v1788 = vshrl.u32 %v1404, 16
      %v1790 = vrot.slane %v1788, 7
      %v1791 = vshll.u32 %v1404, 16
      %v1793 = vor.u32 %v1790, %v1791
      %v1794 = vsel %vm1421, %v1786, %v1793
      %v1795 = vrot.slane %v1790, 4
      %v1797 = vshrl.u32 %v1405, 16
      %v1799 = vrot.slane %v1797, 7
      %v1800 = vshll.u32 %v1405, 16
      %v1802 = vor.u32 %v1799, %v1800
      %v1803 = vsel %vm1421, %v1795, %v1802
      %v1804 = vrot.slane %v1799, 4
      %v1806 = vshrl.u32 %v1406, 16
      %v1808 = vrot.slane %v1806, 7
      %v1809 = vshll.u32 %v1406, 16
      %v1811 = vor.u32 %v1808, %v1809
      %v1812 = vsel %vm1421, %v1804, %v1811
      %v1813 = vrot.slane %v1808, 4
      %v1815 = vshrl.u32 %v1407, 16
      %v1817 = vrot.slane %v1815, 7
      %v1818 = vshll.u32 %v1407, 16
      %v1820 = vor.u32 %v1817, %v1818
      %v1821 = vsel %vm1421, %v1813, %v1820
      %v1822 = vrot.slane %v1817, 4
      %v1824 = vshrl.u32 %v1408, 16
      %v1826 = vrot.slane %v1824, 7
      %v1827 = vshll.u32 %v1408, 16
      %v1829 = vor.u32 %v1826, %v1827
      %v1830 = vsel %vm1421, %v1822, %v1829
      %v1831 = vrot.slane %v1826, 4
      %v1833 = vshrl.u32 %v1409, 16
      %v1835 = vrot.slane %v1833, 7
      %v1836 = vshll.u32 %v1409, 16
      %v1838 = vor.u32 %v1835, %v1836
      %v1839 = vsel %vm1421, %v1831, %v1838
      %v1840 = vrot.slane %v1835, 4
      %v1842 = vshrl.u32 %v1410, 16
      %v1844 = vrot.slane %v1842, 7
      %v1845 = vshll.u32 %v1410, 16
      %v1847 = vor.u32 %v1844, %v1845
      %v1848 = vsel %vm1421, %v1840, %v1847
      %v1849 = vrot.slane %v1844, 4
      %v1851 = vshrl.u32 %v1411, 16
      %v1853 = vrot.slane %v1851, 7
      %v1854 = vshll.u32 %v1411, 16
      %v1856 = vor.u32 %v1853, %v1854
      %v1857 = vsel %vm1421, %v1849, %v1856
      %v1858 = vrot.slane %v1853, 4
      %v1860 = vshrl.u32 %v1412, 16
      %v1862 = vrot.slane %v1860, 7
      %v1863 = vshll.u32 %v1412, 16
      %v1865 = vor.u32 %v1862, %v1863
      %v1866 = vsel %vm1421, %v1858, %v1865
      %v1867 = vrot.slane %v1862, 4
      %v1869 = vshrl.u32 %v1413, 16
      %v1871 = vrot.slane %v1869, 7
      %v1872 = vshll.u32 %v1413, 16
      %v1874 = vor.u32 %v1871, %v1872
      %v1875 = vsel %vm1421, %v1867, %v1874
      %v1876 = vrot.slane %v1871, 4
      %v1878 = vshrl.u32 %v1414, 16
      %v1880 = vrot.slane %v1878, 7
      %v1881 = vshll.u32 %v1414, 16
      %v1883 = vor.u32 %v1880, %v1881
      %v1884 = vsel %vm1421, %v1876, %v1883
      %v1885 = vrot.slane %v1880, 4
      %v1887 = vshrl.u32 %v1415, 16
      %v1889 = vrot.slane %v1887, 7
      %v1890 = vshll.u32 %v1415, 16
      %v1892 = vor.u32 %v1889, %v1890
      %v1893 = vsel %vm1421, %v1885, %v1892
      %v1894 = vrot.slane %v1889, 4
      %v1896 = vshrl.u32 %v1416, 16
      %v1898 = vrot.slane %v1896, 7
      %v1899 = vshll.u32 %v1416, 16
      %v1901 = vor.u32 %v1898, %v1899
      %v1902 = vsel %vm1421, %v1894, %v1901
      %v1903 = vrot.slane %v1898, 4
      %v1905 = vshrl.u32 %v1417, 16
      %v1907 = vrot.slane %v1905, 7
      %v1908 = vshll.u32 %v1417, 16
      %v1910 = vor.u32 %v1907, %v1908
      %v1911 = vsel %vm1421, %v1903, %v1910
      %v1912 = vrot.slane %v1907, 4
      %v1914 = vshrl.u32 %v1418, 16
      %v1916 = vrot.slane %v1914, 7
      %v1917 = vshll.u32 %v1418, 16
      %v1919 = vor.u32 %v1916, %v1917
      %v1920 = vsel %vm1421, %v1912, %v1919
      %1976 = vst [vmem:[#allocation3 + $0xc] sm:$0xf] %v1434
      %1977 = vst [vmem:[#allocation3 + $0x18] sm:$0xf] %v1443
      %1978 = vst [vmem:[#allocation3 + $0x24] sm:$0xf] %v1452
      %1979 = vst [vmem:[#allocation3 + $0x30] sm:$0xf] %v1461
      %1980 = vst [vmem:[#allocation3 + $0x3c] sm:$0xf] %v1470
      %1981 = vst [vmem:[#allocation3 + $0x48] sm:$0xf] %v1479
      %1982 = vst [vmem:[#allocation3 + $0x54] sm:$0xf] %v1488
      %1983 = vst [vmem:[#allocation3 + $0x60] sm:$0xf] %v1497
      %1984 = vst [vmem:[#allocation3 + $0x6c] sm:$0xf] %v1506
      %1985 = vst [vmem:[#allocation3 + $0x78] sm:$0xf] %v1515
      %1986 = vst [vmem:[#allocation3 + $0x84] sm:$0xf] %v1524
      %1987 = vst [vmem:[#allocation3 + $0x90] sm:$0xf] %v1533
      %1988 = vst [vmem:[#allocation3 + $0x9c] sm:$0xf] %v1542
      %1989 = vst [vmem:[#allocation3 + $0xa8] sm:$0xf] %v1551
      %1990 = vst [vmem:[#allocation3 + $0xb4] sm:$0xf] %v1560
      %1991 = vst [vmem:[#allocation3 + $0xc0] sm:$0xf] %v1569
      %1992 = vst [vmem:[#allocation3 + $0xcc] sm:$0xf] %v1578
      %1993 = vst [vmem:[#allocation3 + $0xd8] sm:$0xf] %v1587
      %1994 = vst [vmem:[#allocation3 + $0xe4] sm:$0xf] %v1596
      %1995 = vst [vmem:[#allocation3 + $0xf0] sm:$0xf] %v1605
      %1996 = vst [vmem:[#allocation3 + $0xfc] sm:$0xf] %v1614
      %1997 = vst [vmem:[#allocation3 + $0x108] sm:$0xf] %v1623
      %1998 = vst [vmem:[#allocation3 + $0x114] sm:$0xf] %v1632
      %1999 = vst [vmem:[#allocation3 + $0x120] sm:$0xf] %v1641
      %2000 = vst [vmem:[#allocation3 + $0x12c] sm:$0xf] %v1650
      %2001 = vst [vmem:[#allocation3 + $0x138] sm:$0xf] %v1659
      %2002 = vst [vmem:[#allocation3 + $0x144] sm:$0xf] %v1668
      %2003 = vst [vmem:[#allocation3 + $0x150] sm:$0xf] %v1677
      %2004 = vst [vmem:[#allocation3 + $0x15c] sm:$0xf] %v1686
      %2005 = vst [vmem:[#allocation3 + $0x168] sm:$0xf] %v1695
      %2006 = vst [vmem:[#allocation3 + $0x174] sm:$0xf] %v1704
      %2007 = vst [vmem:[#allocation3 + $0x180] sm:$0xf] %v1713
      %2008 = vst [vmem:[#allocation3 + $0x18c] sm:$0xf] %v1722
      %2009 = vst [vmem:[#allocation3 + $0x198] sm:$0xf] %v1731
      %2010 = vst [vmem:[#allocation3 + $0x1a4] sm:$0xf] %v1740
      %2011 = vst [vmem:[#allocation3 + $0x1b0] sm:$0xf] %v1749
      %2012 = vst [vmem:[#allocation3 + $0x1bc] sm:$0xf] %v1758
      %2013 = vst [vmem:[#allocation3 + $0x1c8] sm:$0xf] %v1767
      %2014 = vst [vmem:[#allocation3 + $0x1d4] sm:$0xf] %v1776
      %2015 = vst [vmem:[#allocation3 + $0x1e0] sm:$0xf] %v1785
      %2016 = vst [vmem:[#allocation3 + $0x1ec] sm:$0xf] %v1794
      %2017 = vst [vmem:[#allocation3 + $0x1f8] sm:$0xf] %v1803
      %2018 = vst [vmem:[#allocation3 + $0x204] sm:$0xf] %v1812
      %2019 = vst [vmem:[#allocation3 + $0x210] sm:$0xf] %v1821
      %2020 = vst [vmem:[#allocation3 + $0x21c] sm:$0xf] %v1830
      %2021 = vst [vmem:[#allocation3 + $0x228] sm:$0xf] %v1839
      %2022 = vst [vmem:[#allocation3 + $0x234] sm:$0xf] %v1848
      %2023 = vst [vmem:[#allocation3 + $0x240] sm:$0xf] %v1857
      %2024 = vst [vmem:[#allocation3 + $0x24c] sm:$0xf] %v1866
      %2025 = vst [vmem:[#allocation3 + $0x258] sm:$0xf] %v1875
      %2026 = vst [vmem:[#allocation3 + $0x264] sm:$0xf] %v1884
      %2027 = vst [vmem:[#allocation3 + $0x270] sm:$0xf] %v1893
      %2028 = vst [vmem:[#allocation3 + $0x27c] sm:$0xf] %v1902
      %2029 = vst [vmem:[#allocation3 + $0x288] sm:$0xf] %v1911
      %2030 = vst [vmem:[#allocation3 + $0x294] sm:$0xf] %v1920
      %v2031 = vld [vmem:[#allocation3 + $0x4] sm:$0xf]
      %v2032 = vld [vmem:[#allocation3 + $0x10] sm:$0xf]
      %v2033 = vld [vmem:[#allocation3 + $0x1c] sm:$0xf]
      %v2034 = vld [vmem:[#allocation3 + $0x28] sm:$0xf]
      %v2035 = vld [vmem:[#allocation3 + $0x34] sm:$0xf]
      %v2036 = vld [vmem:[#allocation3 + $0x40] sm:$0xf]
      %v2037 = vld [vmem:[#allocation3 + $0x4c] sm:$0xf]
      %v2038 = vld [vmem:[#allocation3 + $0x58] sm:$0xf]
      %v2039 = vld [vmem:[#allocation3 + $0x64] sm:$0xf]
      %v2040 = vld [vmem:[#allocation3 + $0x70] sm:$0xf]
      %v2041 = vld [vmem:[#allocation3 + $0x7c] sm:$0xf]
      %v2042 = vld [vmem:[#allocation3 + $0x88] sm:$0xf]
      %v2043 = vld [vmem:[#allocation3 + $0x94] sm:$0xf]
      %v2044 = vld [vmem:[#allocation3 + $0xa0] sm:$0xf]
      %v2045 = vld [vmem:[#allocation3 + $0xac] sm:$0xf]
      %v2046 = vld [vmem:[#allocation3 + $0xb8] sm:$0xf]
      %v2047 = vld [vmem:[#allocation3 + $0xc4] sm:$0xf]
      %v2048 = vld [vmem:[#allocation3 + $0xd0] sm:$0xf]
      %v2049 = vld [vmem:[#allocation3 + $0xdc] sm:$0xf]
      %v2050 = vld [vmem:[#allocation3 + $0xe8] sm:$0xf]
      %v2051 = vld [vmem:[#allocation3 + $0xf4] sm:$0xf]
      %v2052 = vld [vmem:[#allocation3 + $0x100] sm:$0xf]
      %v2053 = vld [vmem:[#allocation3 + $0x10c] sm:$0xf]
      %v2054 = vld [vmem:[#allocation3 + $0x118] sm:$0xf]
      %v2055 = vld [vmem:[#allocation3 + $0x124] sm:$0xf]
      %v2056 = vld [vmem:[#allocation3 + $0x130] sm:$0xf]
      %v2057 = vld [vmem:[#allocation3 + $0x13c] sm:$0xf]
      %v2058 = vld [vmem:[#allocation3 + $0x148] sm:$0xf]
      %v2059 = vld [vmem:[#allocation3 + $0x154] sm:$0xf]
      %v2060 = vld [vmem:[#allocation3 + $0x160] sm:$0xf]
      %v2061 = vld [vmem:[#allocation3 + $0x16c] sm:$0xf]
      %v2062 = vld [vmem:[#allocation3 + $0x178] sm:$0xf]
      %v2063 = vld [vmem:[#allocation3 + $0x184] sm:$0xf]
      %v2064 = vld [vmem:[#allocation3 + $0x190] sm:$0xf]
      %v2065 = vld [vmem:[#allocation3 + $0x19c] sm:$0xf]
      %v2066 = vld [vmem:[#allocation3 + $0x1a8] sm:$0xf]
      %v2067 = vld [vmem:[#allocation3 + $0x1b4] sm:$0xf]
      %v2068 = vld [vmem:[#allocation3 + $0x1c0] sm:$0xf]
      %v2069 = vld [vmem:[#allocation3 + $0x1cc] sm:$0xf]
      %v2070 = vld [vmem:[#allocation3 + $0x1d8] sm:$0xf]
      %v2071 = vld [vmem:[#allocation3 + $0x1e4] sm:$0xf]
      %v2072 = vld [vmem:[#allocation3 + $0x1f0] sm:$0xf]
      %v2073 = vld [vmem:[#allocation3 + $0x1fc] sm:$0xf]
      %v2074 = vld [vmem:[#allocation3 + $0x208] sm:$0xf]
      %v2075 = vld [vmem:[#allocation3 + $0x214] sm:$0xf]
      %v2076 = vld [vmem:[#allocation3 + $0x220] sm:$0xf]
      %v2077 = vld [vmem:[#allocation3 + $0x22c] sm:$0xf]
      %v2078 = vld [vmem:[#allocation3 + $0x238] sm:$0xf]
      %v2079 = vld [vmem:[#allocation3 + $0x244] sm:$0xf]
      %v2080 = vld [vmem:[#allocation3 + $0x250] sm:$0xf]
      %v2081 = vld [vmem:[#allocation3 + $0x25c] sm:$0xf]
      %v2082 = vld [vmem:[#allocation3 + $0x268] sm:$0xf]
      %v2083 = vld [vmem:[#allocation3 + $0x274] sm:$0xf]
      %v2084 = vld [vmem:[#allocation3 + $0x280] sm:$0xf]
      %v2085 = vld [vmem:[#allocation3 + $0x28c] sm:$0xf]
      %v2086 = vld [vmem:[#allocation3 + $0x298] sm:$0x1]
      %vm2087 = vsmask.f32 3328
      %vm2088 = vsmask.f32 7440
      %vm2089 = vmor %vm2087, %vm2088
      %v2091 = vshrl.u32 %v2031, 16
      %v2093 = vrot.slane %v2091, 4
      %v2094 = vshll.u32 %v2031, 16
      %v2096 = vrot.slane %v2094, 5
      %v2097 = vor.u32 %v2093, %v2096
      %v2098 = vrot.slane %v2097, 4
      %v2100 = vshll.u32 %v2032, 16
      %v2102 = vrot.slane %v2100, 5
      %v2103 = vsel %vm2089, %v2098, %v2102
      %v2104 = vshrl.u32 %v2032, 16
      %v2106 = vrot.slane %v2104, 4
      %v2107 = vor.u32 %v2106, %v2102
      %v2108 = vrot.slane %v2107, 4
      %v2110 = vshll.u32 %v2033, 16
      %v2112 = vrot.slane %v2110, 5
      %v2113 = vsel %vm2089, %v2108, %v2112
      %v2114 = vshrl.u32 %v2033, 16
      %v2116 = vrot.slane %v2114, 4
      %v2117 = vor.u32 %v2116, %v2112
      %v2118 = vrot.slane %v2117, 4
      %v2120 = vshll.u32 %v2034, 16
      %v2122 = vrot.slane %v2120, 5
      %v2123 = vsel %vm2089, %v2118, %v2122
      %v2124 = vshrl.u32 %v2034, 16
      %v2126 = vrot.slane %v2124, 4
      %v2127 = vor.u32 %v2126, %v2122
      %v2128 = vrot.slane %v2127, 4
      %v2130 = vshll.u32 %v2035, 16
      %v2132 = vrot.slane %v2130, 5
      %v2133 = vsel %vm2089, %v2128, %v2132
      %v2134 = vshrl.u32 %v2035, 16
      %v2136 = vrot.slane %v2134, 4
      %v2137 = vor.u32 %v2136, %v2132
      %v2138 = vrot.slane %v2137, 4
      %v2140 = vshll.u32 %v2036, 16
      %v2142 = vrot.slane %v2140, 5
      %v2143 = vsel %vm2089, %v2138, %v2142
      %v2144 = vshrl.u32 %v2036, 16
      %v2146 = vrot.slane %v2144, 4
      %v2147 = vor.u32 %v2146, %v2142
      %v2148 = vrot.slane %v2147, 4
      %v2150 = vshll.u32 %v2037, 16
      %v2152 = vrot.slane %v2150, 5
      %v2153 = vsel %vm2089, %v2148, %v2152
      %v2154 = vshrl.u32 %v2037, 16
      %v2156 = vrot.slane %v2154, 4
      %v2157 = vor.u32 %v2156, %v2152
      %v2158 = vrot.slane %v2157, 4
      %v2160 = vshll.u32 %v2038, 16
      %v2162 = vrot.slane %v2160, 5
      %v2163 = vsel %vm2089, %v2158, %v2162
      %v2164 = vshrl.u32 %v2038, 16
      %v2166 = vrot.slane %v2164, 4
      %v2167 = vor.u32 %v2166, %v2162
      %v2168 = vrot.slane %v2167, 4
      %v2170 = vshll.u32 %v2039, 16
      %v2172 = vrot.slane %v2170, 5
      %v2173 = vsel %vm2089, %v2168, %v2172
      %v2174 = vshrl.u32 %v2039, 16
      %v2176 = vrot.slane %v2174, 4
      %v2177 = vor.u32 %v2176, %v2172
      %v2178 = vrot.slane %v2177, 4
      %v2180 = vshll.u32 %v2040, 16
      %v2182 = vrot.slane %v2180, 5
      %v2183 = vsel %vm2089, %v2178, %v2182
      %v2184 = vshrl.u32 %v2040, 16
      %v2186 = vrot.slane %v2184, 4
      %v2187 = vor.u32 %v2186, %v2182
      %v2188 = vrot.slane %v2187, 4
      %v2190 = vshll.u32 %v2041, 16
      %v2192 = vrot.slane %v2190, 5
      %v2193 = vsel %vm2089, %v2188, %v2192
      %v2194 = vshrl.u32 %v2041, 16
      %v2196 = vrot.slane %v2194, 4
      %v2197 = vor.u32 %v2196, %v2192
      %v2198 = vrot.slane %v2197, 4
      %v2200 = vshll.u32 %v2042, 16
      %v2202 = vrot.slane %v2200, 5
      %v2203 = vsel %vm2089, %v2198, %v2202
      %v2204 = vshrl.u32 %v2042, 16
      %v2206 = vrot.slane %v2204, 4
      %v2207 = vor.u32 %v2206, %v2202
      %v2208 = vrot.slane %v2207, 4
      %v2210 = vshll.u32 %v2043, 16
      %v2212 = vrot.slane %v2210, 5
      %v2213 = vsel %vm2089, %v2208, %v2212
      %v2214 = vshrl.u32 %v2043, 16
      %v2216 = vrot.slane %v2214, 4
      %v2217 = vor.u32 %v2216, %v2212
      %v2218 = vrot.slane %v2217, 4
      %v2220 = vshll.u32 %v2044, 16
      %v2222 = vrot.slane %v2220, 5
      %v2223 = vsel %vm2089, %v2218, %v2222
      %v2224 = vshrl.u32 %v2044, 16
      %v2226 = vrot.slane %v2224, 4
      %v2227 = vor.u32 %v2226, %v2222
      %v2228 = vrot.slane %v2227, 4
      %v2230 = vshll.u32 %v2045, 16
      %v2232 = vrot.slane %v2230, 5
      %v2233 = vsel %vm2089, %v2228, %v2232
      %v2234 = vshrl.u32 %v2045, 16
      %v2236 = vrot.slane %v2234, 4
      %v2237 = vor.u32 %v2236, %v2232
      %v2238 = vrot.slane %v2237, 4
      %v2240 = vshll.u32 %v2046, 16
      %v2242 = vrot.slane %v2240, 5
      %v2243 = vsel %vm2089, %v2238, %v2242
      %v2244 = vshrl.u32 %v2046, 16
      %v2246 = vrot.slane %v2244, 4
      %v2247 = vor.u32 %v2246, %v2242
      %v2248 = vrot.slane %v2247, 4
      %v2250 = vshll.u32 %v2047, 16
      %v2252 = vrot.slane %v2250, 5
      %v2253 = vsel %vm2089, %v2248, %v2252
      %v2254 = vshrl.u32 %v2047, 16
      %v2256 = vrot.slane %v2254, 4
      %v2257 = vor.u32 %v2256, %v2252
      %v2258 = vrot.slane %v2257, 4
      %v2260 = vshll.u32 %v2048, 16
      %v2262 = vrot.slane %v2260, 5
      %v2263 = vsel %vm2089, %v2258, %v2262
      %v2264 = vshrl.u32 %v2048, 16
      %v2266 = vrot.slane %v2264, 4
      %v2267 = vor.u32 %v2266, %v2262
      %v2268 = vrot.slane %v2267, 4
      %v2270 = vshll.u32 %v2049, 16
      %v2272 = vrot.slane %v2270, 5
      %v2273 = vsel %vm2089, %v2268, %v2272
      %v2274 = vshrl.u32 %v2049, 16
      %v2276 = vrot.slane %v2274, 4
      %v2277 = vor.u32 %v2276, %v2272
      %v2278 = vrot.slane %v2277, 4
      %v2280 = vshll.u32 %v2050, 16
      %v2282 = vrot.slane %v2280, 5
      %v2283 = vsel %vm2089, %v2278, %v2282
      %v2284 = vshrl.u32 %v2050, 16
      %v2286 = vrot.slane %v2284, 4
      %v2287 = vor.u32 %v2286, %v2282
      %v2288 = vrot.slane %v2287, 4
      %v2290 = vshll.u32 %v2051, 16
      %v2292 = vrot.slane %v2290, 5
      %v2293 = vsel %vm2089, %v2288, %v2292
      %v2294 = vshrl.u32 %v2051, 16
      %v2296 = vrot.slane %v2294, 4
      %v2297 = vor.u32 %v2296, %v2292
      %v2298 = vrot.slane %v2297, 4
      %v2300 = vshll.u32 %v2052, 16
      %v2302 = vrot.slane %v2300, 5
      %v2303 = vsel %vm2089, %v2298, %v2302
      %v2304 = vshrl.u32 %v2052, 16
      %v2306 = vrot.slane %v2304, 4
      %v2307 = vor.u32 %v2306, %v2302
      %v2308 = vrot.slane %v2307, 4
      %v2310 = vshll.u32 %v2053, 16
      %v2312 = vrot.slane %v2310, 5
      %v2313 = vsel %vm2089, %v2308, %v2312
      %v2314 = vshrl.u32 %v2053, 16
      %v2316 = vrot.slane %v2314, 4
      %v2317 = vor.u32 %v2316, %v2312
      %v2318 = vrot.slane %v2317, 4
      %v2320 = vshll.u32 %v2054, 16
      %v2322 = vrot.slane %v2320, 5
      %v2323 = vsel %vm2089, %v2318, %v2322
      %v2324 = vshrl.u32 %v2054, 16
      %v2326 = vrot.slane %v2324, 4
      %v2327 = vor.u32 %v2326, %v2322
      %v2328 = vrot.slane %v2327, 4
      %v2330 = vshll.u32 %v2055, 16
      %v2332 = vrot.slane %v2330, 5
      %v2333 = vsel %vm2089, %v2328, %v2332
      %v2334 = vshrl.u32 %v2055, 16
      %v2336 = vrot.slane %v2334, 4
      %v2337 = vor.u32 %v2336, %v2332
      %v2338 = vrot.slane %v2337, 4
      %v2340 = vshll.u32 %v2056, 16
      %v2342 = vrot.slane %v2340, 5
      %v2343 = vsel %vm2089, %v2338, %v2342
      %v2344 = vshrl.u32 %v2056, 16
      %v2346 = vrot.slane %v2344, 4
      %v2347 = vor.u32 %v2346, %v2342
      %v2348 = vrot.slane %v2347, 4
      %v2350 = vshll.u32 %v2057, 16
      %v2352 = vrot.slane %v2350, 5
      %v2353 = vsel %vm2089, %v2348, %v2352
      %v2354 = vshrl.u32 %v2057, 16
      %v2356 = vrot.slane %v2354, 4
      %v2357 = vor.u32 %v2356, %v2352
      %v2358 = vrot.slane %v2357, 4
      %v2360 = vshll.u32 %v2058, 16
      %v2362 = vrot.slane %v2360, 5
      %v2363 = vsel %vm2089, %v2358, %v2362
      %v2364 = vshrl.u32 %v2058, 16
      %v2366 = vrot.slane %v2364, 4
      %v2367 = vor.u32 %v2366, %v2362
      %v2368 = vrot.slane %v2367, 4
      %v2370 = vshll.u32 %v2059, 16
      %v2372 = vrot.slane %v2370, 5
      %v2373 = vsel %vm2089, %v2368, %v2372
      %v2374 = vshrl.u32 %v2059, 16
      %v2376 = vrot.slane %v2374, 4
      %v2377 = vor.u32 %v2376, %v2372
      %v2378 = vrot.slane %v2377, 4
      %v2380 = vshll.u32 %v2060, 16
      %v2382 = vrot.slane %v2380, 5
      %v2383 = vsel %vm2089, %v2378, %v2382
      %v2384 = vshrl.u32 %v2060, 16
      %v2386 = vrot.slane %v2384, 4
      %v2387 = vor.u32 %v2386, %v2382
      %v2388 = vrot.slane %v2387, 4
      %v2390 = vshll.u32 %v2061, 16
      %v2392 = vrot.slane %v2390, 5
      %v2393 = vsel %vm2089, %v2388, %v2392
      %v2394 = vshrl.u32 %v2061, 16
      %v2396 = vrot.slane %v2394, 4
      %v2397 = vor.u32 %v2396, %v2392
      %v2398 = vrot.slane %v2397, 4
      %v2400 = vshll.u32 %v2062, 16
      %v2402 = vrot.slane %v2400, 5
      %v2403 = vsel %vm2089, %v2398, %v2402
      %v2404 = vshrl.u32 %v2062, 16
      %v2406 = vrot.slane %v2404, 4
      %v2407 = vor.u32 %v2406, %v2402
      %v2408 = vrot.slane %v2407, 4
      %v2410 = vshll.u32 %v2063, 16
      %v2412 = vrot.slane %v2410, 5
      %v2413 = vsel %vm2089, %v2408, %v2412
      %v2414 = vshrl.u32 %v2063, 16
      %v2416 = vrot.slane %v2414, 4
      %v2417 = vor.u32 %v2416, %v2412
      %v2418 = vrot.slane %v2417, 4
      %v2420 = vshll.u32 %v2064, 16
      %v2422 = vrot.slane %v2420, 5
      %v2423 = vsel %vm2089, %v2418, %v2422
      %v2424 = vshrl.u32 %v2064, 16
      %v2426 = vrot.slane %v2424, 4
      %v2427 = vor.u32 %v2426, %v2422
      %v2428 = vrot.slane %v2427, 4
      %v2430 = vshll.u32 %v2065, 16
      %v2432 = vrot.slane %v2430, 5
      %v2433 = vsel %vm2089, %v2428, %v2432
      %v2434 = vshrl.u32 %v2065, 16
      %v2436 = vrot.slane %v2434, 4
      %v2437 = vor.u32 %v2436, %v2432
      %v2438 = vrot.slane %v2437, 4
      %v2440 = vshll.u32 %v2066, 16
      %v2442 = vrot.slane %v2440, 5
      %v2443 = vsel %vm2089, %v2438, %v2442
      %v2444 = vshrl.u32 %v2066, 16
      %v2446 = vrot.slane %v2444, 4
      %v2447 = vor.u32 %v2446, %v2442
      %v2448 = vrot.slane %v2447, 4
      %v2450 = vshll.u32 %v2067, 16
      %v2452 = vrot.slane %v2450, 5
      %v2453 = vsel %vm2089, %v2448, %v2452
      %v2454 = vshrl.u32 %v2067, 16
      %v2456 = vrot.slane %v2454, 4
      %v2457 = vor.u32 %v2456, %v2452
      %v2458 = vrot.slane %v2457, 4
      %v2460 = vshll.u32 %v2068, 16
      %v2462 = vrot.slane %v2460, 5
      %v2463 = vsel %vm2089, %v2458, %v2462
      %v2464 = vshrl.u32 %v2068, 16
      %v2466 = vrot.slane %v2464, 4
      %v2467 = vor.u32 %v2466, %v2462
      %v2468 = vrot.slane %v2467, 4
      %v2470 = vshll.u32 %v2069, 16
      %v2472 = vrot.slane %v2470, 5
      %v2473 = vsel %vm2089, %v2468, %v2472
      %v2474 = vshrl.u32 %v2069, 16
      %v2476 = vrot.slane %v2474, 4
      %v2477 = vor.u32 %v2476, %v2472
      %v2478 = vrot.slane %v2477, 4
      %v2480 = vshll.u32 %v2070, 16
      %v2482 = vrot.slane %v2480, 5
      %v2483 = vsel %vm2089, %v2478, %v2482
      %v2484 = vshrl.u32 %v2070, 16
      %v2486 = vrot.slane %v2484, 4
      %v2487 = vor.u32 %v2486, %v2482
      %v2488 = vrot.slane %v2487, 4
      %v2490 = vshll.u32 %v2071, 16
      %v2492 = vrot.slane %v2490, 5
      %v2493 = vsel %vm2089, %v2488, %v2492
      %v2494 = vshrl.u32 %v2071, 16
      %v2496 = vrot.slane %v2494, 4
      %v2497 = vor.u32 %v2496, %v2492
      %v2498 = vrot.slane %v2497, 4
      %v2500 = vshll.u32 %v2072, 16
      %v2502 = vrot.slane %v2500, 5
      %v2503 = vsel %vm2089, %v2498, %v2502
      %v2504 = vshrl.u32 %v2072, 16
      %v2506 = vrot.slane %v2504, 4
      %v2507 = vor.u32 %v2506, %v2502
      %v2508 = vrot.slane %v2507, 4
      %v2510 = vshll.u32 %v2073, 16
      %v2512 = vrot.slane %v2510, 5
      %v2513 = vsel %vm2089, %v2508, %v2512
      %v2514 = vshrl.u32 %v2073, 16
      %v2516 = vrot.slane %v2514, 4
      %v2517 = vor.u32 %v2516, %v2512
      %v2518 = vrot.slane %v2517, 4
      %v2520 = vshll.u32 %v2074, 16
      %v2522 = vrot.slane %v2520, 5
      %v2523 = vsel %vm2089, %v2518, %v2522
      %v2524 = vshrl.u32 %v2074, 16
      %v2526 = vrot.slane %v2524, 4
      %v2527 = vor.u32 %v2526, %v2522
      %v2528 = vrot.slane %v2527, 4
      %v2530 = vshll.u32 %v2075, 16
      %v2532 = vrot.slane %v2530, 5
      %v2533 = vsel %vm2089, %v2528, %v2532
      %v2534 = vshrl.u32 %v2075, 16
      %v2536 = vrot.slane %v2534, 4
      %v2537 = vor.u32 %v2536, %v2532
      %v2538 = vrot.slane %v2537, 4
      %v2540 = vshll.u32 %v2076, 16
      %v2542 = vrot.slane %v2540, 5
      %v2543 = vsel %vm2089, %v2538, %v2542
      %v2544 = vshrl.u32 %v2076, 16
      %v2546 = vrot.slane %v2544, 4
      %v2547 = vor.u32 %v2546, %v2542
      %v2548 = vrot.slane %v2547, 4
      %v2550 = vshll.u32 %v2077, 16
      %v2552 = vrot.slane %v2550, 5
      %v2553 = vsel %vm2089, %v2548, %v2552
      %v2554 = vshrl.u32 %v2077, 16
      %v2556 = vrot.slane %v2554, 4
      %v2557 = vor.u32 %v2556, %v2552
      %v2558 = vrot.slane %v2557, 4
      %v2560 = vshll.u32 %v2078, 16
      %v2562 = vrot.slane %v2560, 5
      %v2563 = vsel %vm2089, %v2558, %v2562
      %v2564 = vshrl.u32 %v2078, 16
      %v2566 = vrot.slane %v2564, 4
      %v2567 = vor.u32 %v2566, %v2562
      %v2568 = vrot.slane %v2567, 4
      %v2570 = vshll.u32 %v2079, 16
      %v2572 = vrot.slane %v2570, 5
      %v2573 = vsel %vm2089, %v2568, %v2572
      %v2574 = vshrl.u32 %v2079, 16
      %v2576 = vrot.slane %v2574, 4
      %v2577 = vor.u32 %v2576, %v2572
      %v2578 = vrot.slane %v2577, 4
      %v2580 = vshll.u32 %v2080, 16
      %v2582 = vrot.slane %v2580, 5
      %v2583 = vsel %vm2089, %v2578, %v2582
      %v2584 = vshrl.u32 %v2080, 16
      %v2586 = vrot.slane %v2584, 4
      %v2587 = vor.u32 %v2586, %v2582
      %v2588 = vrot.slane %v2587, 4
      %v2590 = vshll.u32 %v2081, 16
      %v2592 = vrot.slane %v2590, 5
      %v2593 = vsel %vm2089, %v2588, %v2592
      %v2594 = vshrl.u32 %v2081, 16
      %v2596 = vrot.slane %v2594, 4
      %v2597 = vor.u32 %v2596, %v2592
      %v2598 = vrot.slane %v2597, 4
      %v2600 = vshll.u32 %v2082, 16
      %v2602 = vrot.slane %v2600, 5
      %v2603 = vsel %vm2089, %v2598, %v2602
      %v2604 = vshrl.u32 %v2082, 16
      %v2606 = vrot.slane %v2604, 4
      %v2607 = vor.u32 %v2606, %v2602
      %v2608 = vrot.slane %v2607, 4
      %v2610 = vshll.u32 %v2083, 16
      %v2612 = vrot.slane %v2610, 5
      %v2613 = vsel %vm2089, %v2608, %v2612
      %v2614 = vshrl.u32 %v2083, 16
      %v2616 = vrot.slane %v2614, 4
      %v2617 = vor.u32 %v2616, %v2612
      %v2618 = vrot.slane %v2617, 4
      %v2620 = vshll.u32 %v2084, 16
      %v2622 = vrot.slane %v2620, 5
      %v2623 = vsel %vm2089, %v2618, %v2622
      %v2624 = vshrl.u32 %v2084, 16
      %v2626 = vrot.slane %v2624, 4
      %v2627 = vor.u32 %v2626, %v2622
      %v2628 = vrot.slane %v2627, 4
      %v2630 = vshll.u32 %v2085, 16
      %v2632 = vrot.slane %v2630, 5
      %v2633 = vsel %vm2089, %v2628, %v2632
      %v2634 = vshrl.u32 %v2085, 16
      %v2636 = vrot.slane %v2634, 4
      %v2637 = vor.u32 %v2636, %v2632
      %v2638 = vrot.slane %v2637, 4
      %v2640 = vshll.u32 %v2086, 16
      %v2642 = vrot.slane %v2640, 5
      %v2643 = vsel %vm2089, %v2638, %v2642
      %2699 = vst [vmem:[#allocation3 + $0x8] sm:$0xf] %v2103
      %2700 = vst [vmem:[#allocation3 + $0x14] sm:$0xf] %v2113
      %2701 = vst [vmem:[#allocation3 + $0x20] sm:$0xf] %v2123
      %2702 = vst [vmem:[#allocation3 + $0x2c] sm:$0xf] %v2133
      %2703 = vst [vmem:[#allocation3 + $0x38] sm:$0xf] %v2143
      %2704 = vst [vmem:[#allocation3 + $0x44] sm:$0xf] %v2153
      %2705 = vst [vmem:[#allocation3 + $0x50] sm:$0xf] %v2163
      %2706 = vst [vmem:[#allocation3 + $0x5c] sm:$0xf] %v2173
      %2707 = vst [vmem:[#allocation3 + $0x68] sm:$0xf] %v2183
      %2708 = vst [vmem:[#allocation3 + $0x74] sm:$0xf] %v2193
      %2709 = vst [vmem:[#allocation3 + $0x80] sm:$0xf] %v2203
      %2710 = vst [vmem:[#allocation3 + $0x8c] sm:$0xf] %v2213
      %2711 = vst [vmem:[#allocation3 + $0x98] sm:$0xf] %v2223
      %2712 = vst [vmem:[#allocation3 + $0xa4] sm:$0xf] %v2233
      %2713 = vst [vmem:[#allocation3 + $0xb0] sm:$0xf] %v2243
      %2714 = vst [vmem:[#allocation3 + $0xbc] sm:$0xf] %v2253
      %2715 = vst [vmem:[#allocation3 + $0xc8] sm:$0xf] %v2263
      %2716 = vst [vmem:[#allocation3 + $0xd4] sm:$0xf] %v2273
      %2717 = vst [vmem:[#allocation3 + $0xe0] sm:$0xf] %v2283
      %2718 = vst [vmem:[#allocation3 + $0xec] sm:$0xf] %v2293
      %2719 = vst [vmem:[#allocation3 + $0xf8] sm:$0xf] %v2303
      %2720 = vst [vmem:[#allocation3 + $0x104] sm:$0xf] %v2313
      %2721 = vst [vmem:[#allocation3 + $0x110] sm:$0xf] %v2323
      %2722 = vst [vmem:[#allocation3 + $0x11c] sm:$0xf] %v2333
      %2723 = vst [vmem:[#allocation3 + $0x128] sm:$0xf] %v2343
      %2724 = vst [vmem:[#allocation3 + $0x134] sm:$0xf] %v2353
      %2725 = vst [vmem:[#allocation3 + $0x140] sm:$0xf] %v2363
      %2726 = vst [vmem:[#allocation3 + $0x14c] sm:$0xf] %v2373
      %2727 = vst [vmem:[#allocation3 + $0x158] sm:$0xf] %v2383
      %2728 = vst [vmem:[#allocation3 + $0x164] sm:$0xf] %v2393
      %2729 = vst [vmem:[#allocation3 + $0x170] sm:$0xf] %v2403
      %2730 = vst [vmem:[#allocation3 + $0x17c] sm:$0xf] %v2413
      %2731 = vst [vmem:[#allocation3 + $0x188] sm:$0xf] %v2423
      %2732 = vst [vmem:[#allocation3 + $0x194] sm:$0xf] %v2433
      %2733 = vst [vmem:[#allocation3 + $0x1a0] sm:$0xf] %v2443
      %2734 = vst [vmem:[#allocation3 + $0x1ac] sm:$0xf] %v2453
      %2735 = vst [vmem:[#allocation3 + $0x1b8] sm:$0xf] %v2463
      %2736 = vst [vmem:[#allocation3 + $0x1c4] sm:$0xf] %v2473
      %2737 = vst [vmem:[#allocation3 + $0x1d0] sm:$0xf] %v2483
      %2738 = vst [vmem:[#allocation3 + $0x1dc] sm:$0xf] %v2493
      %2739 = vst [vmem:[#allocation3 + $0x1e8] sm:$0xf] %v2503
      %2740 = vst [vmem:[#allocation3 + $0x1f4] sm:$0xf] %v2513
      %2741 = vst [vmem:[#allocation3 + $0x200] sm:$0xf] %v2523
      %2742 = vst [vmem:[#allocation3 + $0x20c] sm:$0xf] %v2533
      %2743 = vst [vmem:[#allocation3 + $0x218] sm:$0xf] %v2543
      %2744 = vst [vmem:[#allocation3 + $0x224] sm:$0xf] %v2553
      %2745 = vst [vmem:[#allocation3 + $0x230] sm:$0xf] %v2563
      %2746 = vst [vmem:[#allocation3 + $0x23c] sm:$0xf] %v2573
      %2747 = vst [vmem:[#allocation3 + $0x248] sm:$0xf] %v2583
      %2748 = vst [vmem:[#allocation3 + $0x254] sm:$0xf] %v2593
      %2749 = vst [vmem:[#allocation3 + $0x260] sm:$0xf] %v2603
      %2750 = vst [vmem:[#allocation3 + $0x26c] sm:$0xf] %v2613
      %2751 = vst [vmem:[#allocation3 + $0x278] sm:$0xf] %v2623
      %2752 = vst [vmem:[#allocation3 + $0x284] sm:$0xf] %v2633
      %2753 = vst [vmem:[#allocation3 + $0x290] sm:$0xf] %v2643
      %2754 = vst [vmem:[#allocation2] sm:$0xff] 0.0
      %2755 = vst [vmem:[#allocation2 + $0x8] sm:$0xff] 0.0
      %2756 = vst [vmem:[#allocation2 + $0x10] sm:$0xff] 0.0
      %2757 = vst [vmem:[#allocation2 + $0x18] sm:$0xff] 0.0
      %2758 = vst [vmem:[#allocation2 + $0x20] sm:$0xff] 0.0
      %2759 = vst [vmem:[#allocation2 + $0x28] sm:$0xff] 0.0
      %2760 = vst [vmem:[#allocation2 + $0x30] sm:$0xff] 0.0
      %2761 = vst [vmem:[#allocation2 + $0x38] sm:$0xff] 0.0
      %2762 = vst [vmem:[#allocation2 + $0x40] sm:$0xff] 0.0
      %2763 = vst [vmem:[#allocation2 + $0x48] sm:$0xff] 0.0
      %2764 = vst [vmem:[#allocation2 + $0x50] sm:$0xff] 0.0
      %2765 = vst [vmem:[#allocation2 + $0x58] sm:$0xff] 0.0
      %2766 = vst [vmem:[#allocation2 + $0x60] sm:$0xff] 0.0
      %2767 = vst [vmem:[#allocation2 + $0x68] sm:$0xff] 0.0
      %2768 = vst [vmem:[#allocation2 + $0x70] sm:$0xff] 0.0
      %2769 = vst [vmem:[#allocation2 + $0x78] sm:$0xff] 0.0
      %2770 = vst [vmem:[#allocation2 + $0x80] sm:$0xff] 0.0
      %2771 = vst [vmem:[#allocation2 + $0x88] sm:$0xff] 0.0
      %2772 = vst [vmem:[#allocation2 + $0x90] sm:$0xff] 0.0
      %2773 = vst [vmem:[#allocation2 + $0x98] sm:$0xff] 0.0
      %2774 = vst [vmem:[#allocation2 + $0xa0] sm:$0xff] 0.0
      %2775 = vst [vmem:[#allocation2 + $0xa8] sm:$0xff] 0.0
      %2776 = vst [vmem:[#allocation2 + $0xb0] sm:$0xff] 0.0
      %2777 = vst [vmem:[#allocation2 + $0xb8] sm:$0xff] 0.0
      %2778 = vst [vmem:[#allocation2 + $0xc0] sm:$0xff] 0.0
      %2779 = vst [vmem:[#allocation2 + $0xc8] sm:$0xff] 0.0
      %2780 = vst [vmem:[#allocation2 + $0xd0] sm:$0xff] 0.0
      %2781 = vst [vmem:[#allocation2 + $0xd8] sm:$0xff] 0.0
      %2782 = vst [vmem:[#allocation2 + $0xe0] sm:$0xff] 0.0
      %2783 = vst [vmem:[#allocation2 + $0xe8] sm:$0xff] 0.0
      %2784 = vst [vmem:[#allocation2 + $0xf0] sm:$0xff] 0.0
      %2785 = vst [vmem:[#allocation2 + $0xf8] sm:$0xff] 0.0
      %2786 = vst [vmem:[#allocation2 + $0x100] sm:$0xff] 0.0
      %2787 = vst [vmem:[#allocation2 + $0x108] sm:$0xff] 0.0
      %2788 = vst [vmem:[#allocation2 + $0x110] sm:$0xff] 0.0
      %2789 = vst [vmem:[#allocation2 + $0x118] sm:$0xff] 0.0
      %2790 = vst [vmem:[#allocation2 + $0x120] sm:$0xff] 0.0
      %2791 = vst [vmem:[#allocation2 + $0x128] sm:$0xff] 0.0
      %2792 = vst [vmem:[#allocation2 + $0x130] sm:$0xff] 0.0
      %2793 = vst [vmem:[#allocation2 + $0x138] sm:$0xff] 0.0
      %2794 = vst [vmem:[#allocation2 + $0x140] sm:$0xff] 0.0
      %2795 = vst [vmem:[#allocation2 + $0x148] sm:$0xff] 0.0
      %2796 = vst [vmem:[#allocation2 + $0x150] sm:$0xff] 0.0
      %2797 = vst [vmem:[#allocation2 + $0x158] sm:$0xff] 0.0
      %2798 = vst [vmem:[#allocation2 + $0x160] sm:$0xff] 0.0
      %2799 = vst [vmem:[#allocation2 + $0x168] sm:$0xff] 0.0
      %2800 = vst [vmem:[#allocation2 + $0x170] sm:$0xff] 0.0
      %2801 = vst [vmem:[#allocation2 + $0x178] sm:$0xff] 0.0
      %v2802 = vld [vmem:[#allocation2] sm:$0xff]
      %v2803 = vld [vmem:[#allocation2 + $0x8] sm:$0xff]
      %v2804 = vld [vmem:[#allocation2 + $0x10] sm:$0xff]
      %v2805 = vld [vmem:[#allocation2 + $0x18] sm:$0xff]
      %v2806 = vld [vmem:[#allocation2 + $0x20] sm:$0xff]
      %v2807 = vld [vmem:[#allocation2 + $0x28] sm:$0xff]
      %v2808 = vld [vmem:[#allocation2 + $0x30] sm:$0xff]
      %v2809 = vld [vmem:[#allocation2 + $0x38] sm:$0xff]
      %v2810 = vld [vmem:[#allocation2 + $0x40] sm:$0xff]
      %v2811 = vld [vmem:[#allocation2 + $0x48] sm:$0xff]
      %v2812 = vld [vmem:[#allocation2 + $0x50] sm:$0xff]
      %v2813 = vld [vmem:[#allocation2 + $0x58] sm:$0xff]
      %v2814 = vld [vmem:[#allocation2 + $0x60] sm:$0xff]
      %v2815 = vld [vmem:[#allocation2 + $0x68] sm:$0xff]
      %v2816 = vld [vmem:[#allocation2 + $0x70] sm:$0xff]
      %v2817 = vld [vmem:[#allocation2 + $0x78] sm:$0xff]
      %v2818 = vld [vmem:[#allocation2 + $0x80] sm:$0xff]
      %v2819 = vld [vmem:[#allocation2 + $0x88] sm:$0xff]
      %v2820 = vld [vmem:[#allocation2 + $0x90] sm:$0xff]
      %v2821 = vld [vmem:[#allocation2 + $0x98] sm:$0xff]
      %v2822 = vld [vmem:[#allocation2 + $0xa0] sm:$0xff]
      %v2823 = vld [vmem:[#allocation2 + $0xa8] sm:$0xff]
      %v2824 = vld [vmem:[#allocation2 + $0xb0] sm:$0xff]
      %v2825 = vld [vmem:[#allocation2 + $0xb8] sm:$0xff]
      %v2826 = vld [vmem:[#allocation2 + $0xc0] sm:$0xff]
      %v2827 = vld [vmem:[#allocation2 + $0xc8] sm:$0xff]
      %v2828 = vld [vmem:[#allocation2 + $0xd0] sm:$0xff]
      %v2829 = vld [vmem:[#allocation2 + $0xd8] sm:$0xff]
      %v2830 = vld [vmem:[#allocation2 + $0xe0] sm:$0xff]
      %v2831 = vld [vmem:[#allocation2 + $0xe8] sm:$0xff]
      %v2832 = vld [vmem:[#allocation2 + $0xf0] sm:$0xff]
      %v2833 = vld [vmem:[#allocation2 + $0xf8] sm:$0xff]
      %v2834 = vld [vmem:[#allocation2 + $0x100] sm:$0xff]
      %v2835 = vld [vmem:[#allocation2 + $0x108] sm:$0xff]
      %v2836 = vld [vmem:[#allocation2 + $0x110] sm:$0xff]
      %v2837 = vld [vmem:[#allocation2 + $0x118] sm:$0xff]
      %v2838 = vld [vmem:[#allocation2 + $0x120] sm:$0xff]
      %v2839 = vld [vmem:[#allocation2 + $0x128] sm:$0xff]
      %v2840 = vld [vmem:[#allocation2 + $0x130] sm:$0xff]
      %v2841 = vld [vmem:[#allocation2 + $0x138] sm:$0xff]
      %v2842 = vld [vmem:[#allocation2 + $0x140] sm:$0xff]
      %v2843 = vld [vmem:[#allocation2 + $0x148] sm:$0xff]
      %v2844 = vld [vmem:[#allocation2 + $0x150] sm:$0xff]
      %v2845 = vld [vmem:[#allocation2 + $0x158] sm:$0xff]
      %v2846 = vld [vmem:[#allocation2 + $0x160] sm:$0xff]
      %v2847 = vld [vmem:[#allocation2 + $0x168] sm:$0xff]
      %v2848 = vld [vmem:[#allocation2 + $0x170] sm:$0xff]
      %v2849 = vld [vmem:[#allocation2 + $0x178] sm:$0xff]
      %v2850 = vld [vmem:[#allocation3 + $0xc] sm:$0xff]
      %v2851 = vld [vmem:[#allocation3 + $0x14] sm:$0xf]
      %v2852 = vld [vmem:[#allocation3 + $0x18] sm:$0xff]
      %v2853 = vld [vmem:[#allocation3 + $0x20] sm:$0xf]
      %v2854 = vld [vmem:[#allocation3 + $0x24] sm:$0xff]
      %v2855 = vld [vmem:[#allocation3 + $0x2c] sm:$0xf]
      %v2856 = vld [vmem:[#allocation3 + $0x30] sm:$0xff]
      %v2857 = vld [vmem:[#allocation3 + $0x38] sm:$0xf]
      %v2858 = vld [vmem:[#allocation3 + $0x3c] sm:$0xff]
      %v2859 = vld [vmem:[#allocation3 + $0x44] sm:$0xf]
      %v2860 = vld [vmem:[#allocation3 + $0x48] sm:$0xff]
      %v2861 = vld [vmem:[#allocation3 + $0x50] sm:$0xf]
      %v2862 = vld [vmem:[#allocation3 + $0x54] sm:$0xff]
      %v2863 = vld [vmem:[#allocation3 + $0x5c] sm:$0xf]
      %v2864 = vld [vmem:[#allocation3 + $0x60] sm:$0xff]
      %v2865 = vld [vmem:[#allocation3 + $0x68] sm:$0xf]
      %v2866 = vld [vmem:[#allocation3 + $0x6c] sm:$0xff]
      %v2867 = vld [vmem:[#allocation3 + $0x74] sm:$0xf]
      %v2868 = vld [vmem:[#allocation3 + $0x78] sm:$0xff]
      %v2869 = vld [vmem:[#allocation3 + $0x80] sm:$0xf]
      %v2870 = vld [vmem:[#allocation3 + $0x84] sm:$0xff]
      %v2871 = vld [vmem:[#allocation3 + $0x8c] sm:$0xf]
      %v2872 = vld [vmem:[#allocation3 + $0x90] sm:$0xff]
      %v2873 = vld [vmem:[#allocation3 + $0x98] sm:$0xf]
      %v2874 = vld [vmem:[#allocation3 + $0x9c] sm:$0xff]
      %v2875 = vld [vmem:[#allocation3 + $0xa4] sm:$0xf]
      %v2876 = vld [vmem:[#allocation3 + $0xa8] sm:$0xff]
      %v2877 = vld [vmem:[#allocation3 + $0xb0] sm:$0xf]
      %v2878 = vld [vmem:[#allocation3 + $0xb4] sm:$0xff]
      %v2879 = vld [vmem:[#allocation3 + $0xbc] sm:$0xf]
      %v2880 = vld [vmem:[#allocation3 + $0xc0] sm:$0xff]
      %v2881 = vld [vmem:[#allocation3 + $0xc8] sm:$0xf]
      %v2882 = vld [vmem:[#allocation3 + $0xcc] sm:$0xff]
      %v2883 = vld [vmem:[#allocation3 + $0xd4] sm:$0xf]
      %v2884 = vld [vmem:[#allocation3 + $0xd8] sm:$0xff]
      %v2885 = vld [vmem:[#allocation3 + $0xe0] sm:$0xf]
      %v2886 = vld [vmem:[#allocation3 + $0xe4] sm:$0xff]
      %v2887 = vld [vmem:[#allocation3 + $0xec] sm:$0xf]
      %v2888 = vld [vmem:[#allocation3 + $0xf0] sm:$0xff]
      %v2889 = vld [vmem:[#allocation3 + $0xf8] sm:$0xf]
      %v2890 = vld [vmem:[#allocation3 + $0xfc] sm:$0xff]
      %v2891 = vld [vmem:[#allocation3 + $0x104] sm:$0xf]
      %v2892 = vld [vmem:[#allocation3 + $0x108] sm:$0xff]
      %v2893 = vld [vmem:[#allocation3 + $0x110] sm:$0xf]
      %v2894 = vld [vmem:[#allocation3 + $0x114] sm:$0xff]
      %v2895 = vld [vmem:[#allocation3 + $0x11c] sm:$0xf]
      %v2896 = vld [vmem:[#allocation3 + $0x120] sm:$0xff]
      %v2897 = vld [vmem:[#allocation3 + $0x128] sm:$0xf]
      %v2898 = vld [vmem:[#allocation3 + $0x12c] sm:$0xff]
      %v2899 = vld [vmem:[#allocation3 + $0x134] sm:$0xf]
      %v2900 = vld [vmem:[#allocation3 + $0x138] sm:$0xff]
      %v2901 = vld [vmem:[#allocation3 + $0x140] sm:$0xf]
      %v2902 = vld [vmem:[#allocation3 + $0x144] sm:$0xff]
      %v2903 = vld [vmem:[#allocation3 + $0x14c] sm:$0xf]
      %v2904 = vld [vmem:[#allocation3 + $0x150] sm:$0xff]
      %v2905 = vld [vmem:[#allocation3 + $0x158] sm:$0xf]
      %v2906 = vld [vmem:[#allocation3 + $0x15c] sm:$0xff]
      %v2907 = vld [vmem:[#allocation3 + $0x164] sm:$0xf]
      %v2908 = vld [vmem:[#allocation3 + $0x168] sm:$0xff]
      %v2909 = vld [vmem:[#allocation3 + $0x170] sm:$0xf]
      %v2910 = vld [vmem:[#allocation3 + $0x174] sm:$0xff]
      %v2911 = vld [vmem:[#allocation3 + $0x17c] sm:$0xf]
      %v2912 = vld [vmem:[#allocation3 + $0x180] sm:$0xff]
      %v2913 = vld [vmem:[#allocation3 + $0x188] sm:$0xf]
      %v2914 = vld [vmem:[#allocation3 + $0x18c] sm:$0xff]
      %v2915 = vld [vmem:[#allocation3 + $0x194] sm:$0xf]
      %v2916 = vld [vmem:[#allocation3 + $0x198] sm:$0xff]
      %v2917 = vld [vmem:[#allocation3 + $0x1a0] sm:$0xf]
      %v2918 = vld [vmem:[#allocation3 + $0x1a4] sm:$0xff]
      %v2919 = vld [vmem:[#allocation3 + $0x1ac] sm:$0xf]
      %v2920 = vld [vmem:[#allocation3 + $0x1b0] sm:$0xff]
      %v2921 = vld [vmem:[#allocation3 + $0x1b8] sm:$0xf]
      %v2922 = vld [vmem:[#allocation3 + $0x1bc] sm:$0xff]
      %v2923 = vld [vmem:[#allocation3 + $0x1c4] sm:$0xf]
      %v2924 = vld [vmem:[#allocation3 + $0x1c8] sm:$0xff]
      %v2925 = vld [vmem:[#allocation3 + $0x1d0] sm:$0xf]
      %v2926 = vld [vmem:[#allocation3 + $0x1d4] sm:$0xff]
      %v2927 = vld [vmem:[#allocation3 + $0x1dc] sm:$0xf]
      %v2928 = vld [vmem:[#allocation3 + $0x1e0] sm:$0xff]
      %v2929 = vld [vmem:[#allocation3 + $0x1e8] sm:$0xf]
      %v2930 = vld [vmem:[#allocation3 + $0x1ec] sm:$0xff]
      %v2931 = vld [vmem:[#allocation3 + $0x1f4] sm:$0xf]
      %v2932 = vld [vmem:[#allocation3 + $0x1f8] sm:$0xff]
      %v2933 = vld [vmem:[#allocation3 + $0x200] sm:$0xf]
      %v2934 = vld [vmem:[#allocation3 + $0x204] sm:$0xff]
      %v2935 = vld [vmem:[#allocation3 + $0x20c] sm:$0xf]
      %v2936 = vld [vmem:[#allocation3 + $0x210] sm:$0xff]
      %v2937 = vld [vmem:[#allocation3 + $0x218] sm:$0xf]
      %v2938 = vld [vmem:[#allocation3 + $0x21c] sm:$0xff]
      %v2939 = vld [vmem:[#allocation3 + $0x224] sm:$0xf]
      %v2940 = vld [vmem:[#allocation3 + $0x228] sm:$0xff]
      %v2941 = vld [vmem:[#allocation3 + $0x230] sm:$0xf]
      %v2942 = vld [vmem:[#allocation3 + $0x234] sm:$0xff]
      %v2943 = vld [vmem:[#allocation3 + $0x23c] sm:$0xf]
      %v2944 = vld [vmem:[#allocation3 + $0x240] sm:$0xff]
      %v2945 = vld [vmem:[#allocation3 + $0x248] sm:$0xf]
      %v2946 = vld [vmem:[%s2] sm:$0xf]
      %v2947 = vld [vmem:[%s2 + $0x4] sm:$0xf]
      %v2948 = vld [vmem:[%s2 + $0x8] sm:$0xf]
      %v2949 = vld [vmem:[%s2 + $0xc] sm:$0xf]
      %v2950 = vld [vmem:[%s2 + $0x10] sm:$0xf]
      %v2951 = vld [vmem:[%s2 + $0x14] sm:$0xf]
      %v2952 = vld [vmem:[%s2 + $0x18] sm:$0xf]
      %v2953 = vld [vmem:[%s2 + $0x1c] sm:$0xf]
      %v2954 = vld [vmem:[%s2 + $0x20] sm:$0xf]
      %v2955 = vld [vmem:[%s2 + $0x24] sm:$0xf]
      %v2956 = vld [vmem:[%s2 + $0x28] sm:$0xf]
      %v2957 = vld [vmem:[%s2 + $0x2c] sm:$0xf]
      %v2958 = vld [vmem:[%s2 + $0x30] sm:$0xf]
      %v2959 = vld [vmem:[%s2 + $0x34] sm:$0xf]
      %v2960 = vld [vmem:[%s2 + $0x38] sm:$0xf]
      %v2961 = vld [vmem:[%s2 + $0x3c] sm:$0xf]
      %v2962 = vld [vmem:[%s2 + $0x40] sm:$0xf]
      %v2963 = vld [vmem:[%s2 + $0x44] sm:$0xf]
      %v2964 = vld [vmem:[%s2 + $0x48] sm:$0xf]
      %v2965 = vld [vmem:[%s2 + $0x4c] sm:$0xf]
      %v2966 = vld [vmem:[%s2 + $0x50] sm:$0xf]
      %v2967 = vld [vmem:[%s2 + $0x54] sm:$0xf]
      %v2968 = vld [vmem:[%s2 + $0x58] sm:$0xf]
      %v2969 = vld [vmem:[%s2 + $0x5c] sm:$0xf]
      %v2970 = vld [vmem:[%s2 + $0x60] sm:$0xf]
      %v2971 = vld [vmem:[%s2 + $0x64] sm:$0xf]
      %v2972 = vld [vmem:[%s2 + $0x68] sm:$0xf]
      %v2973 = vld [vmem:[%s2 + $0x6c] sm:$0xf]
      %v2974 = vld [vmem:[%s2 + $0x70] sm:$0xf]
      %v2975 = vld [vmem:[%s2 + $0x74] sm:$0xf]
      %v2976 = vld [vmem:[%s2 + $0x78] sm:$0xf]
      %v2977 = vld [vmem:[%s2 + $0x7c] sm:$0xf]
      %v2978 = vld [vmem:[%s2 + $0x80] sm:$0xf]
      %v2979 = vld [vmem:[%s2 + $0x84] sm:$0xf]
      %v2980 = vld [vmem:[%s2 + $0x88] sm:$0xf]
      %v2981 = vld [vmem:[%s2 + $0x8c] sm:$0xf]
      %v2982 = vld [vmem:[%s2 + $0x90] sm:$0xf]
      %v2983 = vld [vmem:[%s2 + $0x94] sm:$0xf]
      %v2984 = vld [vmem:[%s2 + $0x98] sm:$0xf]
      %v2985 = vld [vmem:[%s2 + $0x9c] sm:$0xf]
      %v2986 = vld [vmem:[%s2 + $0xa0] sm:$0xf]
      %v2987 = vld [vmem:[%s2 + $0xa4] sm:$0xf]
      %v2988 = vld [vmem:[%s2 + $0xa8] sm:$0xf]
      %v2989 = vld [vmem:[%s2 + $0xac] sm:$0xf]
      %v2990 = vld [vmem:[%s2 + $0xb0] sm:$0xf]
      %v2991 = vld [vmem:[%s2 + $0xb4] sm:$0xf]
      %v2992 = vld [vmem:[%s2 + $0xb8] sm:$0xf]
      %v2993 = vld [vmem:[%s2 + $0xbc] sm:$0xf]
      %v3090 = vunpack.c.l.b16 %v2850
      %v3091 = vunpack.c.h.b16 %v2850
      %v3092 = vunpack.c.l.b16 %v2851
      %v3093 = vunpack.c.l.b16 %v2852
      %v3094 = vunpack.c.h.b16 %v2852
      %v3095 = vunpack.c.l.b16 %v2853
      %v3096 = vunpack.c.l.b16 %v2854
      %v3097 = vunpack.c.h.b16 %v2854
      %v3098 = vunpack.c.l.b16 %v2855
      %v3099 = vunpack.c.l.b16 %v2856
      %v3100 = vunpack.c.h.b16 %v2856
      %v3101 = vunpack.c.l.b16 %v2857
      %v3102 = vunpack.c.l.b16 %v2858
      %v3103 = vunpack.c.h.b16 %v2858
      %v3104 = vunpack.c.l.b16 %v2859
      %v3105 = vunpack.c.l.b16 %v2860
      %v3106 = vunpack.c.h.b16 %v2860
      %v3107 = vunpack.c.l.b16 %v2861
      %v3108 = vunpack.c.l.b16 %v2862
      %v3109 = vunpack.c.h.b16 %v2862
      %v3110 = vunpack.c.l.b16 %v2863
      %v3111 = vunpack.c.l.b16 %v2864
      %v3112 = vunpack.c.h.b16 %v2864
      %v3113 = vunpack.c.l.b16 %v2865
      %v3114 = vunpack.c.l.b16 %v2866
      %v3115 = vunpack.c.h.b16 %v2866
      %v3116 = vunpack.c.l.b16 %v2867
      %v3117 = vunpack.c.l.b16 %v2868
      %v3118 = vunpack.c.h.b16 %v2868
      %v3119 = vunpack.c.l.b16 %v2869
      %v3120 = vunpack.c.l.b16 %v2870
      %v3121 = vunpack.c.h.b16 %v2870
      %v3122 = vunpack.c.l.b16 %v2871
      %v3123 = vunpack.c.l.b16 %v2872
      %v3124 = vunpack.c.h.b16 %v2872
      %v3125 = vunpack.c.l.b16 %v2873
      %v3126 = vunpack.c.l.b16 %v2874
      %v3127 = vunpack.c.h.b16 %v2874
      %v3128 = vunpack.c.l.b16 %v2875
      %v3129 = vunpack.c.l.b16 %v2876
      %v3130 = vunpack.c.h.b16 %v2876
      %v3131 = vunpack.c.l.b16 %v2877
      %v3132 = vunpack.c.l.b16 %v2878
      %v3133 = vunpack.c.h.b16 %v2878
      %v3134 = vunpack.c.l.b16 %v2879
      %v3135 = vunpack.c.l.b16 %v2880
      %v3136 = vunpack.c.h.b16 %v2880
      %v3137 = vunpack.c.l.b16 %v2881
      %v3138 = vunpack.c.l.b16 %v2882
      %v3139 = vunpack.c.h.b16 %v2882
      %v3140 = vunpack.c.l.b16 %v2883
      %v3141 = vunpack.c.l.b16 %v2884
      %v3142 = vunpack.c.h.b16 %v2884
      %v3143 = vunpack.c.l.b16 %v2885
      %v3144 = vunpack.c.l.b16 %v2886
      %v3145 = vunpack.c.h.b16 %v2886
      %v3146 = vunpack.c.l.b16 %v2887
      %v3147 = vunpack.c.l.b16 %v2888
      %v3148 = vunpack.c.h.b16 %v2888
      %v3149 = vunpack.c.l.b16 %v2889
      %v3150 = vunpack.c.l.b16 %v2890
      %v3151 = vunpack.c.h.b16 %v2890
      %v3152 = vunpack.c.l.b16 %v2891
      %v3153 = vunpack.c.l.b16 %v2892
      %v3154 = vunpack.c.h.b16 %v2892
      %v3155 = vunpack.c.l.b16 %v2893
      %v3156 = vunpack.c.l.b16 %v2894
      %v3157 = vunpack.c.h.b16 %v2894
      %v3158 = vunpack.c.l.b16 %v2895
      %v3159 = vunpack.c.l.b16 %v2896
      %v3160 = vunpack.c.h.b16 %v2896
      %v3161 = vunpack.c.l.b16 %v2897
      %v3162 = vunpack.c.l.b16 %v2898
      %v3163 = vunpack.c.h.b16 %v2898
      %v3164 = vunpack.c.l.b16 %v2899
      %v3165 = vunpack.c.l.b16 %v2900
      %v3166 = vunpack.c.h.b16 %v2900
      %v3167 = vunpack.c.l.b16 %v2901
      %v3168 = vunpack.c.l.b16 %v2902
      %v3169 = vunpack.c.h.b16 %v2902
      %v3170 = vunpack.c.l.b16 %v2903
      %v3171 = vunpack.c.l.b16 %v2904
      %v3172 = vunpack.c.h.b16 %v2904
      %v3173 = vunpack.c.l.b16 %v2905
      %v3174 = vunpack.c.l.b16 %v2906
      %v3175 = vunpack.c.h.b16 %v2906
      %v3176 = vunpack.c.l.b16 %v2907
      %v3177 = vunpack.c.l.b16 %v2908
      %v3178 = vunpack.c.h.b16 %v2908
      %v3179 = vunpack.c.l.b16 %v2909
      %v3180 = vunpack.c.l.b16 %v2910
      %v3181 = vunpack.c.h.b16 %v2910
      %v3182 = vunpack.c.l.b16 %v2911
      %v3183 = vunpack.c.l.b16 %v2912
      %v3184 = vunpack.c.h.b16 %v2912
      %v3185 = vunpack.c.l.b16 %v2913
      %v3186 = vunpack.c.l.b16 %v2914
      %v3187 = vunpack.c.h.b16 %v2914
      %v3188 = vunpack.c.l.b16 %v2915
      %v3189 = vunpack.c.l.b16 %v2916
      %v3190 = vunpack.c.h.b16 %v2916
      %v3191 = vunpack.c.l.b16 %v2917
      %v3192 = vunpack.c.l.b16 %v2918
      %v3193 = vunpack.c.h.b16 %v2918
      %v3194 = vunpack.c.l.b16 %v2919
      %v3195 = vunpack.c.l.b16 %v2920
      %v3196 = vunpack.c.h.b16 %v2920
      %v3197 = vunpack.c.l.b16 %v2921
      %v3198 = vunpack.c.l.b16 %v2922
      %v3199 = vunpack.c.h.b16 %v2922
      %v3200 = vunpack.c.l.b16 %v2923
      %v3201 = vunpack.c.l.b16 %v2924
      %v3202 = vunpack.c.h.b16 %v2924
      %v3203 = vunpack.c.l.b16 %v2925
      %v3204 = vunpack.c.l.b16 %v2926
      %v3205 = vunpack.c.h.b16 %v2926
      %v3206 = vunpack.c.l.b16 %v2927
      %v3207 = vunpack.c.l.b16 %v2928
      %v3208 = vunpack.c.h.b16 %v2928
      %v3209 = vunpack.c.l.b16 %v2929
      %v3210 = vunpack.c.l.b16 %v2930
      %v3211 = vunpack.c.h.b16 %v2930
      %v3212 = vunpack.c.l.b16 %v2931
      %v3213 = vunpack.c.l.b16 %v2932
      %v3214 = vunpack.c.h.b16 %v2932
      %v3215 = vunpack.c.l.b16 %v2933
      %v3216 = vunpack.c.l.b16 %v2934
      %v3217 = vunpack.c.h.b16 %v2934
      %v3218 = vunpack.c.l.b16 %v2935
      %v3219 = vunpack.c.l.b16 %v2936
      %v3220 = vunpack.c.h.b16 %v2936
      %v3221 = vunpack.c.l.b16 %v2937
      %v3222 = vunpack.c.l.b16 %v2938
      %v3223 = vunpack.c.h.b16 %v2938
      %v3224 = vunpack.c.l.b16 %v2939
      %v3225 = vunpack.c.l.b16 %v2940
      %v3226 = vunpack.c.h.b16 %v2940
      %v3227 = vunpack.c.l.b16 %v2941
      %v3228 = vunpack.c.l.b16 %v2942
      %v3229 = vunpack.c.h.b16 %v2942
      %v3230 = vunpack.c.l.b16 %v2943
      %v3231 = vunpack.c.l.b16 %v2944
      %v3232 = vunpack.c.h.b16 %v2944
      %v3233 = vunpack.c.l.b16 %v2945
      %v3234 = vpack.c.b16 %v3093, %v3090
      %v3235 = vpack.c.b16 %v3094, %v3091
      %v3236 = vpack.c.b16 %v3095, %v3092
      %v3237 = vpack.c.b16 %v3099, %v3096
      %v3238 = vpack.c.b16 %v3100, %v3097
      %v3239 = vpack.c.b16 %v3101, %v3098
      %v3240 = vpack.c.b16 %v3105, %v3102
      %v3241 = vpack.c.b16 %v3106, %v3103
      %v3242 = vpack.c.b16 %v3107, %v3104
      %v3243 = vpack.c.b16 %v3111, %v3108
      %v3244 = vpack.c.b16 %v3112, %v3109
      %v3245 = vpack.c.b16 %v3113, %v3110
      %v3246 = vpack.c.b16 %v3117, %v3114
      %v3247 = vpack.c.b16 %v3118, %v3115
      %v3248 = vpack.c.b16 %v3119, %v3116
      %v3249 = vpack.c.b16 %v3123, %v3120
      %v3250 = vpack.c.b16 %v3124, %v3121
      %v3251 = vpack.c.b16 %v3125, %v3122
      %v3252 = vpack.c.b16 %v3129, %v3126
      %v3253 = vpack.c.b16 %v3130, %v3127
      %v3254 = vpack.c.b16 %v3131, %v3128
      %v3255 = vpack.c.b16 %v3135, %v3132
      %v3256 = vpack.c.b16 %v3136, %v3133
      %v3257 = vpack.c.b16 %v3137, %v3134
      %v3258 = vpack.c.b16 %v3141, %v3138
      %v3259 = vpack.c.b16 %v3142, %v3139
      %v3260 = vpack.c.b16 %v3143, %v3140
      %v3261 = vpack.c.b16 %v3147, %v3144
      %v3262 = vpack.c.b16 %v3148, %v3145
      %v3263 = vpack.c.b16 %v3149, %v3146
      %v3264 = vpack.c.b16 %v3153, %v3150
      %v3265 = vpack.c.b16 %v3154, %v3151
      %v3266 = vpack.c.b16 %v3155, %v3152
      %v3267 = vpack.c.b16 %v3159, %v3156
      %v3268 = vpack.c.b16 %v3160, %v3157
      %v3269 = vpack.c.b16 %v3161, %v3158
      %v3270 = vpack.c.b16 %v3165, %v3162
      %v3271 = vpack.c.b16 %v3166, %v3163
      %v3272 = vpack.c.b16 %v3167, %v3164
      %v3273 = vpack.c.b16 %v3171, %v3168
      %v3274 = vpack.c.b16 %v3172, %v3169
      %v3275 = vpack.c.b16 %v3173, %v3170
      %v3276 = vpack.c.b16 %v3177, %v3174
      %v3277 = vpack.c.b16 %v3178, %v3175
      %v3278 = vpack.c.b16 %v3179, %v3176
      %v3279 = vpack.c.b16 %v3183, %v3180
      %v3280 = vpack.c.b16 %v3184, %v3181
      %v3281 = vpack.c.b16 %v3185, %v3182
      %v3282 = vpack.c.b16 %v3189, %v3186
      %v3283 = vpack.c.b16 %v3190, %v3187
      %v3284 = vpack.c.b16 %v3191, %v3188
      %v3285 = vpack.c.b16 %v3195, %v3192
      %v3286 = vpack.c.b16 %v3196, %v3193
      %v3287 = vpack.c.b16 %v3197, %v3194
      %v3288 = vpack.c.b16 %v3201, %v3198
      %v3289 = vpack.c.b16 %v3202, %v3199
      %v3290 = vpack.c.b16 %v3203, %v3200
      %v3291 = vpack.c.b16 %v3207, %v3204
      %v3292 = vpack.c.b16 %v3208, %v3205
      %v3293 = vpack.c.b16 %v3209, %v3206
      %v3294 = vpack.c.b16 %v3213, %v3210
      %v3295 = vpack.c.b16 %v3214, %v3211
      %v3296 = vpack.c.b16 %v3215, %v3212
      %v3297 = vpack.c.b16 %v3219, %v3216
      %v3298 = vpack.c.b16 %v3220, %v3217
      %v3299 = vpack.c.b16 %v3221, %v3218
      %v3300 = vpack.c.b16 %v3225, %v3222
      %v3301 = vpack.c.b16 %v3226, %v3223
      %v3302 = vpack.c.b16 %v3227, %v3224
      %v3303 = vpack.c.b16 %v3231, %v3228
      %v3304 = vpack.c.b16 %v3232, %v3229
      %v3305 = vpack.c.b16 %v3233, %v3230
      %v3426 = vunpack.c.l.b16 %v2946
      %v3427 = vunpack.c.l.b16 %v2947
      %v3428 = vunpack.c.l.b16 %v2948
      %v3429 = vunpack.c.l.b16 %v2949
      %v3430 = vunpack.c.l.b16 %v2950
      %v3431 = vunpack.c.l.b16 %v2951
      %v3432 = vunpack.c.l.b16 %v2952
      %v3433 = vunpack.c.l.b16 %v2953
      %v3434 = vunpack.c.l.b16 %v2954
      %v3435 = vunpack.c.l.b16 %v2955
      %v3436 = vunpack.c.l.b16 %v2956
      %v3437 = vunpack.c.l.b16 %v2957
      %v3438 = vunpack.c.l.b16 %v2958
      %v3439 = vunpack.c.l.b16 %v2959
      %v3440 = vunpack.c.l.b16 %v2960
      %v3441 = vunpack.c.l.b16 %v2961
      %v3442 = vunpack.c.l.b16 %v2962
      %v3443 = vunpack.c.l.b16 %v2963
      %v3444 = vunpack.c.l.b16 %v2964
      %v3445 = vunpack.c.l.b16 %v2965
      %v3446 = vunpack.c.l.b16 %v2966
      %v3447 = vunpack.c.l.b16 %v2967
      %v3448 = vunpack.c.l.b16 %v2968
      %v3449 = vunpack.c.l.b16 %v2969
      %v3450 = vunpack.c.l.b16 %v2970
      %v3451 = vunpack.c.l.b16 %v2971
      %v3452 = vunpack.c.l.b16 %v2972
      %v3453 = vunpack.c.l.b16 %v2973
      %v3454 = vunpack.c.l.b16 %v2974
      %v3455 = vunpack.c.l.b16 %v2975
      %v3456 = vunpack.c.l.b16 %v2976
      %v3457 = vunpack.c.l.b16 %v2977
      %v3458 = vunpack.c.l.b16 %v2978
      %v3459 = vunpack.c.l.b16 %v2979
      %v3460 = vunpack.c.l.b16 %v2980
      %v3461 = vunpack.c.l.b16 %v2981
      %v3462 = vunpack.c.l.b16 %v2982
      %v3463 = vunpack.c.l.b16 %v2983
      %v3464 = vunpack.c.l.b16 %v2984
      %v3465 = vunpack.c.l.b16 %v2985
      %v3466 = vunpack.c.l.b16 %v2986
      %v3467 = vunpack.c.l.b16 %v2987
      %v3468 = vunpack.c.l.b16 %v2988
      %v3469 = vunpack.c.l.b16 %v2989
      %v3470 = vunpack.c.l.b16 %v2990
      %v3471 = vunpack.c.l.b16 %v2991
      %v3472 = vunpack.c.l.b16 %v2992
      %v3473 = vunpack.c.l.b16 %v2993
      %v3474 = vpack.c.b16 %v3427, %v3426
      %v3475 = vpack.c.b16 %v3429, %v3428
      %v3476 = vpack.c.b16 %v3431, %v3430
      %v3477 = vpack.c.b16 %v3433, %v3432
      %v3478 = vpack.c.b16 %v3435, %v3434
      %v3479 = vpack.c.b16 %v3437, %v3436
      %v3480 = vpack.c.b16 %v3439, %v3438
      %v3481 = vpack.c.b16 %v3441, %v3440
      %v3482 = vpack.c.b16 %v3443, %v3442
      %v3483 = vpack.c.b16 %v3445, %v3444
      %v3484 = vpack.c.b16 %v3447, %v3446
      %v3485 = vpack.c.b16 %v3449, %v3448
      %v3486 = vpack.c.b16 %v3451, %v3450
      %v3487 = vpack.c.b16 %v3453, %v3452
      %v3488 = vpack.c.b16 %v3455, %v3454
      %v3489 = vpack.c.b16 %v3457, %v3456
      %v3490 = vpack.c.b16 %v3459, %v3458
      %v3491 = vpack.c.b16 %v3461, %v3460
      %v3492 = vpack.c.b16 %v3463, %v3462
      %v3493 = vpack.c.b16 %v3465, %v3464
      %v3494 = vpack.c.b16 %v3467, %v3466
      %v3495 = vpack.c.b16 %v3469, %v3468
      %v3496 = vpack.c.b16 %v3471, %v3470
      %v3497 = vpack.c.b16 %v3473, %v3472
      %3522 = vmatpush.bf16.msra.mxu0 %v3481
      %3523 = vmatpush.bf16.msra.mxu0 %v3480
      %3524 = vmatpush.bf16.msra.mxu0 %v3479
      %3525 = vmatpush.bf16.msra.mxu0 %v3478
      %3526 = vmatpush.bf16.msra.mxu0 %v3477
      %3527 = vmatpush.bf16.msra.mxu0 %v3476
      %3528 = vmatpush.bf16.msra.mxu0 %v3475
      %3529 = vmatpush.bf16.msra.mxu0 %v3474
      %3530 = vmatmul.bf16.gmra.mxu0 %v3234
      %v3531 = vpop.f32.mrf.mxu0
      %v3532 = vadd.f32 0.0, %v3531
      %v3533 = vpop.f32.mrf.mxu0
      %v3534 = vadd.f32 0.0, %v3533
      %3535 = vmatmul.bf16.gmra.mxu0 %v3237
      %v3536 = vpop.f32.mrf.mxu0
      %v3537 = vadd.f32 0.0, %v3536
      %v3538 = vpop.f32.mrf.mxu0
      %v3539 = vadd.f32 0.0, %v3538
      %3540 = vmatmul.bf16.gmra.mxu0 %v3240
      %v3541 = vpop.f32.mrf.mxu0
      %v3542 = vadd.f32 0.0, %v3541
      %v3543 = vpop.f32.mrf.mxu0
      %v3544 = vadd.f32 0.0, %v3543
      %3545 = vmatmul.bf16.gmra.mxu0 %v3243
      %v3546 = vpop.f32.mrf.mxu0
      %v3547 = vadd.f32 0.0, %v3546
      %v3548 = vpop.f32.mrf.mxu0
      %v3549 = vadd.f32 0.0, %v3548
      %3550 = vmatmul.bf16.gmra.mxu0 %v3246
      %v3551 = vpop.f32.mrf.mxu0
      %v3552 = vadd.f32 0.0, %v3551
      %v3553 = vpop.f32.mrf.mxu0
      %v3554 = vadd.f32 0.0, %v3553
      %3555 = vmatmul.bf16.gmra.mxu0 %v3249
      %v3556 = vpop.f32.mrf.mxu0
      %v3557 = vadd.f32 0.0, %v3556
      %v3558 = vpop.f32.mrf.mxu0
      %v3559 = vadd.f32 0.0, %v3558
      %3560 = vmatmul.bf16.gmra.mxu0 %v3252
      %v3561 = vpop.f32.mrf.mxu0
      %v3562 = vadd.f32 0.0, %v3561
      %v3563 = vpop.f32.mrf.mxu0
      %v3564 = vadd.f32 0.0, %v3563
      %3565 = vmatmul.bf16.gmra.mxu0 %v3255
      %v3566 = vpop.f32.mrf.mxu0
      %v3567 = vadd.f32 0.0, %v3566
      %v3568 = vpop.f32.mrf.mxu0
      %v3569 = vadd.f32 0.0, %v3568
      %3570 = vmatmul.bf16.gmra.mxu0 %v3258
      %v3571 = vpop.f32.mrf.mxu0
      %v3572 = vadd.f32 0.0, %v3571
      %v3573 = vpop.f32.mrf.mxu0
      %v3574 = vadd.f32 0.0, %v3573
      %3575 = vmatmul.bf16.gmra.mxu0 %v3261
      %v3576 = vpop.f32.mrf.mxu0
      %v3577 = vadd.f32 0.0, %v3576
      %v3578 = vpop.f32.mrf.mxu0
      %v3579 = vadd.f32 0.0, %v3578
      %3580 = vmatmul.bf16.gmra.mxu0 %v3264
      %v3581 = vpop.f32.mrf.mxu0
      %v3582 = vadd.f32 0.0, %v3581
      %v3583 = vpop.f32.mrf.mxu0
      %v3584 = vadd.f32 0.0, %v3583
      %3585 = vmatmul.bf16.gmra.mxu0 %v3267
      %v3586 = vpop.f32.mrf.mxu0
      %v3587 = vadd.f32 0.0, %v3586
      %v3588 = vpop.f32.mrf.mxu0
      %v3589 = vadd.f32 0.0, %v3588
      %3590 = vmatmul.bf16.gmra.mxu0 %v3270
      %v3591 = vpop.f32.mrf.mxu0
      %v3592 = vadd.f32 0.0, %v3591
      %v3593 = vpop.f32.mrf.mxu0
      %v3594 = vadd.f32 0.0, %v3593
      %3595 = vmatmul.bf16.gmra.mxu0 %v3273
      %v3596 = vpop.f32.mrf.mxu0
      %v3597 = vadd.f32 0.0, %v3596
      %v3598 = vpop.f32.mrf.mxu0
      %v3599 = vadd.f32 0.0, %v3598
      %3600 = vmatmul.bf16.gmra.mxu0 %v3276
      %v3601 = vpop.f32.mrf.mxu0
      %v3602 = vadd.f32 0.0, %v3601
      %v3603 = vpop.f32.mrf.mxu0
      %v3604 = vadd.f32 0.0, %v3603
      %3605 = vmatmul.bf16.gmra.mxu0 %v3279
      %v3606 = vpop.f32.mrf.mxu0
      %v3607 = vadd.f32 0.0, %v3606
      %v3608 = vpop.f32.mrf.mxu0
      %v3609 = vadd.f32 0.0, %v3608
      %3610 = vmatmul.bf16.gmra.mxu0 %v3282
      %v3611 = vpop.f32.mrf.mxu0
      %v3612 = vadd.f32 0.0, %v3611
      %v3613 = vpop.f32.mrf.mxu0
      %v3614 = vadd.f32 0.0, %v3613
      %3615 = vmatmul.bf16.gmra.mxu0 %v3285
      %v3616 = vpop.f32.mrf.mxu0
      %v3617 = vadd.f32 0.0, %v3616
      %v3618 = vpop.f32.mrf.mxu0
      %v3619 = vadd.f32 0.0, %v3618
      %3620 = vmatmul.bf16.gmra.mxu0 %v3288
      %v3621 = vpop.f32.mrf.mxu0
      %v3622 = vadd.f32 0.0, %v3621
      %v3623 = vpop.f32.mrf.mxu0
      %v3624 = vadd.f32 0.0, %v3623
      %3625 = vmatmul.bf16.gmra.mxu0 %v3291
      %v3626 = vpop.f32.mrf.mxu0
      %v3627 = vadd.f32 0.0, %v3626
      %v3628 = vpop.f32.mrf.mxu0
      %v3629 = vadd.f32 0.0, %v3628
      %3630 = vmatmul.bf16.gmra.mxu0 %v3294
      %v3631 = vpop.f32.mrf.mxu0
      %v3632 = vadd.f32 0.0, %v3631
      %v3633 = vpop.f32.mrf.mxu0
      %v3634 = vadd.f32 0.0, %v3633
      %3635 = vmatmul.bf16.gmra.mxu0 %v3297
      %v3636 = vpop.f32.mrf.mxu0
      %v3637 = vadd.f32 0.0, %v3636
      %v3638 = vpop.f32.mrf.mxu0
      %v3639 = vadd.f32 0.0, %v3638
      %3640 = vmatmul.bf16.gmra.mxu0 %v3300
      %v3641 = vpop.f32.mrf.mxu0
      %v3642 = vadd.f32 0.0, %v3641
      %v3643 = vpop.f32.mrf.mxu0
      %v3644 = vadd.f32 0.0, %v3643
      %3645 = vmatmul.bf16.gmra.mxu0 %v3303
      %v3646 = vpop.f32.mrf.mxu0
      %v3647 = vadd.f32 0.0, %v3646
      %v3648 = vpop.f32.mrf.mxu0
      %v3649 = vadd.f32 0.0, %v3648
      %3650 = vdwg.mxu0
      %3651 = vmatpush.bf16.msra.mxu0 %v3489
      %3652 = vmatpush.bf16.msra.mxu0 %v3488
      %3653 = vmatpush.bf16.msra.mxu0 %v3487
      %3654 = vmatpush.bf16.msra.mxu0 %v3486
      %3655 = vmatpush.bf16.msra.mxu0 %v3485
      %3656 = vmatpush.bf16.msra.mxu0 %v3484
      %3657 = vmatpush.bf16.msra.mxu0 %v3483
      %3658 = vmatpush.bf16.msra.mxu0 %v3482
      %3659 = vmatmul.bf16.gmra.mxu0 %v3235
      %v3660 = vpop.f32.mrf.mxu0
      %v3661 = vadd.f32 %v3532, %v3660
      %v3662 = vpop.f32.mrf.mxu0
      %v3663 = vadd.f32 %v3534, %v3662
      %3664 = vmatmul.bf16.gmra.mxu0 %v3238
      %v3665 = vpop.f32.mrf.mxu0
      %v3666 = vadd.f32 %v3537, %v3665
      %v3667 = vpop.f32.mrf.mxu0
      %v3668 = vadd.f32 %v3539, %v3667
      %3669 = vmatmul.bf16.gmra.mxu0 %v3241
      %v3670 = vpop.f32.mrf.mxu0
      %v3671 = vadd.f32 %v3542, %v3670
      %v3672 = vpop.f32.mrf.mxu0
      %v3673 = vadd.f32 %v3544, %v3672
      %3674 = vmatmul.bf16.gmra.mxu0 %v3244
      %v3675 = vpop.f32.mrf.mxu0
      %v3676 = vadd.f32 %v3547, %v3675
      %v3677 = vpop.f32.mrf.mxu0
      %v3678 = vadd.f32 %v3549, %v3677
      %3679 = vmatmul.bf16.gmra.mxu0 %v3247
      %v3680 = vpop.f32.mrf.mxu0
      %v3681 = vadd.f32 %v3552, %v3680
      %v3682 = vpop.f32.mrf.mxu0
      %v3683 = vadd.f32 %v3554, %v3682
      %3684 = vmatmul.bf16.gmra.mxu0 %v3250
      %v3685 = vpop.f32.mrf.mxu0
      %v3686 = vadd.f32 %v3557, %v3685
      %v3687 = vpop.f32.mrf.mxu0
      %v3688 = vadd.f32 %v3559, %v3687
      %3689 = vmatmul.bf16.gmra.mxu0 %v3253
      %v3690 = vpop.f32.mrf.mxu0
      %v3691 = vadd.f32 %v3562, %v3690
      %v3692 = vpop.f32.mrf.mxu0
      %v3693 = vadd.f32 %v3564, %v3692
      %3694 = vmatmul.bf16.gmra.mxu0 %v3256
      %v3695 = vpop.f32.mrf.mxu0
      %v3696 = vadd.f32 %v3567, %v3695
      %v3697 = vpop.f32.mrf.mxu0
      %v3698 = vadd.f32 %v3569, %v3697
      %3699 = vmatmul.bf16.gmra.mxu0 %v3259
      %v3700 = vpop.f32.mrf.mxu0
      %v3701 = vadd.f32 %v3572, %v3700
      %v3702 = vpop.f32.mrf.mxu0
      %v3703 = vadd.f32 %v3574, %v3702
      %3704 = vmatmul.bf16.gmra.mxu0 %v3262
      %v3705 = vpop.f32.mrf.mxu0
      %v3706 = vadd.f32 %v3577, %v3705
      %v3707 = vpop.f32.mrf.mxu0
      %v3708 = vadd.f32 %v3579, %v3707
      %3709 = vmatmul.bf16.gmra.mxu0 %v3265
      %v3710 = vpop.f32.mrf.mxu0
      %v3711 = vadd.f32 %v3582, %v3710
      %v3712 = vpop.f32.mrf.mxu0
      %v3713 = vadd.f32 %v3584, %v3712
      %3714 = vmatmul.bf16.gmra.mxu0 %v3268
      %v3715 = vpop.f32.mrf.mxu0
      %v3716 = vadd.f32 %v3587, %v3715
      %v3717 = vpop.f32.mrf.mxu0
      %v3718 = vadd.f32 %v3589, %v3717
      %3719 = vmatmul.bf16.gmra.mxu0 %v3271
      %v3720 = vpop.f32.mrf.mxu0
      %v3721 = vadd.f32 %v3592, %v3720
      %v3722 = vpop.f32.mrf.mxu0
      %v3723 = vadd.f32 %v3594, %v3722
      %3724 = vmatmul.bf16.gmra.mxu0 %v3274
      %v3725 = vpop.f32.mrf.mxu0
      %v3726 = vadd.f32 %v3597, %v3725
      %v3727 = vpop.f32.mrf.mxu0
      %v3728 = vadd.f32 %v3599, %v3727
      %3729 = vmatmul.bf16.gmra.mxu0 %v3277
      %v3730 = vpop.f32.mrf.mxu0
      %v3731 = vadd.f32 %v3602, %v3730
      %v3732 = vpop.f32.mrf.mxu0
      %v3733 = vadd.f32 %v3604, %v3732
      %3734 = vmatmul.bf16.gmra.mxu0 %v3280
      %v3735 = vpop.f32.mrf.mxu0
      %v3736 = vadd.f32 %v3607, %v3735
      %v3737 = vpop.f32.mrf.mxu0
      %v3738 = vadd.f32 %v3609, %v3737
      %3739 = vmatmul.bf16.gmra.mxu0 %v3283
      %v3740 = vpop.f32.mrf.mxu0
      %v3741 = vadd.f32 %v3612, %v3740
      %v3742 = vpop.f32.mrf.mxu0
      %v3743 = vadd.f32 %v3614, %v3742
      %3744 = vmatmul.bf16.gmra.mxu0 %v3286
      %v3745 = vpop.f32.mrf.mxu0
      %v3746 = vadd.f32 %v3617, %v3745
      %v3747 = vpop.f32.mrf.mxu0
      %v3748 = vadd.f32 %v3619, %v3747
      %3749 = vmatmul.bf16.gmra.mxu0 %v3289
      %v3750 = vpop.f32.mrf.mxu0
      %v3751 = vadd.f32 %v3622, %v3750
      %v3752 = vpop.f32.mrf.mxu0
      %v3753 = vadd.f32 %v3624, %v3752
      %3754 = vmatmul.bf16.gmra.mxu0 %v3292
      %v3755 = vpop.f32.mrf.mxu0
      %v3756 = vadd.f32 %v3627, %v3755
      %v3757 = vpop.f32.mrf.mxu0
      %v3758 = vadd.f32 %v3629, %v3757
      %3759 = vmatmul.bf16.gmra.mxu0 %v3295
      %v3760 = vpop.f32.mrf.mxu0
      %v3761 = vadd.f32 %v3632, %v3760
      %v3762 = vpop.f32.mrf.mxu0
      %v3763 = vadd.f32 %v3634, %v3762
      %3764 = vmatmul.bf16.gmra.mxu0 %v3298
      %v3765 = vpop.f32.mrf.mxu0
      %v3766 = vadd.f32 %v3637, %v3765
      %v3767 = vpop.f32.mrf.mxu0
      %v3768 = vadd.f32 %v3639, %v3767
      %3769 = vmatmul.bf16.gmra.mxu0 %v3301
      %v3770 = vpop.f32.mrf.mxu0
      %v3771 = vadd.f32 %v3642, %v3770
      %v3772 = vpop.f32.mrf.mxu0
      %v3773 = vadd.f32 %v3644, %v3772
      %3774 = vmatmul.bf16.gmra.mxu0 %v3304
      %v3775 = vpop.f32.mrf.mxu0
      %v3776 = vadd.f32 %v3647, %v3775
      %v3777 = vpop.f32.mrf.mxu0
      %v3778 = vadd.f32 %v3649, %v3777
      %3779 = vdwg.mxu0
      %3780 = vmatpush.bf16.msra.mxu0 %v3497
      %3781 = vmatpush.bf16.msra.mxu0 %v3496
      %3782 = vmatpush.bf16.msra.mxu0 %v3495
      %3783 = vmatpush.bf16.msra.mxu0 %v3494
      %3784 = vmatpush.bf16.msra.mxu0 %v3493
      %3785 = vmatpush.bf16.msra.mxu0 %v3492
      %3786 = vmatpush.bf16.msra.mxu0 %v3491
      %3787 = vmatpush.bf16.msra.mxu0 %v3490
      %3788 = vmatmul.bf16.gmra.mxu0 %v3236
      %v3789 = vpop.f32.mrf.mxu0
      %v3790 = vadd.f32 %v3661, %v3789
      %v3791 = vpop.f32.mrf.mxu0
      %v3792 = vadd.f32 %v3663, %v3791
      %3793 = vmatmul.bf16.gmra.mxu0 %v3239
      %v3794 = vpop.f32.mrf.mxu0
      %v3795 = vadd.f32 %v3666, %v3794
      %v3796 = vpop.f32.mrf.mxu0
      %v3797 = vadd.f32 %v3668, %v3796
      %3798 = vmatmul.bf16.gmra.mxu0 %v3242
      %v3799 = vpop.f32.mrf.mxu0
      %v3800 = vadd.f32 %v3671, %v3799
      %v3801 = vpop.f32.mrf.mxu0
      %v3802 = vadd.f32 %v3673, %v3801
      %3803 = vmatmul.bf16.gmra.mxu0 %v3245
      %v3804 = vpop.f32.mrf.mxu0
      %v3805 = vadd.f32 %v3676, %v3804
      %v3806 = vpop.f32.mrf.mxu0
      %v3807 = vadd.f32 %v3678, %v3806
      %3808 = vmatmul.bf16.gmra.mxu0 %v3248
      %v3809 = vpop.f32.mrf.mxu0
      %v3810 = vadd.f32 %v3681, %v3809
      %v3811 = vpop.f32.mrf.mxu0
      %v3812 = vadd.f32 %v3683, %v3811
      %3813 = vmatmul.bf16.gmra.mxu0 %v3251
      %v3814 = vpop.f32.mrf.mxu0
      %v3815 = vadd.f32 %v3686, %v3814
      %v3816 = vpop.f32.mrf.mxu0
      %v3817 = vadd.f32 %v3688, %v3816
      %3818 = vmatmul.bf16.gmra.mxu0 %v3254
      %v3819 = vpop.f32.mrf.mxu0
      %v3820 = vadd.f32 %v3691, %v3819
      %v3821 = vpop.f32.mrf.mxu0
      %v3822 = vadd.f32 %v3693, %v3821
      %3823 = vmatmul.bf16.gmra.mxu0 %v3257
      %v3824 = vpop.f32.mrf.mxu0
      %v3825 = vadd.f32 %v3696, %v3824
      %v3826 = vpop.f32.mrf.mxu0
      %v3827 = vadd.f32 %v3698, %v3826
      %3828 = vmatmul.bf16.gmra.mxu0 %v3260
      %v3829 = vpop.f32.mrf.mxu0
      %v3830 = vadd.f32 %v3701, %v3829
      %v3831 = vpop.f32.mrf.mxu0
      %v3832 = vadd.f32 %v3703, %v3831
      %3833 = vmatmul.bf16.gmra.mxu0 %v3263
      %v3834 = vpop.f32.mrf.mxu0
      %v3835 = vadd.f32 %v3706, %v3834
      %v3836 = vpop.f32.mrf.mxu0
      %v3837 = vadd.f32 %v3708, %v3836
      %3838 = vmatmul.bf16.gmra.mxu0 %v3266
      %v3839 = vpop.f32.mrf.mxu0
      %v3840 = vadd.f32 %v3711, %v3839
      %v3841 = vpop.f32.mrf.mxu0
      %v3842 = vadd.f32 %v3713, %v3841
      %3843 = vmatmul.bf16.gmra.mxu0 %v3269
      %v3844 = vpop.f32.mrf.mxu0
      %v3845 = vadd.f32 %v3716, %v3844
      %v3846 = vpop.f32.mrf.mxu0
      %v3847 = vadd.f32 %v3718, %v3846
      %3848 = vmatmul.bf16.gmra.mxu0 %v3272
      %v3849 = vpop.f32.mrf.mxu0
      %v3850 = vadd.f32 %v3721, %v3849
      %v3851 = vpop.f32.mrf.mxu0
      %v3852 = vadd.f32 %v3723, %v3851
      %3853 = vmatmul.bf16.gmra.mxu0 %v3275
      %v3854 = vpop.f32.mrf.mxu0
      %v3855 = vadd.f32 %v3726, %v3854
      %v3856 = vpop.f32.mrf.mxu0
      %v3857 = vadd.f32 %v3728, %v3856
      %3858 = vmatmul.bf16.gmra.mxu0 %v3278
      %v3859 = vpop.f32.mrf.mxu0
      %v3860 = vadd.f32 %v3731, %v3859
      %v3861 = vpop.f32.mrf.mxu0
      %v3862 = vadd.f32 %v3733, %v3861
      %3863 = vmatmul.bf16.gmra.mxu0 %v3281
      %v3864 = vpop.f32.mrf.mxu0
      %v3865 = vadd.f32 %v3736, %v3864
      %v3866 = vpop.f32.mrf.mxu0
      %v3867 = vadd.f32 %v3738, %v3866
      %3868 = vmatmul.bf16.gmra.mxu0 %v3284
      %v3869 = vpop.f32.mrf.mxu0
      %v3870 = vadd.f32 %v3741, %v3869
      %v3871 = vpop.f32.mrf.mxu0
      %v3872 = vadd.f32 %v3743, %v3871
      %3873 = vmatmul.bf16.gmra.mxu0 %v3287
      %v3874 = vpop.f32.mrf.mxu0
      %v3875 = vadd.f32 %v3746, %v3874
      %v3876 = vpop.f32.mrf.mxu0
      %v3877 = vadd.f32 %v3748, %v3876
      %3878 = vmatmul.bf16.gmra.mxu0 %v3290
      %v3879 = vpop.f32.mrf.mxu0
      %v3880 = vadd.f32 %v3751, %v3879
      %v3881 = vpop.f32.mrf.mxu0
      %v3882 = vadd.f32 %v3753, %v3881
      %3883 = vmatmul.bf16.gmra.mxu0 %v3293
      %v3884 = vpop.f32.mrf.mxu0
      %v3885 = vadd.f32 %v3756, %v3884
      %v3886 = vpop.f32.mrf.mxu0
      %v3887 = vadd.f32 %v3758, %v3886
      %3888 = vmatmul.bf16.gmra.mxu0 %v3296
      %v3889 = vpop.f32.mrf.mxu0
      %v3890 = vadd.f32 %v3761, %v3889
      %v3891 = vpop.f32.mrf.mxu0
      %v3892 = vadd.f32 %v3763, %v3891
      %3893 = vmatmul.bf16.gmra.mxu0 %v3299
      %v3894 = vpop.f32.mrf.mxu0
      %v3895 = vadd.f32 %v3766, %v3894
      %v3896 = vpop.f32.mrf.mxu0
      %v3897 = vadd.f32 %v3768, %v3896
      %3898 = vmatmul.bf16.gmra.mxu0 %v3302
      %v3899 = vpop.f32.mrf.mxu0
      %v3900 = vadd.f32 %v3771, %v3899
      %v3901 = vpop.f32.mrf.mxu0
      %v3902 = vadd.f32 %v3773, %v3901
      %3903 = vmatmul.bf16.gmra.mxu0 %v3305
      %v3904 = vpop.f32.mrf.mxu0
      %v3905 = vadd.f32 %v3776, %v3904
      %v3906 = vpop.f32.mrf.mxu0
      %v3907 = vadd.f32 %v3778, %v3906
      %3908 = vdwg.mxu0
      %v3909 = vadd.f32 %v2802, %v3790
      %v3910 = vadd.f32 %v2803, %v3792
      %v3911 = vadd.f32 %v2804, %v3795
      %v3912 = vadd.f32 %v2805, %v3797
      %v3913 = vadd.f32 %v2806, %v3800
      %v3914 = vadd.f32 %v2807, %v3802
      %v3915 = vadd.f32 %v2808, %v3805
      %v3916 = vadd.f32 %v2809, %v3807
      %v3917 = vadd.f32 %v2810, %v3810
      %v3918 = vadd.f32 %v2811, %v3812
      %v3919 = vadd.f32 %v2812, %v3815
      %v3920 = vadd.f32 %v2813, %v3817
      %v3921 = vadd.f32 %v2814, %v3820
      %v3922 = vadd.f32 %v2815, %v3822
      %v3923 = vadd.f32 %v2816, %v3825
      %v3924 = vadd.f32 %v2817, %v3827
      %v3925 = vadd.f32 %v2818, %v3830
      %v3926 = vadd.f32 %v2819, %v3832
      %v3927 = vadd.f32 %v2820, %v3835
      %v3928 = vadd.f32 %v2821, %v3837
      %v3929 = vadd.f32 %v2822, %v3840
      %v3930 = vadd.f32 %v2823, %v3842
      %v3931 = vadd.f32 %v2824, %v3845
      %v3932 = vadd.f32 %v2825, %v3847
      %v3933 = vadd.f32 %v2826, %v3850
      %v3934 = vadd.f32 %v2827, %v3852
      %v3935 = vadd.f32 %v2828, %v3855
      %v3936 = vadd.f32 %v2829, %v3857
      %v3937 = vadd.f32 %v2830, %v3860
      %v3938 = vadd.f32 %v2831, %v3862
      %v3939 = vadd.f32 %v2832, %v3865
      %v3940 = vadd.f32 %v2833, %v3867
      %v3941 = vadd.f32 %v2834, %v3870
      %v3942 = vadd.f32 %v2835, %v3872
      %v3943 = vadd.f32 %v2836, %v3875
      %v3944 = vadd.f32 %v2837, %v3877
      %v3945 = vadd.f32 %v2838, %v3880
      %v3946 = vadd.f32 %v2839, %v3882
      %v3947 = vadd.f32 %v2840, %v3885
      %v3948 = vadd.f32 %v2841, %v3887
      %v3949 = vadd.f32 %v2842, %v3890
      %v3950 = vadd.f32 %v2843, %v3892
      %v3951 = vadd.f32 %v2844, %v3895
      %v3952 = vadd.f32 %v2845, %v3897
      %v3953 = vadd.f32 %v2846, %v3900
      %v3954 = vadd.f32 %v2847, %v3902
      %v3955 = vadd.f32 %v2848, %v3905
      %v3956 = vadd.f32 %v2849, %v3907
      %3957 = vst [vmem:[#allocation2] sm:$0xff] %v3909
      %3958 = vst [vmem:[#allocation2 + $0x8] sm:$0xff] %v3910
      %3959 = vst [vmem:[#allocation2 + $0x10] sm:$0xff] %v3911
      %3960 = vst [vmem:[#allocation2 + $0x18] sm:$0xff] %v3912
      %3961 = vst [vmem:[#allocation2 + $0x20] sm:$0xff] %v3913
      %3962 = vst [vmem:[#allocation2 + $0x28] sm:$0xff] %v3914
      %3963 = vst [vmem:[#allocation2 + $0x30] sm:$0xff] %v3915
      %3964 = vst [vmem:[#allocation2 + $0x38] sm:$0xff] %v3916
      %3965 = vst [vmem:[#allocation2 + $0x40] sm:$0xff] %v3917
      %3966 = vst [vmem:[#allocation2 + $0x48] sm:$0xff] %v3918
      %3967 = vst [vmem:[#allocation2 + $0x50] sm:$0xff] %v3919
      %3968 = vst [vmem:[#allocation2 + $0x58] sm:$0xff] %v3920
      %3969 = vst [vmem:[#allocation2 + $0x60] sm:$0xff] %v3921
      %3970 = vst [vmem:[#allocation2 + $0x68] sm:$0xff] %v3922
      %3971 = vst [vmem:[#allocation2 + $0x70] sm:$0xff] %v3923
      %3972 = vst [vmem:[#allocation2 + $0x78] sm:$0xff] %v3924
      %3973 = vst [vmem:[#allocation2 + $0x80] sm:$0xff] %v3925
      %3974 = vst [vmem:[#allocation2 + $0x88] sm:$0xff] %v3926
      %3975 = vst [vmem:[#allocation2 + $0x90] sm:$0xff] %v3927
      %3976 = vst [vmem:[#allocation2 + $0x98] sm:$0xff] %v3928
      %3977 = vst [vmem:[#allocation2 + $0xa0] sm:$0xff] %v3929
      %3978 = vst [vmem:[#allocation2 + $0xa8] sm:$0xff] %v3930
      %3979 = vst [vmem:[#allocation2 + $0xb0] sm:$0xff] %v3931
      %3980 = vst [vmem:[#allocation2 + $0xb8] sm:$0xff] %v3932
      %3981 = vst [vmem:[#allocation2 + $0xc0] sm:$0xff] %v3933
      %3982 = vst [vmem:[#allocation2 + $0xc8] sm:$0xff] %v3934
      %3983 = vst [vmem:[#allocation2 + $0xd0] sm:$0xff] %v3935
      %3984 = vst [vmem:[#allocation2 + $0xd8] sm:$0xff] %v3936
      %3985 = vst [vmem:[#allocation2 + $0xe0] sm:$0xff] %v3937
      %3986 = vst [vmem:[#allocation2 + $0xe8] sm:$0xff] %v3938
      %3987 = vst [vmem:[#allocation2 + $0xf0] sm:$0xff] %v3939
      %3988 = vst [vmem:[#allocation2 + $0xf8] sm:$0xff] %v3940
      %3989 = vst [vmem:[#allocation2 + $0x100] sm:$0xff] %v3941
      %3990 = vst [vmem:[#allocation2 + $0x108] sm:$0xff] %v3942
      %3991 = vst [vmem:[#allocation2 + $0x110] sm:$0xff] %v3943
      %3992 = vst [vmem:[#allocation2 + $0x118] sm:$0xff] %v3944
      %3993 = vst [vmem:[#allocation2 + $0x120] sm:$0xff] %v3945
      %3994 = vst [vmem:[#allocation2 + $0x128] sm:$0xff] %v3946
      %3995 = vst [vmem:[#allocation2 + $0x130] sm:$0xff] %v3947
      %3996 = vst [vmem:[#allocation2 + $0x138] sm:$0xff] %v3948
      %3997 = vst [vmem:[#allocation2 + $0x140] sm:$0xff] %v3949
      %3998 = vst [vmem:[#allocation2 + $0x148] sm:$0xff] %v3950
      %3999 = vst [vmem:[#allocation2 + $0x150] sm:$0xff] %v3951
      %4000 = vst [vmem:[#allocation2 + $0x158] sm:$0xff] %v3952
      %4001 = vst [vmem:[#allocation2 + $0x160] sm:$0xff] %v3953
      %4002 = vst [vmem:[#allocation2 + $0x168] sm:$0xff] %v3954
      %4003 = vst [vmem:[#allocation2 + $0x170] sm:$0xff] %v3955
      %4004 = vst [vmem:[#allocation2 + $0x178] sm:$0xff] %v3956
      %v4005 = vld [vmem:[#allocation2] sm:$0xff]
      %v4006 = vld [vmem:[#allocation2 + $0x8] sm:$0xff]
      %v4007 = vld [vmem:[#allocation2 + $0x10] sm:$0xff]
      %v4008 = vld [vmem:[#allocation2 + $0x18] sm:$0xff]
      %v4009 = vld [vmem:[#allocation2 + $0x20] sm:$0xff]
      %v4010 = vld [vmem:[#allocation2 + $0x28] sm:$0xff]
      %v4011 = vld [vmem:[#allocation2 + $0x30] sm:$0xff]
      %v4012 = vld [vmem:[#allocation2 + $0x38] sm:$0xff]
      %v4013 = vld [vmem:[#allocation2 + $0x40] sm:$0xff]
      %v4014 = vld [vmem:[#allocation2 + $0x48] sm:$0xff]
      %v4015 = vld [vmem:[#allocation2 + $0x50] sm:$0xff]
      %v4016 = vld [vmem:[#allocation2 + $0x58] sm:$0xff]
      %v4017 = vld [vmem:[#allocation2 + $0x60] sm:$0xff]
      %v4018 = vld [vmem:[#allocation2 + $0x68] sm:$0xff]
      %v4019 = vld [vmem:[#allocation2 + $0x70] sm:$0xff]
      %v4020 = vld [vmem:[#allocation2 + $0x78] sm:$0xff]
      %v4021 = vld [vmem:[#allocation2 + $0x80] sm:$0xff]
      %v4022 = vld [vmem:[#allocation2 + $0x88] sm:$0xff]
      %v4023 = vld [vmem:[#allocation2 + $0x90] sm:$0xff]
      %v4024 = vld [vmem:[#allocation2 + $0x98] sm:$0xff]
      %v4025 = vld [vmem:[#allocation2 + $0xa0] sm:$0xff]
      %v4026 = vld [vmem:[#allocation2 + $0xa8] sm:$0xff]
      %v4027 = vld [vmem:[#allocation2 + $0xb0] sm:$0xff]
      %v4028 = vld [vmem:[#allocation2 + $0xb8] sm:$0xff]
      %v4029 = vld [vmem:[#allocation2 + $0xc0] sm:$0xff]
      %v4030 = vld [vmem:[#allocation2 + $0xc8] sm:$0xff]
      %v4031 = vld [vmem:[#allocation2 + $0xd0] sm:$0xff]
      %v4032 = vld [vmem:[#allocation2 + $0xd8] sm:$0xff]
      %v4033 = vld [vmem:[#allocation2 + $0xe0] sm:$0xff]
      %v4034 = vld [vmem:[#allocation2 + $0xe8] sm:$0xff]
      %v4035 = vld [vmem:[#allocation2 + $0xf0] sm:$0xff]
      %v4036 = vld [vmem:[#allocation2 + $0xf8] sm:$0xff]
      %v4037 = vld [vmem:[#allocation2 + $0x100] sm:$0xff]
      %v4038 = vld [vmem:[#allocation2 + $0x108] sm:$0xff]
      %v4039 = vld [vmem:[#allocation2 + $0x110] sm:$0xff]
      %v4040 = vld [vmem:[#allocation2 + $0x118] sm:$0xff]
      %v4041 = vld [vmem:[#allocation2 + $0x120] sm:$0xff]
      %v4042 = vld [vmem:[#allocation2 + $0x128] sm:$0xff]
      %v4043 = vld [vmem:[#allocation2 + $0x130] sm:$0xff]
      %v4044 = vld [vmem:[#allocation2 + $0x138] sm:$0xff]
      %v4045 = vld [vmem:[#allocation2 + $0x140] sm:$0xff]
      %v4046 = vld [vmem:[#allocation2 + $0x148] sm:$0xff]
      %v4047 = vld [vmem:[#allocation2 + $0x150] sm:$0xff]
      %v4048 = vld [vmem:[#allocation2 + $0x158] sm:$0xff]
      %v4049 = vld [vmem:[#allocation2 + $0x160] sm:$0xff]
      %v4050 = vld [vmem:[#allocation2 + $0x168] sm:$0xff]
      %v4051 = vld [vmem:[#allocation2 + $0x170] sm:$0xff]
      %v4052 = vld [vmem:[#allocation2 + $0x178] sm:$0xff]
      %v4053 = vld [vmem:[#allocation3 + $0x30] sm:$0xff]
      %v4054 = vld [vmem:[#allocation3 + $0x38] sm:$0xf]
      %v4055 = vld [vmem:[#allocation3 + $0x3c] sm:$0xff]
      %v4056 = vld [vmem:[#allocation3 + $0x44] sm:$0xf]
      %v4057 = vld [vmem:[#allocation3 + $0x48] sm:$0xff]
      %v4058 = vld [vmem:[#allocation3 + $0x50] sm:$0xf]
      %v4059 = vld [vmem:[#allocation3 + $0x54] sm:$0xff]
      %v4060 = vld [vmem:[#allocation3 + $0x5c] sm:$0xf]
      %v4061 = vld [vmem:[#allocation3 + $0x60] sm:$0xff]
      %v4062 = vld [vmem:[#allocation3 + $0x68] sm:$0xf]
      %v4063 = vld [vmem:[#allocation3 + $0x6c] sm:$0xff]
      %v4064 = vld [vmem:[#allocation3 + $0x74] sm:$0xf]
      %v4065 = vld [vmem:[#allocation3 + $0x78] sm:$0xff]
      %v4066 = vld [vmem:[#allocation3 + $0x80] sm:$0xf]
      %v4067 = vld [vmem:[#allocation3 + $0x84] sm:$0xff]
      %v4068 = vld [vmem:[#allocation3 + $0x8c] sm:$0xf]
      %v4069 = vld [vmem:[#allocation3 + $0x90] sm:$0xff]
      %v4070 = vld [vmem:[#allocation3 + $0x98] sm:$0xf]
      %v4071 = vld [vmem:[#allocation3 + $0x9c] sm:$0xff]
      %v4072 = vld [vmem:[#allocation3 + $0xa4] sm:$0xf]
      %v4073 = vld [vmem:[#allocation3 + $0xa8] sm:$0xff]
      %v4074 = vld [vmem:[#allocation3 + $0xb0] sm:$0xf]
      %v4075 = vld [vmem:[#allocation3 + $0xb4] sm:$0xff]
      %v4076 = vld [vmem:[#allocation3 + $0xbc] sm:$0xf]
      %v4077 = vld [vmem:[#allocation3 + $0xc0] sm:$0xff]
      %v4078 = vld [vmem:[#allocation3 + $0xc8] sm:$0xf]
      %v4079 = vld [vmem:[#allocation3 + $0xcc] sm:$0xff]
      %v4080 = vld [vmem:[#allocation3 + $0xd4] sm:$0xf]
      %v4081 = vld [vmem:[#allocation3 + $0xd8] sm:$0xff]
      %v4082 = vld [vmem:[#allocation3 + $0xe0] sm:$0xf]
      %v4083 = vld [vmem:[#allocation3 + $0xe4] sm:$0xff]
      %v4084 = vld [vmem:[#allocation3 + $0xec] sm:$0xf]
      %v4085 = vld [vmem:[#allocation3 + $0xf0] sm:$0xff]
      %v4086 = vld [vmem:[#allocation3 + $0xf8] sm:$0xf]
      %v4087 = vld [vmem:[#allocation3 + $0xfc] sm:$0xff]
      %v4088 = vld [vmem:[#allocation3 + $0x104] sm:$0xf]
      %v4089 = vld [vmem:[#allocation3 + $0x108] sm:$0xff]
      %v4090 = vld [vmem:[#allocation3 + $0x110] sm:$0xf]
      %v4091 = vld [vmem:[#allocation3 + $0x114] sm:$0xff]
      %v4092 = vld [vmem:[#allocation3 + $0x11c] sm:$0xf]
      %v4093 = vld [vmem:[#allocation3 + $0x120] sm:$0xff]
      %v4094 = vld [vmem:[#allocation3 + $0x128] sm:$0xf]
      %v4095 = vld [vmem:[#allocation3 + $0x12c] sm:$0xff]
      %v4096 = vld [vmem:[#allocation3 + $0x134] sm:$0xf]
      %v4097 = vld [vmem:[#allocation3 + $0x138] sm:$0xff]
      %v4098 = vld [vmem:[#allocation3 + $0x140] sm:$0xf]
      %v4099 = vld [vmem:[#allocation3 + $0x144] sm:$0xff]
      %v4100 = vld [vmem:[#allocation3 + $0x14c] sm:$0xf]
      %v4101 = vld [vmem:[#allocation3 + $0x150] sm:$0xff]
      %v4102 = vld [vmem:[#allocation3 + $0x158] sm:$0xf]
      %v4103 = vld [vmem:[#allocation3 + $0x15c] sm:$0xff]
      %v4104 = vld [vmem:[#allocation3 + $0x164] sm:$0xf]
      %v4105 = vld [vmem:[#allocation3 + $0x168] sm:$0xff]
      %v4106 = vld [vmem:[#allocation3 + $0x170] sm:$0xf]
      %v4107 = vld [vmem:[#allocation3 + $0x174] sm:$0xff]
      %v4108 = vld [vmem:[#allocation3 + $0x17c] sm:$0xf]
      %v4109 = vld [vmem:[#allocation3 + $0x180] sm:$0xff]
      %v4110 = vld [vmem:[#allocation3 + $0x188] sm:$0xf]
      %v4111 = vld [vmem:[#allocation3 + $0x18c] sm:$0xff]
      %v4112 = vld [vmem:[#allocation3 + $0x194] sm:$0xf]
      %v4113 = vld [vmem:[#allocation3 + $0x198] sm:$0xff]
      %v4114 = vld [vmem:[#allocation3 + $0x1a0] sm:$0xf]
      %v4115 = vld [vmem:[#allocation3 + $0x1a4] sm:$0xff]
      %v4116 = vld [vmem:[#allocation3 + $0x1ac] sm:$0xf]
      %v4117 = vld [vmem:[#allocation3 + $0x1b0] sm:$0xff]
      %v4118 = vld [vmem:[#allocation3 + $0x1b8] sm:$0xf]
      %v4119 = vld [vmem:[#allocation3 + $0x1bc] sm:$0xff]
      %v4120 = vld [vmem:[#allocation3 + $0x1c4] sm:$0xf]
      %v4121 = vld [vmem:[#allocation3 + $0x1c8] sm:$0xff]
      %v4122 = vld [vmem:[#allocation3 + $0x1d0] sm:$0xf]
      %v4123 = vld [vmem:[#allocation3 + $0x1d4] sm:$0xff]
      %v4124 = vld [vmem:[#allocation3 + $0x1dc] sm:$0xf]
      %v4125 = vld [vmem:[#allocation3 + $0x1e0] sm:$0xff]
      %v4126 = vld [vmem:[#allocation3 + $0x1e8] sm:$0xf]
      %v4127 = vld [vmem:[#allocation3 + $0x1ec] sm:$0xff]
      %v4128 = vld [vmem:[#allocation3 + $0x1f4] sm:$0xf]
      %v4129 = vld [vmem:[#allocation3 + $0x1f8] sm:$0xff]
      %v4130 = vld [vmem:[#allocation3 + $0x200] sm:$0xf]
      %v4131 = vld [vmem:[#allocation3 + $0x204] sm:$0xff]
      %v4132 = vld [vmem:[#allocation3 + $0x20c] sm:$0xf]
      %v4133 = vld [vmem:[#allocation3 + $0x210] sm:$0xff]
      %v4134 = vld [vmem:[#allocation3 + $0x218] sm:$0xf]
      %v4135 = vld [vmem:[#allocation3 + $0x21c] sm:$0xff]
      %v4136 = vld [vmem:[#allocation3 + $0x224] sm:$0xf]
      %v4137 = vld [vmem:[#allocation3 + $0x228] sm:$0xff]
      %v4138 = vld [vmem:[#allocation3 + $0x230] sm:$0xf]
      %v4139 = vld [vmem:[#allocation3 + $0x234] sm:$0xff]
      %v4140 = vld [vmem:[#allocation3 + $0x23c] sm:$0xf]
      %v4141 = vld [vmem:[#allocation3 + $0x240] sm:$0xff]
      %v4142 = vld [vmem:[#allocation3 + $0x248] sm:$0xf]
      %v4143 = vld [vmem:[#allocation3 + $0x24c] sm:$0xff]
      %v4144 = vld [vmem:[#allocation3 + $0x254] sm:$0xf]
      %v4145 = vld [vmem:[#allocation3 + $0x258] sm:$0xff]
      %v4146 = vld [vmem:[#allocation3 + $0x260] sm:$0xf]
      %v4147 = vld [vmem:[#allocation3 + $0x264] sm:$0xff]
      %v4148 = vld [vmem:[#allocation3 + $0x26c] sm:$0xf]
      %s4149 = scalar_lea.vmem %s2, 192
      %v4150 = vld [vmem:[%s4149] sm:$0xf]
      %v4151 = vld [vmem:[%s4149 + $0x4] sm:$0xf]
      %v4152 = vld [vmem:[%s4149 + $0x8] sm:$0xf]
      %v4153 = vld [vmem:[%s4149 + $0xc] sm:$0xf]
      %v4154 = vld [vmem:[%s4149 + $0x10] sm:$0xf]
      %v4155 = vld [vmem:[%s4149 + $0x14] sm:$0xf]
      %v4156 = vld [vmem:[%s4149 + $0x18] sm:$0xf]
      %v4157 = vld [vmem:[%s4149 + $0x1c] sm:$0xf]
      %v4158 = vld [vmem:[%s4149 + $0x20] sm:$0xf]
      %v4159 = vld [vmem:[%s4149 + $0x24] sm:$0xf]
      %v4160 = vld [vmem:[%s4149 + $0x28] sm:$0xf]
      %v4161 = vld [vmem:[%s4149 + $0x2c] sm:$0xf]
      %v4162 = vld [vmem:[%s4149 + $0x30] sm:$0xf]
      %v4163 = vld [vmem:[%s4149 + $0x34] sm:$0xf]
      %v4164 = vld [vmem:[%s4149 + $0x38] sm:$0xf]
      %v4165 = vld [vmem:[%s4149 + $0x3c] sm:$0xf]
      %v4166 = vld [vmem:[%s4149 + $0x40] sm:$0xf]
      %v4167 = vld [vmem:[%s4149 + $0x44] sm:$0xf]
      %v4168 = vld [vmem:[%s4149 + $0x48] sm:$0xf]
      %v4169 = vld [vmem:[%s4149 + $0x4c] sm:$0xf]
      %v4170 = vld [vmem:[%s4149 + $0x50] sm:$0xf]
      %v4171 = vld [vmem:[%s4149 + $0x54] sm:$0xf]
      %v4172 = vld [vmem:[%s4149 + $0x58] sm:$0xf]
      %v4173 = vld [vmem:[%s4149 + $0x5c] sm:$0xf]
      %v4174 = vld [vmem:[%s4149 + $0x60] sm:$0xf]
      %v4175 = vld [vmem:[%s4149 + $0x64] sm:$0xf]
      %v4176 = vld [vmem:[%s4149 + $0x68] sm:$0xf]
      %v4177 = vld [vmem:[%s4149 + $0x6c] sm:$0xf]
      %v4178 = vld [vmem:[%s4149 + $0x70] sm:$0xf]
      %v4179 = vld [vmem:[%s4149 + $0x74] sm:$0xf]
      %v4180 = vld [vmem:[%s4149 + $0x78] sm:$0xf]
      %v4181 = vld [vmem:[%s4149 + $0x7c] sm:$0xf]
      %v4182 = vld [vmem:[%s4149 + $0x80] sm:$0xf]
      %v4183 = vld [vmem:[%s4149 + $0x84] sm:$0xf]
      %v4184 = vld [vmem:[%s4149 + $0x88] sm:$0xf]
      %v4185 = vld [vmem:[%s4149 + $0x8c] sm:$0xf]
      %v4186 = vld [vmem:[%s4149 + $0x90] sm:$0xf]
      %v4187 = vld [vmem:[%s4149 + $0x94] sm:$0xf]
      %v4188 = vld [vmem:[%s4149 + $0x98] sm:$0xf]
      %v4189 = vld [vmem:[%s4149 + $0x9c] sm:$0xf]
      %v4190 = vld [vmem:[%s4149 + $0xa0] sm:$0xf]
      %v4191 = vld [vmem:[%s4149 + $0xa4] sm:$0xf]
      %v4192 = vld [vmem:[%s4149 + $0xa8] sm:$0xf]
      %v4193 = vld [vmem:[%s4149 + $0xac] sm:$0xf]
      %v4194 = vld [vmem:[%s4149 + $0xb0] sm:$0xf]
      %v4195 = vld [vmem:[%s4149 + $0xb4] sm:$0xf]
      %v4196 = vld [vmem:[%s4149 + $0xb8] sm:$0xf]
      %v4197 = vld [vmem:[%s4149 + $0xbc] sm:$0xf]
      %v4294 = vunpack.c.l.b16 %v4053
      %v4295 = vunpack.c.h.b16 %v4053
      %v4296 = vunpack.c.l.b16 %v4054
      %v4297 = vunpack.c.l.b16 %v4055
      %v4298 = vunpack.c.h.b16 %v4055
      %v4299 = vunpack.c.l.b16 %v4056
      %v4300 = vunpack.c.l.b16 %v4057
      %v4301 = vunpack.c.h.b16 %v4057
      %v4302 = vunpack.c.l.b16 %v4058
      %v4303 = vunpack.c.l.b16 %v4059
      %v4304 = vunpack.c.h.b16 %v4059
      %v4305 = vunpack.c.l.b16 %v4060
      %v4306 = vunpack.c.l.b16 %v4061
      %v4307 = vunpack.c.h.b16 %v4061
      %v4308 = vunpack.c.l.b16 %v4062
      %v4309 = vunpack.c.l.b16 %v4063
      %v4310 = vunpack.c.h.b16 %v4063
      %v4311 = vunpack.c.l.b16 %v4064
      %v4312 = vunpack.c.l.b16 %v4065
      %v4313 = vunpack.c.h.b16 %v4065
      %v4314 = vunpack.c.l.b16 %v4066
      %v4315 = vunpack.c.l.b16 %v4067
      %v4316 = vunpack.c.h.b16 %v4067
      %v4317 = vunpack.c.l.b16 %v4068
      %v4318 = vunpack.c.l.b16 %v4069
      %v4319 = vunpack.c.h.b16 %v4069
      %v4320 = vunpack.c.l.b16 %v4070
      %v4321 = vunpack.c.l.b16 %v4071
      %v4322 = vunpack.c.h.b16 %v4071
      %v4323 = vunpack.c.l.b16 %v4072
      %v4324 = vunpack.c.l.b16 %v4073
      %v4325 = vunpack.c.h.b16 %v4073
      %v4326 = vunpack.c.l.b16 %v4074
      %v4327 = vunpack.c.l.b16 %v4075
      %v4328 = vunpack.c.h.b16 %v4075
      %v4329 = vunpack.c.l.b16 %v4076
      %v4330 = vunpack.c.l.b16 %v4077
      %v4331 = vunpack.c.h.b16 %v4077
      %v4332 = vunpack.c.l.b16 %v4078
      %v4333 = vunpack.c.l.b16 %v4079
      %v4334 = vunpack.c.h.b16 %v4079
      %v4335 = vunpack.c.l.b16 %v4080
      %v4336 = vunpack.c.l.b16 %v4081
      %v4337 = vunpack.c.h.b16 %v4081
      %v4338 = vunpack.c.l.b16 %v4082
      %v4339 = vunpack.c.l.b16 %v4083
      %v4340 = vunpack.c.h.b16 %v4083
      %v4341 = vunpack.c.l.b16 %v4084
      %v4342 = vunpack.c.l.b16 %v4085
      %v4343 = vunpack.c.h.b16 %v4085
      %v4344 = vunpack.c.l.b16 %v4086
      %v4345 = vunpack.c.l.b16 %v4087
      %v4346 = vunpack.c.h.b16 %v4087
      %v4347 = vunpack.c.l.b16 %v4088
      %v4348 = vunpack.c.l.b16 %v4089
      %v4349 = vunpack.c.h.b16 %v4089
      %v4350 = vunpack.c.l.b16 %v4090
      %v4351 = vunpack.c.l.b16 %v4091
      %v4352 = vunpack.c.h.b16 %v4091
      %v4353 = vunpack.c.l.b16 %v4092
      %v4354 = vunpack.c.l.b16 %v4093
      %v4355 = vunpack.c.h.b16 %v4093
      %v4356 = vunpack.c.l.b16 %v4094
      %v4357 = vunpack.c.l.b16 %v4095
      %v4358 = vunpack.c.h.b16 %v4095
      %v4359 = vunpack.c.l.b16 %v4096
      %v4360 = vunpack.c.l.b16 %v4097
      %v4361 = vunpack.c.h.b16 %v4097
      %v4362 = vunpack.c.l.b16 %v4098
      %v4363 = vunpack.c.l.b16 %v4099
      %v4364 = vunpack.c.h.b16 %v4099
      %v4365 = vunpack.c.l.b16 %v4100
      %v4366 = vunpack.c.l.b16 %v4101
      %v4367 = vunpack.c.h.b16 %v4101
      %v4368 = vunpack.c.l.b16 %v4102
      %v4369 = vunpack.c.l.b16 %v4103
      %v4370 = vunpack.c.h.b16 %v4103
      %v4371 = vunpack.c.l.b16 %v4104
      %v4372 = vunpack.c.l.b16 %v4105
      %v4373 = vunpack.c.h.b16 %v4105
      %v4374 = vunpack.c.l.b16 %v4106
      %v4375 = vunpack.c.l.b16 %v4107
      %v4376 = vunpack.c.h.b16 %v4107
      %v4377 = vunpack.c.l.b16 %v4108
      %v4378 = vunpack.c.l.b16 %v4109
      %v4379 = vunpack.c.h.b16 %v4109
      %v4380 = vunpack.c.l.b16 %v4110
      %v4381 = vunpack.c.l.b16 %v4111
      %v4382 = vunpack.c.h.b16 %v4111
      %v4383 = vunpack.c.l.b16 %v4112
      %v4384 = vunpack.c.l.b16 %v4113
      %v4385 = vunpack.c.h.b16 %v4113
      %v4386 = vunpack.c.l.b16 %v4114
      %v4387 = vunpack.c.l.b16 %v4115
      %v4388 = vunpack.c.h.b16 %v4115
      %v4389 = vunpack.c.l.b16 %v4116
      %v4390 = vunpack.c.l.b16 %v4117
      %v4391 = vunpack.c.h.b16 %v4117
      %v4392 = vunpack.c.l.b16 %v4118
      %v4393 = vunpack.c.l.b16 %v4119
      %v4394 = vunpack.c.h.b16 %v4119
      %v4395 = vunpack.c.l.b16 %v4120
      %v4396 = vunpack.c.l.b16 %v4121
      %v4397 = vunpack.c.h.b16 %v4121
      %v4398 = vunpack.c.l.b16 %v4122
      %v4399 = vunpack.c.l.b16 %v4123
      %v4400 = vunpack.c.h.b16 %v4123
      %v4401 = vunpack.c.l.b16 %v4124
      %v4402 = vunpack.c.l.b16 %v4125
      %v4403 = vunpack.c.h.b16 %v4125
      %v4404 = vunpack.c.l.b16 %v4126
      %v4405 = vunpack.c.l.b16 %v4127
      %v4406 = vunpack.c.h.b16 %v4127
      %v4407 = vunpack.c.l.b16 %v4128
      %v4408 = vunpack.c.l.b16 %v4129
      %v4409 = vunpack.c.h.b16 %v4129
      %v4410 = vunpack.c.l.b16 %v4130
      %v4411 = vunpack.c.l.b16 %v4131
      %v4412 = vunpack.c.h.b16 %v4131
      %v4413 = vunpack.c.l.b16 %v4132
      %v4414 = vunpack.c.l.b16 %v4133
      %v4415 = vunpack.c.h.b16 %v4133
      %v4416 = vunpack.c.l.b16 %v4134
      %v4417 = vunpack.c.l.b16 %v4135
      %v4418 = vunpack.c.h.b16 %v4135
      %v4419 = vunpack.c.l.b16 %v4136
      %v4420 = vunpack.c.l.b16 %v4137
      %v4421 = vunpack.c.h.b16 %v4137
      %v4422 = vunpack.c.l.b16 %v4138
      %v4423 = vunpack.c.l.b16 %v4139
      %v4424 = vunpack.c.h.b16 %v4139
      %v4425 = vunpack.c.l.b16 %v4140
      %v4426 = vunpack.c.l.b16 %v4141
      %v4427 = vunpack.c.h.b16 %v4141
      %v4428 = vunpack.c.l.b16 %v4142
      %v4429 = vunpack.c.l.b16 %v4143
      %v4430 = vunpack.c.h.b16 %v4143
      %v4431 = vunpack.c.l.b16 %v4144
      %v4432 = vunpack.c.l.b16 %v4145
      %v4433 = vunpack.c.h.b16 %v4145
      %v4434 = vunpack.c.l.b16 %v4146
      %v4435 = vunpack.c.l.b16 %v4147
      %v4436 = vunpack.c.h.b16 %v4147
      %v4437 = vunpack.c.l.b16 %v4148
      %v4438 = vpack.c.b16 %v4297, %v4294
      %v4439 = vpack.c.b16 %v4298, %v4295
      %v4440 = vpack.c.b16 %v4299, %v4296
      %v4441 = vpack.c.b16 %v4303, %v4300
      %v4442 = vpack.c.b16 %v4304, %v4301
      %v4443 = vpack.c.b16 %v4305, %v4302
      %v4444 = vpack.c.b16 %v4309, %v4306
      %v4445 = vpack.c.b16 %v4310, %v4307
      %v4446 = vpack.c.b16 %v4311, %v4308
      %v4447 = vpack.c.b16 %v4315, %v4312
      %v4448 = vpack.c.b16 %v4316, %v4313
      %v4449 = vpack.c.b16 %v4317, %v4314
      %v4450 = vpack.c.b16 %v4321, %v4318
      %v4451 = vpack.c.b16 %v4322, %v4319
      %v4452 = vpack.c.b16 %v4323, %v4320
      %v4453 = vpack.c.b16 %v4327, %v4324
      %v4454 = vpack.c.b16 %v4328, %v4325
      %v4455 = vpack.c.b16 %v4329, %v4326
      %v4456 = vpack.c.b16 %v4333, %v4330
      %v4457 = vpack.c.b16 %v4334, %v4331
      %v4458 = vpack.c.b16 %v4335, %v4332
      %v4459 = vpack.c.b16 %v4339, %v4336
      %v4460 = vpack.c.b16 %v4340, %v4337
      %v4461 = vpack.c.b16 %v4341, %v4338
      %v4462 = vpack.c.b16 %v4345, %v4342
      %v4463 = vpack.c.b16 %v4346, %v4343
      %v4464 = vpack.c.b16 %v4347, %v4344
      %v4465 = vpack.c.b16 %v4351, %v4348
      %v4466 = vpack.c.b16 %v4352, %v4349
      %v4467 = vpack.c.b16 %v4353, %v4350
      %v4468 = vpack.c.b16 %v4357, %v4354
      %v4469 = vpack.c.b16 %v4358, %v4355
      %v4470 = vpack.c.b16 %v4359, %v4356
      %v4471 = vpack.c.b16 %v4363, %v4360
      %v4472 = vpack.c.b16 %v4364, %v4361
      %v4473 = vpack.c.b16 %v4365, %v4362
      %v4474 = vpack.c.b16 %v4369, %v4366
      %v4475 = vpack.c.b16 %v4370, %v4367
      %v4476 = vpack.c.b16 %v4371, %v4368
      %v4477 = vpack.c.b16 %v4375, %v4372
      %v4478 = vpack.c.b16 %v4376, %v4373
      %v4479 = vpack.c.b16 %v4377, %v4374
      %v4480 = vpack.c.b16 %v4381, %v4378
      %v4481 = vpack.c.b16 %v4382, %v4379
      %v4482 = vpack.c.b16 %v4383, %v4380
      %v4483 = vpack.c.b16 %v4387, %v4384
      %v4484 = vpack.c.b16 %v4388, %v4385
      %v4485 = vpack.c.b16 %v4389, %v4386
      %v4486 = vpack.c.b16 %v4393, %v4390
      %v4487 = vpack.c.b16 %v4394, %v4391
      %v4488 = vpack.c.b16 %v4395, %v4392
      %v4489 = vpack.c.b16 %v4399, %v4396
      %v4490 = vpack.c.b16 %v4400, %v4397
      %v4491 = vpack.c.b16 %v4401, %v4398
      %v4492 = vpack.c.b16 %v4405, %v4402
      %v4493 = vpack.c.b16 %v4406, %v4403
      %v4494 = vpack.c.b16 %v4407, %v4404
      %v4495 = vpack.c.b16 %v4411, %v4408
      %v4496 = vpack.c.b16 %v4412, %v4409
      %v4497 = vpack.c.b16 %v4413, %v4410
      %v4498 = vpack.c.b16 %v4417, %v4414
      %v4499 = vpack.c.b16 %v4418, %v4415
      %v4500 = vpack.c.b16 %v4419, %v4416
      %v4501 = vpack.c.b16 %v4423, %v4420
      %v4502 = vpack.c.b16 %v4424, %v4421
      %v4503 = vpack.c.b16 %v4425, %v4422
      %v4504 = vpack.c.b16 %v4429, %v4426
      %v4505 = vpack.c.b16 %v4430, %v4427
      %v4506 = vpack.c.b16 %v4431, %v4428
      %v4507 = vpack.c.b16 %v4435, %v4432
      %v4508 = vpack.c.b16 %v4436, %v4433
      %v4509 = vpack.c.b16 %v4437, %v4434
      %v4630 = vunpack.c.l.b16 %v4150
      %v4631 = vunpack.c.l.b16 %v4151
      %v4632 = vunpack.c.l.b16 %v4152
      %v4633 = vunpack.c.l.b16 %v4153
      %v4634 = vunpack.c.l.b16 %v4154
      %v4635 = vunpack.c.l.b16 %v4155
      %v4636 = vunpack.c.l.b16 %v4156
      %v4637 = vunpack.c.l.b16 %v4157
      %v4638 = vunpack.c.l.b16 %v4158
      %v4639 = vunpack.c.l.b16 %v4159
      %v4640 = vunpack.c.l.b16 %v4160
      %v4641 = vunpack.c.l.b16 %v4161
      %v4642 = vunpack.c.l.b16 %v4162
      %v4643 = vunpack.c.l.b16 %v4163
      %v4644 = vunpack.c.l.b16 %v4164
      %v4645 = vunpack.c.l.b16 %v4165
      %v4646 = vunpack.c.l.b16 %v4166
      %v4647 = vunpack.c.l.b16 %v4167
      %v4648 = vunpack.c.l.b16 %v4168
      %v4649 = vunpack.c.l.b16 %v4169
      %v4650 = vunpack.c.l.b16 %v4170
      %v4651 = vunpack.c.l.b16 %v4171
      %v4652 = vunpack.c.l.b16 %v4172
      %v4653 = vunpack.c.l.b16 %v4173
      %v4654 = vunpack.c.l.b16 %v4174
      %v4655 = vunpack.c.l.b16 %v4175
      %v4656 = vunpack.c.l.b16 %v4176
      %v4657 = vunpack.c.l.b16 %v4177
      %v4658 = vunpack.c.l.b16 %v4178
      %v4659 = vunpack.c.l.b16 %v4179
      %v4660 = vunpack.c.l.b16 %v4180
      %v4661 = vunpack.c.l.b16 %v4181
      %v4662 = vunpack.c.l.b16 %v4182
      %v4663 = vunpack.c.l.b16 %v4183
      %v4664 = vunpack.c.l.b16 %v4184
      %v4665 = vunpack.c.l.b16 %v4185
      %v4666 = vunpack.c.l.b16 %v4186
      %v4667 = vunpack.c.l.b16 %v4187
      %v4668 = vunpack.c.l.b16 %v4188
      %v4669 = vunpack.c.l.b16 %v4189
      %v4670 = vunpack.c.l.b16 %v4190
      %v4671 = vunpack.c.l.b16 %v4191
      %v4672 = vunpack.c.l.b16 %v4192
      %v4673 = vunpack.c.l.b16 %v4193
      %v4674 = vunpack.c.l.b16 %v4194
      %v4675 = vunpack.c.l.b16 %v4195
      %v4676 = vunpack.c.l.b16 %v4196
      %v4677 = vunpack.c.l.b16 %v4197
      %v4678 = vpack.c.b16 %v4631, %v4630
      %v4679 = vpack.c.b16 %v4633, %v4632
      %v4680 = vpack.c.b16 %v4635, %v4634
      %v4681 = vpack.c.b16 %v4637, %v4636
      %v4682 = vpack.c.b16 %v4639, %v4638
      %v4683 = vpack.c.b16 %v4641, %v4640
      %v4684 = vpack.c.b16 %v4643, %v4642
      %v4685 = vpack.c.b16 %v4645, %v4644
      %v4686 = vpack.c.b16 %v4647, %v4646
      %v4687 = vpack.c.b16 %v4649, %v4648
      %v4688 = vpack.c.b16 %v4651, %v4650
      %v4689 = vpack.c.b16 %v4653, %v4652
      %v4690 = vpack.c.b16 %v4655, %v4654
      %v4691 = vpack.c.b16 %v4657, %v4656
      %v4692 = vpack.c.b16 %v4659, %v4658
      %v4693 = vpack.c.b16 %v4661, %v4660
      %v4694 = vpack.c.b16 %v4663, %v4662
      %v4695 = vpack.c.b16 %v4665, %v4664
      %v4696 = vpack.c.b16 %v4667, %v4666
      %v4697 = vpack.c.b16 %v4669, %v4668
      %v4698 = vpack.c.b16 %v4671, %v4670
      %v4699 = vpack.c.b16 %v4673, %v4672
      %v4700 = vpack.c.b16 %v4675, %v4674
      %v4701 = vpack.c.b16 %v4677, %v4676
      %4726 = vmatpush.bf16.msra.mxu0 %v4685
      %4727 = vmatpush.bf16.msra.mxu0 %v4684
      %4728 = vmatpush.bf16.msra.mxu0 %v4683
      %4729 = vmatpush.bf16.msra.mxu0 %v4682
      %4730 = vmatpush.bf16.msra.mxu0 %v4681
      %4731 = vmatpush.bf16.msra.mxu0 %v4680
      %4732 = vmatpush.bf16.msra.mxu0 %v4679
      %4733 = vmatpush.bf16.msra.mxu0 %v4678
      %4734 = vmatmul.bf16.gmra.mxu0 %v4438
      %v4735 = vpop.f32.mrf.mxu0
      %v4736 = vadd.f32 0.0, %v4735
      %v4737 = vpop.f32.mrf.mxu0
      %v4738 = vadd.f32 0.0, %v4737
      %4739 = vmatmul.bf16.gmra.mxu0 %v4441
      %v4740 = vpop.f32.mrf.mxu0
      %v4741 = vadd.f32 0.0, %v4740
      %v4742 = vpop.f32.mrf.mxu0
      %v4743 = vadd.f32 0.0, %v4742
      %4744 = vmatmul.bf16.gmra.mxu0 %v4444
      %v4745 = vpop.f32.mrf.mxu0
      %v4746 = vadd.f32 0.0, %v4745
      %v4747 = vpop.f32.mrf.mxu0
      %v4748 = vadd.f32 0.0, %v4747
      %4749 = vmatmul.bf16.gmra.mxu0 %v4447
      %v4750 = vpop.f32.mrf.mxu0
      %v4751 = vadd.f32 0.0, %v4750
      %v4752 = vpop.f32.mrf.mxu0
      %v4753 = vadd.f32 0.0, %v4752
      %4754 = vmatmul.bf16.gmra.mxu0 %v4450
      %v4755 = vpop.f32.mrf.mxu0
      %v4756 = vadd.f32 0.0, %v4755
      %v4757 = vpop.f32.mrf.mxu0
      %v4758 = vadd.f32 0.0, %v4757
      %4759 = vmatmul.bf16.gmra.mxu0 %v4453
      %v4760 = vpop.f32.mrf.mxu0
      %v4761 = vadd.f32 0.0, %v4760
      %v4762 = vpop.f32.mrf.mxu0
      %v4763 = vadd.f32 0.0, %v4762
      %4764 = vmatmul.bf16.gmra.mxu0 %v4456
      %v4765 = vpop.f32.mrf.mxu0
      %v4766 = vadd.f32 0.0, %v4765
      %v4767 = vpop.f32.mrf.mxu0
      %v4768 = vadd.f32 0.0, %v4767
      %4769 = vmatmul.bf16.gmra.mxu0 %v4459
      %v4770 = vpop.f32.mrf.mxu0
      %v4771 = vadd.f32 0.0, %v4770
      %v4772 = vpop.f32.mrf.mxu0
      %v4773 = vadd.f32 0.0, %v4772
      %4774 = vmatmul.bf16.gmra.mxu0 %v4462
      %v4775 = vpop.f32.mrf.mxu0
      %v4776 = vadd.f32 0.0, %v4775
      %v4777 = vpop.f32.mrf.mxu0
      %v4778 = vadd.f32 0.0, %v4777
      %4779 = vmatmul.bf16.gmra.mxu0 %v4465
      %v4780 = vpop.f32.mrf.mxu0
      %v4781 = vadd.f32 0.0, %v4780
      %v4782 = vpop.f32.mrf.mxu0
      %v4783 = vadd.f32 0.0, %v4782
      %4784 = vmatmul.bf16.gmra.mxu0 %v4468
      %v4785 = vpop.f32.mrf.mxu0
      %v4786 = vadd.f32 0.0, %v4785
      %v4787 = vpop.f32.mrf.mxu0
      %v4788 = vadd.f32 0.0, %v4787
      %4789 = vmatmul.bf16.gmra.mxu0 %v4471
      %v4790 = vpop.f32.mrf.mxu0
      %v4791 = vadd.f32 0.0, %v4790
      %v4792 = vpop.f32.mrf.mxu0
      %v4793 = vadd.f32 0.0, %v4792
      %4794 = vmatmul.bf16.gmra.mxu0 %v4474
      %v4795 = vpop.f32.mrf.mxu0
      %v4796 = vadd.f32 0.0, %v4795
      %v4797 = vpop.f32.mrf.mxu0
      %v4798 = vadd.f32 0.0, %v4797
      %4799 = vmatmul.bf16.gmra.mxu0 %v4477
      %v4800 = vpop.f32.mrf.mxu0
      %v4801 = vadd.f32 0.0, %v4800
      %v4802 = vpop.f32.mrf.mxu0
      %v4803 = vadd.f32 0.0, %v4802
      %4804 = vmatmul.bf16.gmra.mxu0 %v4480
      %v4805 = vpop.f32.mrf.mxu0
      %v4806 = vadd.f32 0.0, %v4805
      %v4807 = vpop.f32.mrf.mxu0
      %v4808 = vadd.f32 0.0, %v4807
      %4809 = vmatmul.bf16.gmra.mxu0 %v4483
      %v4810 = vpop.f32.mrf.mxu0
      %v4811 = vadd.f32 0.0, %v4810
      %v4812 = vpop.f32.mrf.mxu0
      %v4813 = vadd.f32 0.0, %v4812
      %4814 = vmatmul.bf16.gmra.mxu0 %v4486
      %v4815 = vpop.f32.mrf.mxu0
      %v4816 = vadd.f32 0.0, %v4815
      %v4817 = vpop.f32.mrf.mxu0
      %v4818 = vadd.f32 0.0, %v4817
      %4819 = vmatmul.bf16.gmra.mxu0 %v4489
      %v4820 = vpop.f32.mrf.mxu0
      %v4821 = vadd.f32 0.0, %v4820
      %v4822 = vpop.f32.mrf.mxu0
      %v4823 = vadd.f32 0.0, %v4822
      %4824 = vmatmul.bf16.gmra.mxu0 %v4492
      %v4825 = vpop.f32.mrf.mxu0
      %v4826 = vadd.f32 0.0, %v4825
      %v4827 = vpop.f32.mrf.mxu0
      %v4828 = vadd.f32 0.0, %v4827
      %4829 = vmatmul.bf16.gmra.mxu0 %v4495
      %v4830 = vpop.f32.mrf.mxu0
      %v4831 = vadd.f32 0.0, %v4830
      %v4832 = vpop.f32.mrf.mxu0
      %v4833 = vadd.f32 0.0, %v4832
      %4834 = vmatmul.bf16.gmra.mxu0 %v4498
      %v4835 = vpop.f32.mrf.mxu0
      %v4836 = vadd.f32 0.0, %v4835
      %v4837 = vpop.f32.mrf.mxu0
      %v4838 = vadd.f32 0.0, %v4837
      %4839 = vmatmul.bf16.gmra.mxu0 %v4501
      %v4840 = vpop.f32.mrf.mxu0
      %v4841 = vadd.f32 0.0, %v4840
      %v4842 = vpop.f32.mrf.mxu0
      %v4843 = vadd.f32 0.0, %v4842
      %4844 = vmatmul.bf16.gmra.mxu0 %v4504
      %v4845 = vpop.f32.mrf.mxu0
      %v4846 = vadd.f32 0.0, %v4845
      %v4847 = vpop.f32.mrf.mxu0
      %v4848 = vadd.f32 0.0, %v4847
      %4849 = vmatmul.bf16.gmra.mxu0 %v4507
      %v4850 = vpop.f32.mrf.mxu0
      %v4851 = vadd.f32 0.0, %v4850
      %v4852 = vpop.f32.mrf.mxu0
      %v4853 = vadd.f32 0.0, %v4852
      %4854 = vdwg.mxu0
      %4855 = vmatpush.bf16.msra.mxu0 %v4693
      %4856 = vmatpush.bf16.msra.mxu0 %v4692
      %4857 = vmatpush.bf16.msra.mxu0 %v4691
      %4858 = vmatpush.bf16.msra.mxu0 %v4690
      %4859 = vmatpush.bf16.msra.mxu0 %v4689
      %4860 = vmatpush.bf16.msra.mxu0 %v4688
      %4861 = vmatpush.bf16.msra.mxu0 %v4687
      %4862 = vmatpush.bf16.msra.mxu0 %v4686
      %4863 = vmatmul.bf16.gmra.mxu0 %v4439
      %v4864 = vpop.f32.mrf.mxu0
      %v4865 = vadd.f32 %v4736, %v4864
      %v4866 = vpop.f32.mrf.mxu0
      %v4867 = vadd.f32 %v4738, %v4866
      %4868 = vmatmul.bf16.gmra.mxu0 %v4442
      %v4869 = vpop.f32.mrf.mxu0
      %v4870 = vadd.f32 %v4741, %v4869
      %v4871 = vpop.f32.mrf.mxu0
      %v4872 = vadd.f32 %v4743, %v4871
      %4873 = vmatmul.bf16.gmra.mxu0 %v4445
      %v4874 = vpop.f32.mrf.mxu0
      %v4875 = vadd.f32 %v4746, %v4874
      %v4876 = vpop.f32.mrf.mxu0
      %v4877 = vadd.f32 %v4748, %v4876
      %4878 = vmatmul.bf16.gmra.mxu0 %v4448
      %v4879 = vpop.f32.mrf.mxu0
      %v4880 = vadd.f32 %v4751, %v4879
      %v4881 = vpop.f32.mrf.mxu0
      %v4882 = vadd.f32 %v4753, %v4881
      %4883 = vmatmul.bf16.gmra.mxu0 %v4451
      %v4884 = vpop.f32.mrf.mxu0
      %v4885 = vadd.f32 %v4756, %v4884
      %v4886 = vpop.f32.mrf.mxu0
      %v4887 = vadd.f32 %v4758, %v4886
      %4888 = vmatmul.bf16.gmra.mxu0 %v4454
      %v4889 = vpop.f32.mrf.mxu0
      %v4890 = vadd.f32 %v4761, %v4889
      %v4891 = vpop.f32.mrf.mxu0
      %v4892 = vadd.f32 %v4763, %v4891
      %4893 = vmatmul.bf16.gmra.mxu0 %v4457
      %v4894 = vpop.f32.mrf.mxu0
      %v4895 = vadd.f32 %v4766, %v4894
      %v4896 = vpop.f32.mrf.mxu0
      %v4897 = vadd.f32 %v4768, %v4896
      %4898 = vmatmul.bf16.gmra.mxu0 %v4460
      %v4899 = vpop.f32.mrf.mxu0
      %v4900 = vadd.f32 %v4771, %v4899
      %v4901 = vpop.f32.mrf.mxu0
      %v4902 = vadd.f32 %v4773, %v4901
      %4903 = vmatmul.bf16.gmra.mxu0 %v4463
      %v4904 = vpop.f32.mrf.mxu0
      %v4905 = vadd.f32 %v4776, %v4904
      %v4906 = vpop.f32.mrf.mxu0
      %v4907 = vadd.f32 %v4778, %v4906
      %4908 = vmatmul.bf16.gmra.mxu0 %v4466
      %v4909 = vpop.f32.mrf.mxu0
      %v4910 = vadd.f32 %v4781, %v4909
      %v4911 = vpop.f32.mrf.mxu0
      %v4912 = vadd.f32 %v4783, %v4911
      %4913 = vmatmul.bf16.gmra.mxu0 %v4469
      %v4914 = vpop.f32.mrf.mxu0
      %v4915 = vadd.f32 %v4786, %v4914
      %v4916 = vpop.f32.mrf.mxu0
      %v4917 = vadd.f32 %v4788, %v4916
      %4918 = vmatmul.bf16.gmra.mxu0 %v4472
      %v4919 = vpop.f32.mrf.mxu0
      %v4920 = vadd.f32 %v4791, %v4919
      %v4921 = vpop.f32.mrf.mxu0
      %v4922 = vadd.f32 %v4793, %v4921
      %4923 = vmatmul.bf16.gmra.mxu0 %v4475
      %v4924 = vpop.f32.mrf.mxu0
      %v4925 = vadd.f32 %v4796, %v4924
      %v4926 = vpop.f32.mrf.mxu0
      %v4927 = vadd.f32 %v4798, %v4926
      %4928 = vmatmul.bf16.gmra.mxu0 %v4478
      %v4929 = vpop.f32.mrf.mxu0
      %v4930 = vadd.f32 %v4801, %v4929
      %v4931 = vpop.f32.mrf.mxu0
      %v4932 = vadd.f32 %v4803, %v4931
      %4933 = vmatmul.bf16.gmra.mxu0 %v4481
      %v4934 = vpop.f32.mrf.mxu0
      %v4935 = vadd.f32 %v4806, %v4934
      %v4936 = vpop.f32.mrf.mxu0
      %v4937 = vadd.f32 %v4808, %v4936
      %4938 = vmatmul.bf16.gmra.mxu0 %v4484
      %v4939 = vpop.f32.mrf.mxu0
      %v4940 = vadd.f32 %v4811, %v4939
      %v4941 = vpop.f32.mrf.mxu0
      %v4942 = vadd.f32 %v4813, %v4941
      %4943 = vmatmul.bf16.gmra.mxu0 %v4487
      %v4944 = vpop.f32.mrf.mxu0
      %v4945 = vadd.f32 %v4816, %v4944
      %v4946 = vpop.f32.mrf.mxu0
      %v4947 = vadd.f32 %v4818, %v4946
      %4948 = vmatmul.bf16.gmra.mxu0 %v4490
      %v4949 = vpop.f32.mrf.mxu0
      %v4950 = vadd.f32 %v4821, %v4949
      %v4951 = vpop.f32.mrf.mxu0
      %v4952 = vadd.f32 %v4823, %v4951
      %4953 = vmatmul.bf16.gmra.mxu0 %v4493
      %v4954 = vpop.f32.mrf.mxu0
      %v4955 = vadd.f32 %v4826, %v4954
      %v4956 = vpop.f32.mrf.mxu0
      %v4957 = vadd.f32 %v4828, %v4956
      %4958 = vmatmul.bf16.gmra.mxu0 %v4496
      %v4959 = vpop.f32.mrf.mxu0
      %v4960 = vadd.f32 %v4831, %v4959
      %v4961 = vpop.f32.mrf.mxu0
      %v4962 = vadd.f32 %v4833, %v4961
      %4963 = vmatmul.bf16.gmra.mxu0 %v4499
      %v4964 = vpop.f32.mrf.mxu0
      %v4965 = vadd.f32 %v4836, %v4964
      %v4966 = vpop.f32.mrf.mxu0
      %v4967 = vadd.f32 %v4838, %v4966
      %4968 = vmatmul.bf16.gmra.mxu0 %v4502
      %v4969 = vpop.f32.mrf.mxu0
      %v4970 = vadd.f32 %v4841, %v4969
      %v4971 = vpop.f32.mrf.mxu0
      %v4972 = vadd.f32 %v4843, %v4971
      %4973 = vmatmul.bf16.gmra.mxu0 %v4505
      %v4974 = vpop.f32.mrf.mxu0
      %v4975 = vadd.f32 %v4846, %v4974
      %v4976 = vpop.f32.mrf.mxu0
      %v4977 = vadd.f32 %v4848, %v4976
      %4978 = vmatmul.bf16.gmra.mxu0 %v4508
      %v4979 = vpop.f32.mrf.mxu0
      %v4980 = vadd.f32 %v4851, %v4979
      %v4981 = vpop.f32.mrf.mxu0
      %v4982 = vadd.f32 %v4853, %v4981
      %4983 = vdwg.mxu0
      %4984 = vmatpush.bf16.msra.mxu0 %v4701
      %4985 = vmatpush.bf16.msra.mxu0 %v4700
      %4986 = vmatpush.bf16.msra.mxu0 %v4699
      %4987 = vmatpush.bf16.msra.mxu0 %v4698
      %4988 = vmatpush.bf16.msra.mxu0 %v4697
      %4989 = vmatpush.bf16.msra.mxu0 %v4696
      %4990 = vmatpush.bf16.msra.mxu0 %v4695
      %4991 = vmatpush.bf16.msra.mxu0 %v4694
      %4992 = vmatmul.bf16.gmra.mxu0 %v4440
      %v4993 = vpop.f32.mrf.mxu0
      %v4994 = vadd.f32 %v4865, %v4993
      %v4995 = vpop.f32.mrf.mxu0
      %v4996 = vadd.f32 %v4867, %v4995
      %4997 = vmatmul.bf16.gmra.mxu0 %v4443
      %v4998 = vpop.f32.mrf.mxu0
      %v4999 = vadd.f32 %v4870, %v4998
      %v5000 = vpop.f32.mrf.mxu0
      %v5001 = vadd.f32 %v4872, %v5000
      %5002 = vmatmul.bf16.gmra.mxu0 %v4446
      %v5003 = vpop.f32.mrf.mxu0
      %v5004 = vadd.f32 %v4875, %v5003
      %v5005 = vpop.f32.mrf.mxu0
      %v5006 = vadd.f32 %v4877, %v5005
      %5007 = vmatmul.bf16.gmra.mxu0 %v4449
      %v5008 = vpop.f32.mrf.mxu0
      %v5009 = vadd.f32 %v4880, %v5008
      %v5010 = vpop.f32.mrf.mxu0
      %v5011 = vadd.f32 %v4882, %v5010
      %5012 = vmatmul.bf16.gmra.mxu0 %v4452
      %v5013 = vpop.f32.mrf.mxu0
      %v5014 = vadd.f32 %v4885, %v5013
      %v5015 = vpop.f32.mrf.mxu0
      %v5016 = vadd.f32 %v4887, %v5015
      %5017 = vmatmul.bf16.gmra.mxu0 %v4455
      %v5018 = vpop.f32.mrf.mxu0
      %v5019 = vadd.f32 %v4890, %v5018
      %v5020 = vpop.f32.mrf.mxu0
      %v5021 = vadd.f32 %v4892, %v5020
      %5022 = vmatmul.bf16.gmra.mxu0 %v4458
      %v5023 = vpop.f32.mrf.mxu0
      %v5024 = vadd.f32 %v4895, %v5023
      %v5025 = vpop.f32.mrf.mxu0
      %v5026 = vadd.f32 %v4897, %v5025
      %5027 = vmatmul.bf16.gmra.mxu0 %v4461
      %v5028 = vpop.f32.mrf.mxu0
      %v5029 = vadd.f32 %v4900, %v5028
      %v5030 = vpop.f32.mrf.mxu0
      %v5031 = vadd.f32 %v4902, %v5030
      %5032 = vmatmul.bf16.gmra.mxu0 %v4464
      %v5033 = vpop.f32.mrf.mxu0
      %v5034 = vadd.f32 %v4905, %v5033
      %v5035 = vpop.f32.mrf.mxu0
      %v5036 = vadd.f32 %v4907, %v5035
      %5037 = vmatmul.bf16.gmra.mxu0 %v4467
      %v5038 = vpop.f32.mrf.mxu0
      %v5039 = vadd.f32 %v4910, %v5038
      %v5040 = vpop.f32.mrf.mxu0
      %v5041 = vadd.f32 %v4912, %v5040
      %5042 = vmatmul.bf16.gmra.mxu0 %v4470
      %v5043 = vpop.f32.mrf.mxu0
      %v5044 = vadd.f32 %v4915, %v5043
      %v5045 = vpop.f32.mrf.mxu0
      %v5046 = vadd.f32 %v4917, %v5045
      %5047 = vmatmul.bf16.gmra.mxu0 %v4473
      %v5048 = vpop.f32.mrf.mxu0
      %v5049 = vadd.f32 %v4920, %v5048
      %v5050 = vpop.f32.mrf.mxu0
      %v5051 = vadd.f32 %v4922, %v5050
      %5052 = vmatmul.bf16.gmra.mxu0 %v4476
      %v5053 = vpop.f32.mrf.mxu0
      %v5054 = vadd.f32 %v4925, %v5053
      %v5055 = vpop.f32.mrf.mxu0
      %v5056 = vadd.f32 %v4927, %v5055
      %5057 = vmatmul.bf16.gmra.mxu0 %v4479
      %v5058 = vpop.f32.mrf.mxu0
      %v5059 = vadd.f32 %v4930, %v5058
      %v5060 = vpop.f32.mrf.mxu0
      %v5061 = vadd.f32 %v4932, %v5060
      %5062 = vmatmul.bf16.gmra.mxu0 %v4482
      %v5063 = vpop.f32.mrf.mxu0
      %v5064 = vadd.f32 %v4935, %v5063
      %v5065 = vpop.f32.mrf.mxu0
      %v5066 = vadd.f32 %v4937, %v5065
      %5067 = vmatmul.bf16.gmra.mxu0 %v4485
      %v5068 = vpop.f32.mrf.mxu0
      %v5069 = vadd.f32 %v4940, %v5068
      %v5070 = vpop.f32.mrf.mxu0
      %v5071 = vadd.f32 %v4942, %v5070
      %5072 = vmatmul.bf16.gmra.mxu0 %v4488
      %v5073 = vpop.f32.mrf.mxu0
      %v5074 = vadd.f32 %v4945, %v5073
      %v5075 = vpop.f32.mrf.mxu0
      %v5076 = vadd.f32 %v4947, %v5075
      %5077 = vmatmul.bf16.gmra.mxu0 %v4491
      %v5078 = vpop.f32.mrf.mxu0
      %v5079 = vadd.f32 %v4950, %v5078
      %v5080 = vpop.f32.mrf.mxu0
      %v5081 = vadd.f32 %v4952, %v5080
      %5082 = vmatmul.bf16.gmra.mxu0 %v4494
      %v5083 = vpop.f32.mrf.mxu0
      %v5084 = vadd.f32 %v4955, %v5083
      %v5085 = vpop.f32.mrf.mxu0
      %v5086 = vadd.f32 %v4957, %v5085
      %5087 = vmatmul.bf16.gmra.mxu0 %v4497
      %v5088 = vpop.f32.mrf.mxu0
      %v5089 = vadd.f32 %v4960, %v5088
      %v5090 = vpop.f32.mrf.mxu0
      %v5091 = vadd.f32 %v4962, %v5090
      %5092 = vmatmul.bf16.gmra.mxu0 %v4500
      %v5093 = vpop.f32.mrf.mxu0
      %v5094 = vadd.f32 %v4965, %v5093
      %v5095 = vpop.f32.mrf.mxu0
      %v5096 = vadd.f32 %v4967, %v5095
      %5097 = vmatmul.bf16.gmra.mxu0 %v4503
      %v5098 = vpop.f32.mrf.mxu0
      %v5099 = vadd.f32 %v4970, %v5098
      %v5100 = vpop.f32.mrf.mxu0
      %v5101 = vadd.f32 %v4972, %v5100
      %5102 = vmatmul.bf16.gmra.mxu0 %v4506
      %v5103 = vpop.f32.mrf.mxu0
      %v5104 = vadd.f32 %v4975, %v5103
      %v5105 = vpop.f32.mrf.mxu0
      %v5106 = vadd.f32 %v4977, %v5105
      %5107 = vmatmul.bf16.gmra.mxu0 %v4509
      %v5108 = vpop.f32.mrf.mxu0
      %v5109 = vadd.f32 %v4980, %v5108
      %v5110 = vpop.f32.mrf.mxu0
      %v5111 = vadd.f32 %v4982, %v5110
      %5112 = vdwg.mxu0
      %v5113 = vadd.f32 %v4005, %v4994
      %v5114 = vadd.f32 %v4006, %v4996
      %v5115 = vadd.f32 %v4007, %v4999
      %v5116 = vadd.f32 %v4008, %v5001
      %v5117 = vadd.f32 %v4009, %v5004
      %v5118 = vadd.f32 %v4010, %v5006
      %v5119 = vadd.f32 %v4011, %v5009
      %v5120 = vadd.f32 %v4012, %v5011
      %v5121 = vadd.f32 %v4013, %v5014
      %v5122 = vadd.f32 %v4014, %v5016
      %v5123 = vadd.f32 %v4015, %v5019
      %v5124 = vadd.f32 %v4016, %v5021
      %v5125 = vadd.f32 %v4017, %v5024
      %v5126 = vadd.f32 %v4018, %v5026
      %v5127 = vadd.f32 %v4019, %v5029
      %v5128 = vadd.f32 %v4020, %v5031
      %v5129 = vadd.f32 %v4021, %v5034
      %v5130 = vadd.f32 %v4022, %v5036
      %v5131 = vadd.f32 %v4023, %v5039
      %v5132 = vadd.f32 %v4024, %v5041
      %v5133 = vadd.f32 %v4025, %v5044
      %v5134 = vadd.f32 %v4026, %v5046
      %v5135 = vadd.f32 %v4027, %v5049
      %v5136 = vadd.f32 %v4028, %v5051
      %v5137 = vadd.f32 %v4029, %v5054
      %v5138 = vadd.f32 %v4030, %v5056
      %v5139 = vadd.f32 %v4031, %v5059
      %v5140 = vadd.f32 %v4032, %v5061
      %v5141 = vadd.f32 %v4033, %v5064
      %v5142 = vadd.f32 %v4034, %v5066
      %v5143 = vadd.f32 %v4035, %v5069
      %v5144 = vadd.f32 %v4036, %v5071
      %v5145 = vadd.f32 %v4037, %v5074
      %v5146 = vadd.f32 %v4038, %v5076
      %v5147 = vadd.f32 %v4039, %v5079
      %v5148 = vadd.f32 %v4040, %v5081
      %v5149 = vadd.f32 %v4041, %v5084
      %v5150 = vadd.f32 %v4042, %v5086
      %v5151 = vadd.f32 %v4043, %v5089
      %v5152 = vadd.f32 %v4044, %v5091
      %v5153 = vadd.f32 %v4045, %v5094
      %v5154 = vadd.f32 %v4046, %v5096
      %v5155 = vadd.f32 %v4047, %v5099
      %v5156 = vadd.f32 %v4048, %v5101
      %v5157 = vadd.f32 %v4049, %v5104
      %v5158 = vadd.f32 %v4050, %v5106
      %v5159 = vadd.f32 %v4051, %v5109
      %v5160 = vadd.f32 %v4052, %v5111
      %5161 = vst [vmem:[#allocation2] sm:$0xff] %v5113
      %5162 = vst [vmem:[#allocation2 + $0x8] sm:$0xff] %v5114
      %5163 = vst [vmem:[#allocation2 + $0x10] sm:$0xff] %v5115
      %5164 = vst [vmem:[#allocation2 + $0x18] sm:$0xff] %v5116
      %5165 = vst [vmem:[#allocation2 + $0x20] sm:$0xff] %v5117
      %5166 = vst [vmem:[#allocation2 + $0x28] sm:$0xff] %v5118
      %5167 = vst [vmem:[#allocation2 + $0x30] sm:$0xff] %v5119
      %5168 = vst [vmem:[#allocation2 + $0x38] sm:$0xff] %v5120
      %5169 = vst [vmem:[#allocation2 + $0x40] sm:$0xff] %v5121
      %5170 = vst [vmem:[#allocation2 + $0x48] sm:$0xff] %v5122
      %5171 = vst [vmem:[#allocation2 + $0x50] sm:$0xff] %v5123
      %5172 = vst [vmem:[#allocation2 + $0x58] sm:$0xff] %v5124
      %5173 = vst [vmem:[#allocation2 + $0x60] sm:$0xff] %v5125
      %5174 = vst [vmem:[#allocation2 + $0x68] sm:$0xff] %v5126
      %5175 = vst [vmem:[#allocation2 + $0x70] sm:$0xff] %v5127
      %5176 = vst [vmem:[#allocation2 + $0x78] sm:$0xff] %v5128
      %5177 = vst [vmem:[#allocation2 + $0x80] sm:$0xff] %v5129
      %5178 = vst [vmem:[#allocation2 + $0x88] sm:$0xff] %v5130
      %5179 = vst [vmem:[#allocation2 + $0x90] sm:$0xff] %v5131
      %5180 = vst [vmem:[#allocation2 + $0x98] sm:$0xff] %v5132
      %5181 = vst [vmem:[#allocation2 + $0xa0] sm:$0xff] %v5133
      %5182 = vst [vmem:[#allocation2 + $0xa8] sm:$0xff] %v5134
      %5183 = vst [vmem:[#allocation2 + $0xb0] sm:$0xff] %v5135
      %5184 = vst [vmem:[#allocation2 + $0xb8] sm:$0xff] %v5136
      %5185 = vst [vmem:[#allocation2 + $0xc0] sm:$0xff] %v5137
      %5186 = vst [vmem:[#allocation2 + $0xc8] sm:$0xff] %v5138
      %5187 = vst [vmem:[#allocation2 + $0xd0] sm:$0xff] %v5139
      %5188 = vst [vmem:[#allocation2 + $0xd8] sm:$0xff] %v5140
      %5189 = vst [vmem:[#allocation2 + $0xe0] sm:$0xff] %v5141
      %5190 = vst [vmem:[#allocation2 + $0xe8] sm:$0xff] %v5142
      %5191 = vst [vmem:[#allocation2 + $0xf0] sm:$0xff] %v5143
      %5192 = vst [vmem:[#allocation2 + $0xf8] sm:$0xff] %v5144
      %5193 = vst [vmem:[#allocation2 + $0x100] sm:$0xff] %v5145
      %5194 = vst [vmem:[#allocation2 + $0x108] sm:$0xff] %v5146
      %5195 = vst [vmem:[#allocation2 + $0x110] sm:$0xff] %v5147
      %5196 = vst [vmem:[#allocation2 + $0x118] sm:$0xff] %v5148
      %5197 = vst [vmem:[#allocation2 + $0x120] sm:$0xff] %v5149
      %5198 = vst [vmem:[#allocation2 + $0x128] sm:$0xff] %v5150
      %5199 = vst [vmem:[#allocation2 + $0x130] sm:$0xff] %v5151
      %5200 = vst [vmem:[#allocation2 + $0x138] sm:$0xff] %v5152
      %5201 = vst [vmem:[#allocation2 + $0x140] sm:$0xff] %v5153
      %5202 = vst [vmem:[#allocation2 + $0x148] sm:$0xff] %v5154
      %5203 = vst [vmem:[#allocation2 + $0x150] sm:$0xff] %v5155
      %5204 = vst [vmem:[#allocation2 + $0x158] sm:$0xff] %v5156
      %5205 = vst [vmem:[#allocation2 + $0x160] sm:$0xff] %v5157
      %5206 = vst [vmem:[#allocation2 + $0x168] sm:$0xff] %v5158
      %5207 = vst [vmem:[#allocation2 + $0x170] sm:$0xff] %v5159
      %5208 = vst [vmem:[#allocation2 + $0x178] sm:$0xff] %v5160
      %v5209 = vld [vmem:[#allocation2] sm:$0xff]
      %v5210 = vld [vmem:[#allocation2 + $0x8] sm:$0xff]
      %v5211 = vld [vmem:[#allocation2 + $0x10] sm:$0xff]
      %v5212 = vld [vmem:[#allocation2 + $0x18] sm:$0xff]
      %v5213 = vld [vmem:[#allocation2 + $0x20] sm:$0xff]
      %v5214 = vld [vmem:[#allocation2 + $0x28] sm:$0xff]
      %v5215 = vld [vmem:[#allocation2 + $0x30] sm:$0xff]
      %v5216 = vld [vmem:[#allocation2 + $0x38] sm:$0xff]
      %v5217 = vld [vmem:[#allocation2 + $0x40] sm:$0xff]
      %v5218 = vld [vmem:[#allocation2 + $0x48] sm:$0xff]
      %v5219 = vld [vmem:[#allocation2 + $0x50] sm:$0xff]
      %v5220 = vld [vmem:[#allocation2 + $0x58] sm:$0xff]
      %v5221 = vld [vmem:[#allocation2 + $0x60] sm:$0xff]
      %v5222 = vld [vmem:[#allocation2 + $0x68] sm:$0xff]
      %v5223 = vld [vmem:[#allocation2 + $0x70] sm:$0xff]
      %v5224 = vld [vmem:[#allocation2 + $0x78] sm:$0xff]
      %v5225 = vld [vmem:[#allocation2 + $0x80] sm:$0xff]
      %v5226 = vld [vmem:[#allocation2 + $0x88] sm:$0xff]
      %v5227 = vld [vmem:[#allocation2 + $0x90] sm:$0xff]
      %v5228 = vld [vmem:[#allocation2 + $0x98] sm:$0xff]
      %v5229 = vld [vmem:[#allocation2 + $0xa0] sm:$0xff]
      %v5230 = vld [vmem:[#allocation2 + $0xa8] sm:$0xff]
      %v5231 = vld [vmem:[#allocation2 + $0xb0] sm:$0xff]
      %v5232 = vld [vmem:[#allocation2 + $0xb8] sm:$0xff]
      %v5233 = vld [vmem:[#allocation2 + $0xc0] sm:$0xff]
      %v5234 = vld [vmem:[#allocation2 + $0xc8] sm:$0xff]
      %v5235 = vld [vmem:[#allocation2 + $0xd0] sm:$0xff]
      %v5236 = vld [vmem:[#allocation2 + $0xd8] sm:$0xff]
      %v5237 = vld [vmem:[#allocation2 + $0xe0] sm:$0xff]
      %v5238 = vld [vmem:[#allocation2 + $0xe8] sm:$0xff]
      %v5239 = vld [vmem:[#allocation2 + $0xf0] sm:$0xff]
      %v5240 = vld [vmem:[#allocation2 + $0xf8] sm:$0xff]
      %v5241 = vld [vmem:[#allocation2 + $0x100] sm:$0xff]
      %v5242 = vld [vmem:[#allocation2 + $0x108] sm:$0xff]
      %v5243 = vld [vmem:[#allocation2 + $0x110] sm:$0xff]
      %v5244 = vld [vmem:[#allocation2 + $0x118] sm:$0xff]
      %v5245 = vld [vmem:[#allocation2 + $0x120] sm:$0xff]
      %v5246 = vld [vmem:[#allocation2 + $0x128] sm:$0xff]
      %v5247 = vld [vmem:[#allocation2 + $0x130] sm:$0xff]
      %v5248 = vld [vmem:[#allocation2 + $0x138] sm:$0xff]
      %v5249 = vld [vmem:[#allocation2 + $0x140] sm:$0xff]
      %v5250 = vld [vmem:[#allocation2 + $0x148] sm:$0xff]
      %v5251 = vld [vmem:[#allocation2 + $0x150] sm:$0xff]
      %v5252 = vld [vmem:[#allocation2 + $0x158] sm:$0xff]
      %v5253 = vld [vmem:[#allocation2 + $0x160] sm:$0xff]
      %v5254 = vld [vmem:[#allocation2 + $0x168] sm:$0xff]
      %v5255 = vld [vmem:[#allocation2 + $0x170] sm:$0xff]
      %v5256 = vld [vmem:[#allocation2 + $0x178] sm:$0xff]
      %v5257 = vld [vmem:[#allocation3 + $0x54] sm:$0xff]
      %v5258 = vld [vmem:[#allocation3 + $0x5c] sm:$0xf]
      %v5259 = vld [vmem:[#allocation3 + $0x60] sm:$0xff]
      %v5260 = vld [vmem:[#allocation3 + $0x68] sm:$0xf]
      %v5261 = vld [vmem:[#allocation3 + $0x6c] sm:$0xff]
      %v5262 = vld [vmem:[#allocation3 + $0x74] sm:$0xf]
      %v5263 = vld [vmem:[#allocation3 + $0x78] sm:$0xff]
      %v5264 = vld [vmem:[#allocation3 + $0x80] sm:$0xf]
      %v5265 = vld [vmem:[#allocation3 + $0x84] sm:$0xff]
      %v5266 = vld [vmem:[#allocation3 + $0x8c] sm:$0xf]
      %v5267 = vld [vmem:[#allocation3 + $0x90] sm:$0xff]
      %v5268 = vld [vmem:[#allocation3 + $0x98] sm:$0xf]
      %v5269 = vld [vmem:[#allocation3 + $0x9c] sm:$0xff]
      %v5270 = vld [vmem:[#allocation3 + $0xa4] sm:$0xf]
      %v5271 = vld [vmem:[#allocation3 + $0xa8] sm:$0xff]
      %v5272 = vld [vmem:[#allocation3 + $0xb0] sm:$0xf]
      %v5273 = vld [vmem:[#allocation3 + $0xb4] sm:$0xff]
      %v5274 = vld [vmem:[#allocation3 + $0xbc] sm:$0xf]
      %v5275 = vld [vmem:[#allocation3 + $0xc0] sm:$0xff]
      %v5276 = vld [vmem:[#allocation3 + $0xc8] sm:$0xf]
      %v5277 = vld [vmem:[#allocation3 + $0xcc] sm:$0xff]
      %v5278 = vld [vmem:[#allocation3 + $0xd4] sm:$0xf]
      %v5279 = vld [vmem:[#allocation3 + $0xd8] sm:$0xff]
      %v5280 = vld [vmem:[#allocation3 + $0xe0] sm:$0xf]
      %v5281 = vld [vmem:[#allocation3 + $0xe4] sm:$0xff]
      %v5282 = vld [vmem:[#allocation3 + $0xec] sm:$0xf]
      %v5283 = vld [vmem:[#allocation3 + $0xf0] sm:$0xff]
      %v5284 = vld [vmem:[#allocation3 + $0xf8] sm:$0xf]
      %v5285 = vld [vmem:[#allocation3 + $0xfc] sm:$0xff]
      %v5286 = vld [vmem:[#allocation3 + $0x104] sm:$0xf]
      %v5287 = vld [vmem:[#allocation3 + $0x108] sm:$0xff]
      %v5288 = vld [vmem:[#allocation3 + $0x110] sm:$0xf]
      %v5289 = vld [vmem:[#allocation3 + $0x114] sm:$0xff]
      %v5290 = vld [vmem:[#allocation3 + $0x11c] sm:$0xf]
      %v5291 = vld [vmem:[#allocation3 + $0x120] sm:$0xff]
      %v5292 = vld [vmem:[#allocation3 + $0x128] sm:$0xf]
      %v5293 = vld [vmem:[#allocation3 + $0x12c] sm:$0xff]
      %v5294 = vld [vmem:[#allocation3 + $0x134] sm:$0xf]
      %v5295 = vld [vmem:[#allocation3 + $0x138] sm:$0xff]
      %v5296 = vld [vmem:[#allocation3 + $0x140] sm:$0xf]
      %v5297 = vld [vmem:[#allocation3 + $0x144] sm:$0xff]
      %v5298 = vld [vmem:[#allocation3 + $0x14c] sm:$0xf]
      %v5299 = vld [vmem:[#allocation3 + $0x150] sm:$0xff]
      %v5300 = vld [vmem:[#allocation3 + $0x158] sm:$0xf]
      %v5301 = vld [vmem:[#allocation3 + $0x15c] sm:$0xff]
      %v5302 = vld [vmem:[#allocation3 + $0x164] sm:$0xf]
      %v5303 = vld [vmem:[#allocation3 + $0x168] sm:$0xff]
      %v5304 = vld [vmem:[#allocation3 + $0x170] sm:$0xf]
      %v5305 = vld [vmem:[#allocation3 + $0x174] sm:$0xff]
      %v5306 = vld [vmem:[#allocation3 + $0x17c] sm:$0xf]
      %v5307 = vld [vmem:[#allocation3 + $0x180] sm:$0xff]
      %v5308 = vld [vmem:[#allocation3 + $0x188] sm:$0xf]
      %v5309 = vld [vmem:[#allocation3 + $0x18c] sm:$0xff]
      %v5310 = vld [vmem:[#allocation3 + $0x194] sm:$0xf]
      %v5311 = vld [vmem:[#allocation3 + $0x198] sm:$0xff]
      %v5312 = vld [vmem:[#allocation3 + $0x1a0] sm:$0xf]
      %v5313 = vld [vmem:[#allocation3 + $0x1a4] sm:$0xff]
      %v5314 = vld [vmem:[#allocation3 + $0x1ac] sm:$0xf]
      %v5315 = vld [vmem:[#allocation3 + $0x1b0] sm:$0xff]
      %v5316 = vld [vmem:[#allocation3 + $0x1b8] sm:$0xf]
      %v5317 = vld [vmem:[#allocation3 + $0x1bc] sm:$0xff]
      %v5318 = vld [vmem:[#allocation3 + $0x1c4] sm:$0xf]
      %v5319 = vld [vmem:[#allocation3 + $0x1c8] sm:$0xff]
      %v5320 = vld [vmem:[#allocation3 + $0x1d0] sm:$0xf]
      %v5321 = vld [vmem:[#allocation3 + $0x1d4] sm:$0xff]
      %v5322 = vld [vmem:[#allocation3 + $0x1dc] sm:$0xf]
      %v5323 = vld [vmem:[#allocation3 + $0x1e0] sm:$0xff]
      %v5324 = vld [vmem:[#allocation3 + $0x1e8] sm:$0xf]
      %v5325 = vld [vmem:[#allocation3 + $0x1ec] sm:$0xff]
      %v5326 = vld [vmem:[#allocation3 + $0x1f4] sm:$0xf]
      %v5327 = vld [vmem:[#allocation3 + $0x1f8] sm:$0xff]
      %v5328 = vld [vmem:[#allocation3 + $0x200] sm:$0xf]
      %v5329 = vld [vmem:[#allocation3 + $0x204] sm:$0xff]
      %v5330 = vld [vmem:[#allocation3 + $0x20c] sm:$0xf]
      %v5331 = vld [vmem:[#allocation3 + $0x210] sm:$0xff]
      %v5332 = vld [vmem:[#allocation3 + $0x218] sm:$0xf]
      %v5333 = vld [vmem:[#allocation3 + $0x21c] sm:$0xff]
      %v5334 = vld [vmem:[#allocation3 + $0x224] sm:$0xf]
      %v5335 = vld [vmem:[#allocation3 + $0x228] sm:$0xff]
      %v5336 = vld [vmem:[#allocation3 + $0x230] sm:$0xf]
      %v5337 = vld [vmem:[#allocation3 + $0x234] sm:$0xff]
      %v5338 = vld [vmem:[#allocation3 + $0x23c] sm:$0xf]
      %v5339 = vld [vmem:[#allocation3 + $0x240] sm:$0xff]
      %v5340 = vld [vmem:[#allocation3 + $0x248] sm:$0xf]
      %v5341 = vld [vmem:[#allocation3 + $0x24c] sm:$0xff]
      %v5342 = vld [vmem:[#allocation3 + $0x254] sm:$0xf]
      %v5343 = vld [vmem:[#allocation3 + $0x258] sm:$0xff]
      %v5344 = vld [vmem:[#allocation3 + $0x260] sm:$0xf]
      %v5345 = vld [vmem:[#allocation3 + $0x264] sm:$0xff]
      %v5346 = vld [vmem:[#allocation3 + $0x26c] sm:$0xf]
      %v5347 = vld [vmem:[#allocation3 + $0x270] sm:$0xff]
      %v5348 = vld [vmem:[#allocation3 + $0x278] sm:$0xf]
      %v5349 = vld [vmem:[#allocation3 + $0x27c] sm:$0xff]
      %v5350 = vld [vmem:[#allocation3 + $0x284] sm:$0xf]
      %v5351 = vld [vmem:[#allocation3 + $0x288] sm:$0xff]
      %v5352 = vld [vmem:[#allocation3 + $0x290] sm:$0xf]
      %s5353 = scalar_lea.vmem %s2, 384
      %v5354 = vld [vmem:[%s5353] sm:$0xf]
      %v5355 = vld [vmem:[%s5353 + $0x4] sm:$0xf]
      %v5356 = vld [vmem:[%s5353 + $0x8] sm:$0xf]
      %v5357 = vld [vmem:[%s5353 + $0xc] sm:$0xf]
      %v5358 = vld [vmem:[%s5353 + $0x10] sm:$0xf]
      %v5359 = vld [vmem:[%s5353 + $0x14] sm:$0xf]
      %v5360 = vld [vmem:[%s5353 + $0x18] sm:$0xf]
      %v5361 = vld [vmem:[%s5353 + $0x1c] sm:$0xf]
      %v5362 = vld [vmem:[%s5353 + $0x20] sm:$0xf]
      %v5363 = vld [vmem:[%s5353 + $0x24] sm:$0xf]
      %v5364 = vld [vmem:[%s5353 + $0x28] sm:$0xf]
      %v5365 = vld [vmem:[%s5353 + $0x2c] sm:$0xf]
      %v5366 = vld [vmem:[%s5353 + $0x30] sm:$0xf]
      %v5367 = vld [vmem:[%s5353 + $0x34] sm:$0xf]
      %v5368 = vld [vmem:[%s5353 + $0x38] sm:$0xf]
      %v5369 = vld [vmem:[%s5353 + $0x3c] sm:$0xf]
      %v5370 = vld [vmem:[%s5353 + $0x40] sm:$0xf]
      %v5371 = vld [vmem:[%s5353 + $0x44] sm:$0xf]
      %v5372 = vld [vmem:[%s5353 + $0x48] sm:$0xf]
      %v5373 = vld [vmem:[%s5353 + $0x4c] sm:$0xf]
      %v5374 = vld [vmem:[%s5353 + $0x50] sm:$0xf]
      %v5375 = vld [vmem:[%s5353 + $0x54] sm:$0xf]
      %v5376 = vld [vmem:[%s5353 + $0x58] sm:$0xf]
      %v5377 = vld [vmem:[%s5353 + $0x5c] sm:$0xf]
      %v5378 = vld [vmem:[%s5353 + $0x60] sm:$0xf]
      %v5379 = vld [vmem:[%s5353 + $0x64] sm:$0xf]
      %v5380 = vld [vmem:[%s5353 + $0x68] sm:$0xf]
      %v5381 = vld [vmem:[%s5353 + $0x6c] sm:$0xf]
      %v5382 = vld [vmem:[%s5353 + $0x70] sm:$0xf]
      %v5383 = vld [vmem:[%s5353 + $0x74] sm:$0xf]
      %v5384 = vld [vmem:[%s5353 + $0x78] sm:$0xf]
      %v5385 = vld [vmem:[%s5353 + $0x7c] sm:$0xf]
      %v5386 = vld [vmem:[%s5353 + $0x80] sm:$0xf]
      %v5387 = vld [vmem:[%s5353 + $0x84] sm:$0xf]
      %v5388 = vld [vmem:[%s5353 + $0x88] sm:$0xf]
      %v5389 = vld [vmem:[%s5353 + $0x8c] sm:$0xf]
      %v5390 = vld [vmem:[%s5353 + $0x90] sm:$0xf]
      %v5391 = vld [vmem:[%s5353 + $0x94] sm:$0xf]
      %v5392 = vld [vmem:[%s5353 + $0x98] sm:$0xf]
      %v5393 = vld [vmem:[%s5353 + $0x9c] sm:$0xf]
      %v5394 = vld [vmem:[%s5353 + $0xa0] sm:$0xf]
      %v5395 = vld [vmem:[%s5353 + $0xa4] sm:$0xf]
      %v5396 = vld [vmem:[%s5353 + $0xa8] sm:$0xf]
      %v5397 = vld [vmem:[%s5353 + $0xac] sm:$0xf]
      %v5398 = vld [vmem:[%s5353 + $0xb0] sm:$0xf]
      %v5399 = vld [vmem:[%s5353 + $0xb4] sm:$0xf]
      %v5400 = vld [vmem:[%s5353 + $0xb8] sm:$0xf]
      %v5401 = vld [vmem:[%s5353 + $0xbc] sm:$0xf]
      %v5498 = vunpack.c.l.b16 %v5257
      %v5499 = vunpack.c.h.b16 %v5257
      %v5500 = vunpack.c.l.b16 %v5258
      %v5501 = vunpack.c.l.b16 %v5259
      %v5502 = vunpack.c.h.b16 %v5259
      %v5503 = vunpack.c.l.b16 %v5260
      %v5504 = vunpack.c.l.b16 %v5261
      %v5505 = vunpack.c.h.b16 %v5261
      %v5506 = vunpack.c.l.b16 %v5262
      %v5507 = vunpack.c.l.b16 %v5263
      %v5508 = vunpack.c.h.b16 %v5263
      %v5509 = vunpack.c.l.b16 %v5264
      %v5510 = vunpack.c.l.b16 %v5265
      %v5511 = vunpack.c.h.b16 %v5265
      %v5512 = vunpack.c.l.b16 %v5266
      %v5513 = vunpack.c.l.b16 %v5267
      %v5514 = vunpack.c.h.b16 %v5267
      %v5515 = vunpack.c.l.b16 %v5268
      %v5516 = vunpack.c.l.b16 %v5269
      %v5517 = vunpack.c.h.b16 %v5269
      %v5518 = vunpack.c.l.b16 %v5270
      %v5519 = vunpack.c.l.b16 %v5271
      %v5520 = vunpack.c.h.b16 %v5271
      %v5521 = vunpack.c.l.b16 %v5272
      %v5522 = vunpack.c.l.b16 %v5273
      %v5523 = vunpack.c.h.b16 %v5273
      %v5524 = vunpack.c.l.b16 %v5274
      %v5525 = vunpack.c.l.b16 %v5275
      %v5526 = vunpack.c.h.b16 %v5275
      %v5527 = vunpack.c.l.b16 %v5276
      %v5528 = vunpack.c.l.b16 %v5277
      %v5529 = vunpack.c.h.b16 %v5277
      %v5530 = vunpack.c.l.b16 %v5278
      %v5531 = vunpack.c.l.b16 %v5279
      %v5532 = vunpack.c.h.b16 %v5279
      %v5533 = vunpack.c.l.b16 %v5280
      %v5534 = vunpack.c.l.b16 %v5281
      %v5535 = vunpack.c.h.b16 %v5281
      %v5536 = vunpack.c.l.b16 %v5282
      %v5537 = vunpack.c.l.b16 %v5283
      %v5538 = vunpack.c.h.b16 %v5283
      %v5539 = vunpack.c.l.b16 %v5284
      %v5540 = vunpack.c.l.b16 %v5285
      %v5541 = vunpack.c.h.b16 %v5285
      %v5542 = vunpack.c.l.b16 %v5286
      %v5543 = vunpack.c.l.b16 %v5287
      %v5544 = vunpack.c.h.b16 %v5287
      %v5545 = vunpack.c.l.b16 %v5288
      %v5546 = vunpack.c.l.b16 %v5289
      %v5547 = vunpack.c.h.b16 %v5289
      %v5548 = vunpack.c.l.b16 %v5290
      %v5549 = vunpack.c.l.b16 %v5291
      %v5550 = vunpack.c.h.b16 %v5291
      %v5551 = vunpack.c.l.b16 %v5292
      %v5552 = vunpack.c.l.b16 %v5293
      %v5553 = vunpack.c.h.b16 %v5293
      %v5554 = vunpack.c.l.b16 %v5294
      %v5555 = vunpack.c.l.b16 %v5295
      %v5556 = vunpack.c.h.b16 %v5295
      %v5557 = vunpack.c.l.b16 %v5296
      %v5558 = vunpack.c.l.b16 %v5297
      %v5559 = vunpack.c.h.b16 %v5297
      %v5560 = vunpack.c.l.b16 %v5298
      %v5561 = vunpack.c.l.b16 %v5299
      %v5562 = vunpack.c.h.b16 %v5299
      %v5563 = vunpack.c.l.b16 %v5300
      %v5564 = vunpack.c.l.b16 %v5301
      %v5565 = vunpack.c.h.b16 %v5301
      %v5566 = vunpack.c.l.b16 %v5302
      %v5567 = vunpack.c.l.b16 %v5303
      %v5568 = vunpack.c.h.b16 %v5303
      %v5569 = vunpack.c.l.b16 %v5304
      %v5570 = vunpack.c.l.b16 %v5305
      %v5571 = vunpack.c.h.b16 %v5305
      %v5572 = vunpack.c.l.b16 %v5306
      %v5573 = vunpack.c.l.b16 %v5307
      %v5574 = vunpack.c.h.b16 %v5307
      %v5575 = vunpack.c.l.b16 %v5308
      %v5576 = vunpack.c.l.b16 %v5309
      %v5577 = vunpack.c.h.b16 %v5309
      %v5578 = vunpack.c.l.b16 %v5310
      %v5579 = vunpack.c.l.b16 %v5311
      %v5580 = vunpack.c.h.b16 %v5311
      %v5581 = vunpack.c.l.b16 %v5312
      %v5582 = vunpack.c.l.b16 %v5313
      %v5583 = vunpack.c.h.b16 %v5313
      %v5584 = vunpack.c.l.b16 %v5314
      %v5585 = vunpack.c.l.b16 %v5315
      %v5586 = vunpack.c.h.b16 %v5315
      %v5587 = vunpack.c.l.b16 %v5316
      %v5588 = vunpack.c.l.b16 %v5317
      %v5589 = vunpack.c.h.b16 %v5317
      %v5590 = vunpack.c.l.b16 %v5318
      %v5591 = vunpack.c.l.b16 %v5319
      %v5592 = vunpack.c.h.b16 %v5319
      %v5593 = vunpack.c.l.b16 %v5320
      %v5594 = vunpack.c.l.b16 %v5321
      %v5595 = vunpack.c.h.b16 %v5321
      %v5596 = vunpack.c.l.b16 %v5322
      %v5597 = vunpack.c.l.b16 %v5323
      %v5598 = vunpack.c.h.b16 %v5323
      %v5599 = vunpack.c.l.b16 %v5324
      %v5600 = vunpack.c.l.b16 %v5325
      %v5601 = vunpack.c.h.b16 %v5325
      %v5602 = vunpack.c.l.b16 %v5326
      %v5603 = vunpack.c.l.b16 %v5327
      %v5604 = vunpack.c.h.b16 %v5327
      %v5605 = vunpack.c.l.b16 %v5328
      %v5606 = vunpack.c.l.b16 %v5329
      %v5607 = vunpack.c.h.b16 %v5329
      %v5608 = vunpack.c.l.b16 %v5330
      %v5609 = vunpack.c.l.b16 %v5331
      %v5610 = vunpack.c.h.b16 %v5331
      %v5611 = vunpack.c.l.b16 %v5332
      %v5612 = vunpack.c.l.b16 %v5333
      %v5613 = vunpack.c.h.b16 %v5333
      %v5614 = vunpack.c.l.b16 %v5334
      %v5615 = vunpack.c.l.b16 %v5335
      %v5616 = vunpack.c.h.b16 %v5335
      %v5617 = vunpack.c.l.b16 %v5336
      %v5618 = vunpack.c.l.b16 %v5337
      %v5619 = vunpack.c.h.b16 %v5337
      %v5620 = vunpack.c.l.b16 %v5338
      %v5621 = vunpack.c.l.b16 %v5339
      %v5622 = vunpack.c.h.b16 %v5339
      %v5623 = vunpack.c.l.b16 %v5340
      %v5624 = vunpack.c.l.b16 %v5341
      %v5625 = vunpack.c.h.b16 %v5341
      %v5626 = vunpack.c.l.b16 %v5342
      %v5627 = vunpack.c.l.b16 %v5343
      %v5628 = vunpack.c.h.b16 %v5343
      %v5629 = vunpack.c.l.b16 %v5344
      %v5630 = vunpack.c.l.b16 %v5345
      %v5631 = vunpack.c.h.b16 %v5345
      %v5632 = vunpack.c.l.b16 %v5346
      %v5633 = vunpack.c.l.b16 %v5347
      %v5634 = vunpack.c.h.b16 %v5347
      %v5635 = vunpack.c.l.b16 %v5348
      %v5636 = vunpack.c.l.b16 %v5349
      %v5637 = vunpack.c.h.b16 %v5349
      %v5638 = vunpack.c.l.b16 %v5350
      %v5639 = vunpack.c.l.b16 %v5351
      %v5640 = vunpack.c.h.b16 %v5351
      %v5641 = vunpack.c.l.b16 %v5352
      %v5642 = vpack.c.b16 %v5501, %v5498
      %v5643 = vpack.c.b16 %v5502, %v5499
      %v5644 = vpack.c.b16 %v5503, %v5500
      %v5645 = vpack.c.b16 %v5507, %v5504
      %v5646 = vpack.c.b16 %v5508, %v5505
      %v5647 = vpack.c.b16 %v5509, %v5506
      %v5648 = vpack.c.b16 %v5513, %v5510
      %v5649 = vpack.c.b16 %v5514, %v5511
      %v5650 = vpack.c.b16 %v5515, %v5512
      %v5651 = vpack.c.b16 %v5519, %v5516
      %v5652 = vpack.c.b16 %v5520, %v5517
      %v5653 = vpack.c.b16 %v5521, %v5518
      %v5654 = vpack.c.b16 %v5525, %v5522
      %v5655 = vpack.c.b16 %v5526, %v5523
      %v5656 = vpack.c.b16 %v5527, %v5524
      %v5657 = vpack.c.b16 %v5531, %v5528
      %v5658 = vpack.c.b16 %v5532, %v5529
      %v5659 = vpack.c.b16 %v5533, %v5530
      %v5660 = vpack.c.b16 %v5537, %v5534
      %v5661 = vpack.c.b16 %v5538, %v5535
      %v5662 = vpack.c.b16 %v5539, %v5536
      %v5663 = vpack.c.b16 %v5543, %v5540
      %v5664 = vpack.c.b16 %v5544, %v5541
      %v5665 = vpack.c.b16 %v5545, %v5542
      %v5666 = vpack.c.b16 %v5549, %v5546
      %v5667 = vpack.c.b16 %v5550, %v5547
      %v5668 = vpack.c.b16 %v5551, %v5548
      %v5669 = vpack.c.b16 %v5555, %v5552
      %v5670 = vpack.c.b16 %v5556, %v5553
      %v5671 = vpack.c.b16 %v5557, %v5554
      %v5672 = vpack.c.b16 %v5561, %v5558
      %v5673 = vpack.c.b16 %v5562, %v5559
      %v5674 = vpack.c.b16 %v5563, %v5560
      %v5675 = vpack.c.b16 %v5567, %v5564
      %v5676 = vpack.c.b16 %v5568, %v5565
      %v5677 = vpack.c.b16 %v5569, %v5566
      %v5678 = vpack.c.b16 %v5573, %v5570
      %v5679 = vpack.c.b16 %v5574, %v5571
      %v5680 = vpack.c.b16 %v5575, %v5572
      %v5681 = vpack.c.b16 %v5579, %v5576
      %v5682 = vpack.c.b16 %v5580, %v5577
      %v5683 = vpack.c.b16 %v5581, %v5578
      %v5684 = vpack.c.b16 %v5585, %v5582
      %v5685 = vpack.c.b16 %v5586, %v5583
      %v5686 = vpack.c.b16 %v5587, %v5584
      %v5687 = vpack.c.b16 %v5591, %v5588
      %v5688 = vpack.c.b16 %v5592, %v5589
      %v5689 = vpack.c.b16 %v5593, %v5590
      %v5690 = vpack.c.b16 %v5597, %v5594
      %v5691 = vpack.c.b16 %v5598, %v5595
      %v5692 = vpack.c.b16 %v5599, %v5596
      %v5693 = vpack.c.b16 %v5603, %v5600
      %v5694 = vpack.c.b16 %v5604, %v5601
      %v5695 = vpack.c.b16 %v5605, %v5602
      %v5696 = vpack.c.b16 %v5609, %v5606
      %v5697 = vpack.c.b16 %v5610, %v5607
      %v5698 = vpack.c.b16 %v5611, %v5608
      %v5699 = vpack.c.b16 %v5615, %v5612
      %v5700 = vpack.c.b16 %v5616, %v5613
      %v5701 = vpack.c.b16 %v5617, %v5614
      %v5702 = vpack.c.b16 %v5621, %v5618
      %v5703 = vpack.c.b16 %v5622, %v5619
      %v5704 = vpack.c.b16 %v5623, %v5620
      %v5705 = vpack.c.b16 %v5627, %v5624
      %v5706 = vpack.c.b16 %v5628, %v5625
      %v5707 = vpack.c.b16 %v5629, %v5626
      %v5708 = vpack.c.b16 %v5633, %v5630
      %v5709 = vpack.c.b16 %v5634, %v5631
      %v5710 = vpack.c.b16 %v5635, %v5632
      %v5711 = vpack.c.b16 %v5639, %v5636
      %v5712 = vpack.c.b16 %v5640, %v5637
      %v5713 = vpack.c.b16 %v5641, %v5638
      %v5834 = vunpack.c.l.b16 %v5354
      %v5835 = vunpack.c.l.b16 %v5355
      %v5836 = vunpack.c.l.b16 %v5356
      %v5837 = vunpack.c.l.b16 %v5357
      %v5838 = vunpack.c.l.b16 %v5358
      %v5839 = vunpack.c.l.b16 %v5359
      %v5840 = vunpack.c.l.b16 %v5360
      %v5841 = vunpack.c.l.b16 %v5361
      %v5842 = vunpack.c.l.b16 %v5362
      %v5843 = vunpack.c.l.b16 %v5363
      %v5844 = vunpack.c.l.b16 %v5364
      %v5845 = vunpack.c.l.b16 %v5365
      %v5846 = vunpack.c.l.b16 %v5366
      %v5847 = vunpack.c.l.b16 %v5367
      %v5848 = vunpack.c.l.b16 %v5368
      %v5849 = vunpack.c.l.b16 %v5369
      %v5850 = vunpack.c.l.b16 %v5370
      %v5851 = vunpack.c.l.b16 %v5371
      %v5852 = vunpack.c.l.b16 %v5372
      %v5853 = vunpack.c.l.b16 %v5373
      %v5854 = vunpack.c.l.b16 %v5374
      %v5855 = vunpack.c.l.b16 %v5375
      %v5856 = vunpack.c.l.b16 %v5376
      %v5857 = vunpack.c.l.b16 %v5377
      %v5858 = vunpack.c.l.b16 %v5378
      %v5859 = vunpack.c.l.b16 %v5379
      %v5860 = vunpack.c.l.b16 %v5380
      %v5861 = vunpack.c.l.b16 %v5381
      %v5862 = vunpack.c.l.b16 %v5382
      %v5863 = vunpack.c.l.b16 %v5383
      %v5864 = vunpack.c.l.b16 %v5384
      %v5865 = vunpack.c.l.b16 %v5385
      %v5866 = vunpack.c.l.b16 %v5386
      %v5867 = vunpack.c.l.b16 %v5387
      %v5868 = vunpack.c.l.b16 %v5388
      %v5869 = vunpack.c.l.b16 %v5389
      %v5870 = vunpack.c.l.b16 %v5390
      %v5871 = vunpack.c.l.b16 %v5391
      %v5872 = vunpack.c.l.b16 %v5392
      %v5873 = vunpack.c.l.b16 %v5393
      %v5874 = vunpack.c.l.b16 %v5394
      %v5875 = vunpack.c.l.b16 %v5395
      %v5876 = vunpack.c.l.b16 %v5396
      %v5877 = vunpack.c.l.b16 %v5397
      %v5878 = vunpack.c.l.b16 %v5398
      %v5879 = vunpack.c.l.b16 %v5399
      %v5880 = vunpack.c.l.b16 %v5400
      %v5881 = vunpack.c.l.b16 %v5401
      %v5882 = vpack.c.b16 %v5835, %v5834
      %v5883 = vpack.c.b16 %v5837, %v5836
      %v5884 = vpack.c.b16 %v5839, %v5838
      %v5885 = vpack.c.b16 %v5841, %v5840
      %v5886 = vpack.c.b16 %v5843, %v5842
      %v5887 = vpack.c.b16 %v5845, %v5844
      %v5888 = vpack.c.b16 %v5847, %v5846
      %v5889 = vpack.c.b16 %v5849, %v5848
      %v5890 = vpack.c.b16 %v5851, %v5850
      %v5891 = vpack.c.b16 %v5853, %v5852
      %v5892 = vpack.c.b16 %v5855, %v5854
      %v5893 = vpack.c.b16 %v5857, %v5856
      %v5894 = vpack.c.b16 %v5859, %v5858
      %v5895 = vpack.c.b16 %v5861, %v5860
      %v5896 = vpack.c.b16 %v5863, %v5862
      %v5897 = vpack.c.b16 %v5865, %v5864
      %v5898 = vpack.c.b16 %v5867, %v5866
      %v5899 = vpack.c.b16 %v5869, %v5868
      %v5900 = vpack.c.b16 %v5871, %v5870
      %v5901 = vpack.c.b16 %v5873, %v5872
      %v5902 = vpack.c.b16 %v5875, %v5874
      %v5903 = vpack.c.b16 %v5877, %v5876
      %v5904 = vpack.c.b16 %v5879, %v5878
      %v5905 = vpack.c.b16 %v5881, %v5880
      %5930 = vmatpush.bf16.msra.mxu0 %v5889
      %5931 = vmatpush.bf16.msra.mxu0 %v5888
      %5932 = vmatpush.bf16.msra.mxu0 %v5887
      %5933 = vmatpush.bf16.msra.mxu0 %v5886
      %5934 = vmatpush.bf16.msra.mxu0 %v5885
      %5935 = vmatpush.bf16.msra.mxu0 %v5884
      %5936 = vmatpush.bf16.msra.mxu0 %v5883
      %5937 = vmatpush.bf16.msra.mxu0 %v5882
      %5938 = vmatmul.bf16.gmra.mxu0 %v5642
      %v5939 = vpop.f32.mrf.mxu0
      %v5940 = vadd.f32 0.0, %v5939
      %v5941 = vpop.f32.mrf.mxu0
      %v5942 = vadd.f32 0.0, %v5941
      %5943 = vmatmul.bf16.gmra.mxu0 %v5645
      %v5944 = vpop.f32.mrf.mxu0
      %v5945 = vadd.f32 0.0, %v5944
      %v5946 = vpop.f32.mrf.mxu0
      %v5947 = vadd.f32 0.0, %v5946
      %5948 = vmatmul.bf16.gmra.mxu0 %v5648
      %v5949 = vpop.f32.mrf.mxu0
      %v5950 = vadd.f32 0.0, %v5949
      %v5951 = vpop.f32.mrf.mxu0
      %v5952 = vadd.f32 0.0, %v5951
      %5953 = vmatmul.bf16.gmra.mxu0 %v5651
      %v5954 = vpop.f32.mrf.mxu0
      %v5955 = vadd.f32 0.0, %v5954
      %v5956 = vpop.f32.mrf.mxu0
      %v5957 = vadd.f32 0.0, %v5956
      %5958 = vmatmul.bf16.gmra.mxu0 %v5654
      %v5959 = vpop.f32.mrf.mxu0
      %v5960 = vadd.f32 0.0, %v5959
      %v5961 = vpop.f32.mrf.mxu0
      %v5962 = vadd.f32 0.0, %v5961
      %5963 = vmatmul.bf16.gmra.mxu0 %v5657
      %v5964 = vpop.f32.mrf.mxu0
      %v5965 = vadd.f32 0.0, %v5964
      %v5966 = vpop.f32.mrf.mxu0
      %v5967 = vadd.f32 0.0, %v5966
      %5968 = vmatmul.bf16.gmra.mxu0 %v5660
      %v5969 = vpop.f32.mrf.mxu0
      %v5970 = vadd.f32 0.0, %v5969
      %v5971 = vpop.f32.mrf.mxu0
      %v5972 = vadd.f32 0.0, %v5971
      %5973 = vmatmul.bf16.gmra.mxu0 %v5663
      %v5974 = vpop.f32.mrf.mxu0
      %v5975 = vadd.f32 0.0, %v5974
      %v5976 = vpop.f32.mrf.mxu0
      %v5977 = vadd.f32 0.0, %v5976
      %5978 = vmatmul.bf16.gmra.mxu0 %v5666
      %v5979 = vpop.f32.mrf.mxu0
      %v5980 = vadd.f32 0.0, %v5979
      %v5981 = vpop.f32.mrf.mxu0
      %v5982 = vadd.f32 0.0, %v5981
      %5983 = vmatmul.bf16.gmra.mxu0 %v5669
      %v5984 = vpop.f32.mrf.mxu0
      %v5985 = vadd.f32 0.0, %v5984
      %v5986 = vpop.f32.mrf.mxu0
      %v5987 = vadd.f32 0.0, %v5986
      %5988 = vmatmul.bf16.gmra.mxu0 %v5672
      %v5989 = vpop.f32.mrf.mxu0
      %v5990 = vadd.f32 0.0, %v5989
      %v5991 = vpop.f32.mrf.mxu0
      %v5992 = vadd.f32 0.0, %v5991
      %5993 = vmatmul.bf16.gmra.mxu0 %v5675
      %v5994 = vpop.f32.mrf.mxu0
      %v5995 = vadd.f32 0.0, %v5994
      %v5996 = vpop.f32.mrf.mxu0
      %v5997 = vadd.f32 0.0, %v5996
      %5998 = vmatmul.bf16.gmra.mxu0 %v5678
      %v5999 = vpop.f32.mrf.mxu0
      %v6000 = vadd.f32 0.0, %v5999
      %v6001 = vpop.f32.mrf.mxu0
      %v6002 = vadd.f32 0.0, %v6001
      %6003 = vmatmul.bf16.gmra.mxu0 %v5681
      %v6004 = vpop.f32.mrf.mxu0
      %v6005 = vadd.f32 0.0, %v6004
      %v6006 = vpop.f32.mrf.mxu0
      %v6007 = vadd.f32 0.0, %v6006
      %6008 = vmatmul.bf16.gmra.mxu0 %v5684
      %v6009 = vpop.f32.mrf.mxu0
      %v6010 = vadd.f32 0.0, %v6009
      %v6011 = vpop.f32.mrf.mxu0
      %v6012 = vadd.f32 0.0, %v6011
      %6013 = vmatmul.bf16.gmra.mxu0 %v5687
      %v6014 = vpop.f32.mrf.mxu0
      %v6015 = vadd.f32 0.0, %v6014
      %v6016 = vpop.f32.mrf.mxu0
      %v6017 = vadd.f32 0.0, %v6016
      %6018 = vmatmul.bf16.gmra.mxu0 %v5690
      %v6019 = vpop.f32.mrf.mxu0
      %v6020 = vadd.f32 0.0, %v6019
      %v6021 = vpop.f32.mrf.mxu0
      %v6022 = vadd.f32 0.0, %v6021
      %6023 = vmatmul.bf16.gmra.mxu0 %v5693
      %v6024 = vpop.f32.mrf.mxu0
      %v6025 = vadd.f32 0.0, %v6024
      %v6026 = vpop.f32.mrf.mxu0
      %v6027 = vadd.f32 0.0, %v6026
      %6028 = vmatmul.bf16.gmra.mxu0 %v5696
      %v6029 = vpop.f32.mrf.mxu0
      %v6030 = vadd.f32 0.0, %v6029
      %v6031 = vpop.f32.mrf.mxu0
      %v6032 = vadd.f32 0.0, %v6031
      %6033 = vmatmul.bf16.gmra.mxu0 %v5699
      %v6034 = vpop.f32.mrf.mxu0
      %v6035 = vadd.f32 0.0, %v6034
      %v6036 = vpop.f32.mrf.mxu0
      %v6037 = vadd.f32 0.0, %v6036
      %6038 = vmatmul.bf16.gmra.mxu0 %v5702
      %v6039 = vpop.f32.mrf.mxu0
      %v6040 = vadd.f32 0.0, %v6039
      %v6041 = vpop.f32.mrf.mxu0
      %v6042 = vadd.f32 0.0, %v6041
      %6043 = vmatmul.bf16.gmra.mxu0 %v5705
      %v6044 = vpop.f32.mrf.mxu0
      %v6045 = vadd.f32 0.0, %v6044
      %v6046 = vpop.f32.mrf.mxu0
      %v6047 = vadd.f32 0.0, %v6046
      %6048 = vmatmul.bf16.gmra.mxu0 %v5708
      %v6049 = vpop.f32.mrf.mxu0
      %v6050 = vadd.f32 0.0, %v6049
      %v6051 = vpop.f32.mrf.mxu0
      %v6052 = vadd.f32 0.0, %v6051
      %6053 = vmatmul.bf16.gmra.mxu0 %v5711
      %v6054 = vpop.f32.mrf.mxu0
      %v6055 = vadd.f32 0.0, %v6054
      %v6056 = vpop.f32.mrf.mxu0
      %v6057 = vadd.f32 0.0, %v6056
      %6058 = vdwg.mxu0
      %6059 = vmatpush.bf16.msra.mxu0 %v5897
      %6060 = vmatpush.bf16.msra.mxu0 %v5896
      %6061 = vmatpush.bf16.msra.mxu0 %v5895
      %6062 = vmatpush.bf16.msra.mxu0 %v5894
      %6063 = vmatpush.bf16.msra.mxu0 %v5893
      %6064 = vmatpush.bf16.msra.mxu0 %v5892
      %6065 = vmatpush.bf16.msra.mxu0 %v5891
      %6066 = vmatpush.bf16.msra.mxu0 %v5890
      %6067 = vmatmul.bf16.gmra.mxu0 %v5643
      %v6068 = vpop.f32.mrf.mxu0
      %v6069 = vadd.f32 %v5940, %v6068
      %v6070 = vpop.f32.mrf.mxu0
      %v6071 = vadd.f32 %v5942, %v6070
      %6072 = vmatmul.bf16.gmra.mxu0 %v5646
      %v6073 = vpop.f32.mrf.mxu0
      %v6074 = vadd.f32 %v5945, %v6073
      %v6075 = vpop.f32.mrf.mxu0
      %v6076 = vadd.f32 %v5947, %v6075
      %6077 = vmatmul.bf16.gmra.mxu0 %v5649
      %v6078 = vpop.f32.mrf.mxu0
      %v6079 = vadd.f32 %v5950, %v6078
      %v6080 = vpop.f32.mrf.mxu0
      %v6081 = vadd.f32 %v5952, %v6080
      %6082 = vmatmul.bf16.gmra.mxu0 %v5652
      %v6083 = vpop.f32.mrf.mxu0
      %v6084 = vadd.f32 %v5955, %v6083
      %v6085 = vpop.f32.mrf.mxu0
      %v6086 = vadd.f32 %v5957, %v6085
      %6087 = vmatmul.bf16.gmra.mxu0 %v5655
      %v6088 = vpop.f32.mrf.mxu0
      %v6089 = vadd.f32 %v5960, %v6088
      %v6090 = vpop.f32.mrf.mxu0
      %v6091 = vadd.f32 %v5962, %v6090
      %6092 = vmatmul.bf16.gmra.mxu0 %v5658
      %v6093 = vpop.f32.mrf.mxu0
      %v6094 = vadd.f32 %v5965, %v6093
      %v6095 = vpop.f32.mrf.mxu0
      %v6096 = vadd.f32 %v5967, %v6095
      %6097 = vmatmul.bf16.gmra.mxu0 %v5661
      %v6098 = vpop.f32.mrf.mxu0
      %v6099 = vadd.f32 %v5970, %v6098
      %v6100 = vpop.f32.mrf.mxu0
      %v6101 = vadd.f32 %v5972, %v6100
      %6102 = vmatmul.bf16.gmra.mxu0 %v5664
      %v6103 = vpop.f32.mrf.mxu0
      %v6104 = vadd.f32 %v5975, %v6103
      %v6105 = vpop.f32.mrf.mxu0
      %v6106 = vadd.f32 %v5977, %v6105
      %6107 = vmatmul.bf16.gmra.mxu0 %v5667
      %v6108 = vpop.f32.mrf.mxu0
      %v6109 = vadd.f32 %v5980, %v6108
      %v6110 = vpop.f32.mrf.mxu0
      %v6111 = vadd.f32 %v5982, %v6110
      %6112 = vmatmul.bf16.gmra.mxu0 %v5670
      %v6113 = vpop.f32.mrf.mxu0
      %v6114 = vadd.f32 %v5985, %v6113
      %v6115 = vpop.f32.mrf.mxu0
      %v6116 = vadd.f32 %v5987, %v6115
      %6117 = vmatmul.bf16.gmra.mxu0 %v5673
      %v6118 = vpop.f32.mrf.mxu0
      %v6119 = vadd.f32 %v5990, %v6118
      %v6120 = vpop.f32.mrf.mxu0
      %v6121 = vadd.f32 %v5992, %v6120
      %6122 = vmatmul.bf16.gmra.mxu0 %v5676
      %v6123 = vpop.f32.mrf.mxu0
      %v6124 = vadd.f32 %v5995, %v6123
      %v6125 = vpop.f32.mrf.mxu0
      %v6126 = vadd.f32 %v5997, %v6125
      %6127 = vmatmul.bf16.gmra.mxu0 %v5679
      %v6128 = vpop.f32.mrf.mxu0
      %v6129 = vadd.f32 %v6000, %v6128
      %v6130 = vpop.f32.mrf.mxu0
      %v6131 = vadd.f32 %v6002, %v6130
      %6132 = vmatmul.bf16.gmra.mxu0 %v5682
      %v6133 = vpop.f32.mrf.mxu0
      %v6134 = vadd.f32 %v6005, %v6133
      %v6135 = vpop.f32.mrf.mxu0
      %v6136 = vadd.f32 %v6007, %v6135
      %6137 = vmatmul.bf16.gmra.mxu0 %v5685
      %v6138 = vpop.f32.mrf.mxu0
      %v6139 = vadd.f32 %v6010, %v6138
      %v6140 = vpop.f32.mrf.mxu0
      %v6141 = vadd.f32 %v6012, %v6140
      %6142 = vmatmul.bf16.gmra.mxu0 %v5688
      %v6143 = vpop.f32.mrf.mxu0
      %v6144 = vadd.f32 %v6015, %v6143
      %v6145 = vpop.f32.mrf.mxu0
      %v6146 = vadd.f32 %v6017, %v6145
      %6147 = vmatmul.bf16.gmra.mxu0 %v5691
      %v6148 = vpop.f32.mrf.mxu0
      %v6149 = vadd.f32 %v6020, %v6148
      %v6150 = vpop.f32.mrf.mxu0
      %v6151 = vadd.f32 %v6022, %v6150
      %6152 = vmatmul.bf16.gmra.mxu0 %v5694
      %v6153 = vpop.f32.mrf.mxu0
      %v6154 = vadd.f32 %v6025, %v6153
      %v6155 = vpop.f32.mrf.mxu0
      %v6156 = vadd.f32 %v6027, %v6155
      %6157 = vmatmul.bf16.gmra.mxu0 %v5697
      %v6158 = vpop.f32.mrf.mxu0
      %v6159 = vadd.f32 %v6030, %v6158
      %v6160 = vpop.f32.mrf.mxu0
      %v6161 = vadd.f32 %v6032, %v6160
      %6162 = vmatmul.bf16.gmra.mxu0 %v5700
      %v6163 = vpop.f32.mrf.mxu0
      %v6164 = vadd.f32 %v6035, %v6163
      %v6165 = vpop.f32.mrf.mxu0
      %v6166 = vadd.f32 %v6037, %v6165
      %6167 = vmatmul.bf16.gmra.mxu0 %v5703
      %v6168 = vpop.f32.mrf.mxu0
      %v6169 = vadd.f32 %v6040, %v6168
      %v6170 = vpop.f32.mrf.mxu0
      %v6171 = vadd.f32 %v6042, %v6170
      %6172 = vmatmul.bf16.gmra.mxu0 %v5706
      %v6173 = vpop.f32.mrf.mxu0
      %v6174 = vadd.f32 %v6045, %v6173
      %v6175 = vpop.f32.mrf.mxu0
      %v6176 = vadd.f32 %v6047, %v6175
      %6177 = vmatmul.bf16.gmra.mxu0 %v5709
      %v6178 = vpop.f32.mrf.mxu0
      %v6179 = vadd.f32 %v6050, %v6178
      %v6180 = vpop.f32.mrf.mxu0
      %v6181 = vadd.f32 %v6052, %v6180
      %6182 = vmatmul.bf16.gmra.mxu0 %v5712
      %v6183 = vpop.f32.mrf.mxu0
      %v6184 = vadd.f32 %v6055, %v6183
      %v6185 = vpop.f32.mrf.mxu0
      %v6186 = vadd.f32 %v6057, %v6185
      %6187 = vdwg.mxu0
      %6188 = vmatpush.bf16.msra.mxu0 %v5905
      %6189 = vmatpush.bf16.msra.mxu0 %v5904
      %6190 = vmatpush.bf16.msra.mxu0 %v5903
      %6191 = vmatpush.bf16.msra.mxu0 %v5902
      %6192 = vmatpush.bf16.msra.mxu0 %v5901
      %6193 = vmatpush.bf16.msra.mxu0 %v5900
      %6194 = vmatpush.bf16.msra.mxu0 %v5899
      %6195 = vmatpush.bf16.msra.mxu0 %v5898
      %6196 = vmatmul.bf16.gmra.mxu0 %v5644
      %v6197 = vpop.f32.mrf.mxu0
      %v6198 = vadd.f32 %v6069, %v6197
      %v6199 = vpop.f32.mrf.mxu0
      %v6200 = vadd.f32 %v6071, %v6199
      %6201 = vmatmul.bf16.gmra.mxu0 %v5647
      %v6202 = vpop.f32.mrf.mxu0
      %v6203 = vadd.f32 %v6074, %v6202
      %v6204 = vpop.f32.mrf.mxu0
      %v6205 = vadd.f32 %v6076, %v6204
      %6206 = vmatmul.bf16.gmra.mxu0 %v5650
      %v6207 = vpop.f32.mrf.mxu0
      %v6208 = vadd.f32 %v6079, %v6207
      %v6209 = vpop.f32.mrf.mxu0
      %v6210 = vadd.f32 %v6081, %v6209
      %6211 = vmatmul.bf16.gmra.mxu0 %v5653
      %v6212 = vpop.f32.mrf.mxu0
      %v6213 = vadd.f32 %v6084, %v6212
      %v6214 = vpop.f32.mrf.mxu0
      %v6215 = vadd.f32 %v6086, %v6214
      %6216 = vmatmul.bf16.gmra.mxu0 %v5656
      %v6217 = vpop.f32.mrf.mxu0
      %v6218 = vadd.f32 %v6089, %v6217
      %v6219 = vpop.f32.mrf.mxu0
      %v6220 = vadd.f32 %v6091, %v6219
      %6221 = vmatmul.bf16.gmra.mxu0 %v5659
      %v6222 = vpop.f32.mrf.mxu0
      %v6223 = vadd.f32 %v6094, %v6222
      %v6224 = vpop.f32.mrf.mxu0
      %v6225 = vadd.f32 %v6096, %v6224
      %6226 = vmatmul.bf16.gmra.mxu0 %v5662
      %v6227 = vpop.f32.mrf.mxu0
      %v6228 = vadd.f32 %v6099, %v6227
      %v6229 = vpop.f32.mrf.mxu0
      %v6230 = vadd.f32 %v6101, %v6229
      %6231 = vmatmul.bf16.gmra.mxu0 %v5665
      %v6232 = vpop.f32.mrf.mxu0
      %v6233 = vadd.f32 %v6104, %v6232
      %v6234 = vpop.f32.mrf.mxu0
      %v6235 = vadd.f32 %v6106, %v6234
      %6236 = vmatmul.bf16.gmra.mxu0 %v5668
      %v6237 = vpop.f32.mrf.mxu0
      %v6238 = vadd.f32 %v6109, %v6237
      %v6239 = vpop.f32.mrf.mxu0
      %v6240 = vadd.f32 %v6111, %v6239
      %6241 = vmatmul.bf16.gmra.mxu0 %v5671
      %v6242 = vpop.f32.mrf.mxu0
      %v6243 = vadd.f32 %v6114, %v6242
      %v6244 = vpop.f32.mrf.mxu0
      %v6245 = vadd.f32 %v6116, %v6244
      %6246 = vmatmul.bf16.gmra.mxu0 %v5674
      %v6247 = vpop.f32.mrf.mxu0
      %v6248 = vadd.f32 %v6119, %v6247
      %v6249 = vpop.f32.mrf.mxu0
      %v6250 = vadd.f32 %v6121, %v6249
      %6251 = vmatmul.bf16.gmra.mxu0 %v5677
      %v6252 = vpop.f32.mrf.mxu0
      %v6253 = vadd.f32 %v6124, %v6252
      %v6254 = vpop.f32.mrf.mxu0
      %v6255 = vadd.f32 %v6126, %v6254
      %6256 = vmatmul.bf16.gmra.mxu0 %v5680
      %v6257 = vpop.f32.mrf.mxu0
      %v6258 = vadd.f32 %v6129, %v6257
      %v6259 = vpop.f32.mrf.mxu0
      %v6260 = vadd.f32 %v6131, %v6259
      %6261 = vmatmul.bf16.gmra.mxu0 %v5683
      %v6262 = vpop.f32.mrf.mxu0
      %v6263 = vadd.f32 %v6134, %v6262
      %v6264 = vpop.f32.mrf.mxu0
      %v6265 = vadd.f32 %v6136, %v6264
      %6266 = vmatmul.bf16.gmra.mxu0 %v5686
      %v6267 = vpop.f32.mrf.mxu0
      %v6268 = vadd.f32 %v6139, %v6267
      %v6269 = vpop.f32.mrf.mxu0
      %v6270 = vadd.f32 %v6141, %v6269
      %6271 = vmatmul.bf16.gmra.mxu0 %v5689
      %v6272 = vpop.f32.mrf.mxu0
      %v6273 = vadd.f32 %v6144, %v6272
      %v6274 = vpop.f32.mrf.mxu0
      %v6275 = vadd.f32 %v6146, %v6274
      %6276 = vmatmul.bf16.gmra.mxu0 %v5692
      %v6277 = vpop.f32.mrf.mxu0
      %v6278 = vadd.f32 %v6149, %v6277
      %v6279 = vpop.f32.mrf.mxu0
      %v6280 = vadd.f32 %v6151, %v6279
      %6281 = vmatmul.bf16.gmra.mxu0 %v5695
      %v6282 = vpop.f32.mrf.mxu0
      %v6283 = vadd.f32 %v6154, %v6282
      %v6284 = vpop.f32.mrf.mxu0
      %v6285 = vadd.f32 %v6156, %v6284
      %6286 = vmatmul.bf16.gmra.mxu0 %v5698
      %v6287 = vpop.f32.mrf.mxu0
      %v6288 = vadd.f32 %v6159, %v6287
      %v6289 = vpop.f32.mrf.mxu0
      %v6290 = vadd.f32 %v6161, %v6289
      %6291 = vmatmul.bf16.gmra.mxu0 %v5701
      %v6292 = vpop.f32.mrf.mxu0
      %v6293 = vadd.f32 %v6164, %v6292
      %v6294 = vpop.f32.mrf.mxu0
      %v6295 = vadd.f32 %v6166, %v6294
      %6296 = vmatmul.bf16.gmra.mxu0 %v5704
      %v6297 = vpop.f32.mrf.mxu0
      %v6298 = vadd.f32 %v6169, %v6297
      %v6299 = vpop.f32.mrf.mxu0
      %v6300 = vadd.f32 %v6171, %v6299
      %6301 = vmatmul.bf16.gmra.mxu0 %v5707
      %v6302 = vpop.f32.mrf.mxu0
      %v6303 = vadd.f32 %v6174, %v6302
      %v6304 = vpop.f32.mrf.mxu0
      %v6305 = vadd.f32 %v6176, %v6304
      %6306 = vmatmul.bf16.gmra.mxu0 %v5710
      %v6307 = vpop.f32.mrf.mxu0
      %v6308 = vadd.f32 %v6179, %v6307
      %v6309 = vpop.f32.mrf.mxu0
      %v6310 = vadd.f32 %v6181, %v6309
      %6311 = vmatmul.bf16.gmra.mxu0 %v5713
      %v6312 = vpop.f32.mrf.mxu0
      %v6313 = vadd.f32 %v6184, %v6312
      %v6314 = vpop.f32.mrf.mxu0
      %v6315 = vadd.f32 %v6186, %v6314
      %6316 = vdwg.mxu0
      %v6317 = vadd.f32 %v5209, %v6198
      %v6318 = vadd.f32 %v5210, %v6200
      %v6319 = vadd.f32 %v5211, %v6203
      %v6320 = vadd.f32 %v5212, %v6205
      %v6321 = vadd.f32 %v5213, %v6208
      %v6322 = vadd.f32 %v5214, %v6210
      %v6323 = vadd.f32 %v5215, %v6213
      %v6324 = vadd.f32 %v5216, %v6215
      %v6325 = vadd.f32 %v5217, %v6218
      %v6326 = vadd.f32 %v5218, %v6220
      %v6327 = vadd.f32 %v5219, %v6223
      %v6328 = vadd.f32 %v5220, %v6225
      %v6329 = vadd.f32 %v5221, %v6228
      %v6330 = vadd.f32 %v5222, %v6230
      %v6331 = vadd.f32 %v5223, %v6233
      %v6332 = vadd.f32 %v5224, %v6235
      %v6333 = vadd.f32 %v5225, %v6238
      %v6334 = vadd.f32 %v5226, %v6240
      %v6335 = vadd.f32 %v5227, %v6243
      %v6336 = vadd.f32 %v5228, %v6245
      %v6337 = vadd.f32 %v5229, %v6248
      %v6338 = vadd.f32 %v5230, %v6250
      %v6339 = vadd.f32 %v5231, %v6253
      %v6340 = vadd.f32 %v5232, %v6255
      %v6341 = vadd.f32 %v5233, %v6258
      %v6342 = vadd.f32 %v5234, %v6260
      %v6343 = vadd.f32 %v5235, %v6263
      %v6344 = vadd.f32 %v5236, %v6265
      %v6345 = vadd.f32 %v5237, %v6268
      %v6346 = vadd.f32 %v5238, %v6270
      %v6347 = vadd.f32 %v5239, %v6273
      %v6348 = vadd.f32 %v5240, %v6275
      %v6349 = vadd.f32 %v5241, %v6278
      %v6350 = vadd.f32 %v5242, %v6280
      %v6351 = vadd.f32 %v5243, %v6283
      %v6352 = vadd.f32 %v5244, %v6285
      %v6353 = vadd.f32 %v5245, %v6288
      %v6354 = vadd.f32 %v5246, %v6290
      %v6355 = vadd.f32 %v5247, %v6293
      %v6356 = vadd.f32 %v5248, %v6295
      %v6357 = vadd.f32 %v5249, %v6298
      %v6358 = vadd.f32 %v5250, %v6300
      %v6359 = vadd.f32 %v5251, %v6303
      %v6360 = vadd.f32 %v5252, %v6305
      %v6361 = vadd.f32 %v5253, %v6308
      %v6362 = vadd.f32 %v5254, %v6310
      %v6363 = vadd.f32 %v5255, %v6313
      %v6364 = vadd.f32 %v5256, %v6315
      %6365 = vst [vmem:[#allocation2] sm:$0xff] %v6317
      %6366 = vst [vmem:[#allocation2 + $0x8] sm:$0xff] %v6318
      %6367 = vst [vmem:[#allocation2 + $0x10] sm:$0xff] %v6319
      %6368 = vst [vmem:[#allocation2 + $0x18] sm:$0xff] %v6320
      %6369 = vst [vmem:[#allocation2 + $0x20] sm:$0xff] %v6321
      %6370 = vst [vmem:[#allocation2 + $0x28] sm:$0xff] %v6322
      %6371 = vst [vmem:[#allocation2 + $0x30] sm:$0xff] %v6323
      %6372 = vst [vmem:[#allocation2 + $0x38] sm:$0xff] %v6324
      %6373 = vst [vmem:[#allocation2 + $0x40] sm:$0xff] %v6325
      %6374 = vst [vmem:[#allocation2 + $0x48] sm:$0xff] %v6326
      %6375 = vst [vmem:[#allocation2 + $0x50] sm:$0xff] %v6327
      %6376 = vst [vmem:[#allocation2 + $0x58] sm:$0xff] %v6328
      %6377 = vst [vmem:[#allocation2 + $0x60] sm:$0xff] %v6329
      %6378 = vst [vmem:[#allocation2 + $0x68] sm:$0xff] %v6330
      %6379 = vst [vmem:[#allocation2 + $0x70] sm:$0xff] %v6331
      %6380 = vst [vmem:[#allocation2 + $0x78] sm:$0xff] %v6332
      %6381 = vst [vmem:[#allocation2 + $0x80] sm:$0xff] %v6333
      %6382 = vst [vmem:[#allocation2 + $0x88] sm:$0xff] %v6334
      %6383 = vst [vmem:[#allocation2 + $0x90] sm:$0xff] %v6335
      %6384 = vst [vmem:[#allocation2 + $0x98] sm:$0xff] %v6336
      %6385 = vst [vmem:[#allocation2 + $0xa0] sm:$0xff] %v6337
      %6386 = vst [vmem:[#allocation2 + $0xa8] sm:$0xff] %v6338
      %6387 = vst [vmem:[#allocation2 + $0xb0] sm:$0xff] %v6339
      %6388 = vst [vmem:[#allocation2 + $0xb8] sm:$0xff] %v6340
      %6389 = vst [vmem:[#allocation2 + $0xc0] sm:$0xff] %v6341
      %6390 = vst [vmem:[#allocation2 + $0xc8] sm:$0xff] %v6342
      %6391 = vst [vmem:[#allocation2 + $0xd0] sm:$0xff] %v6343
      %6392 = vst [vmem:[#allocation2 + $0xd8] sm:$0xff] %v6344
      %6393 = vst [vmem:[#allocation2 + $0xe0] sm:$0xff] %v6345
      %6394 = vst [vmem:[#allocation2 + $0xe8] sm:$0xff] %v6346
      %6395 = vst [vmem:[#allocation2 + $0xf0] sm:$0xff] %v6347
      %6396 = vst [vmem:[#allocation2 + $0xf8] sm:$0xff] %v6348
      %6397 = vst [vmem:[#allocation2 + $0x100] sm:$0xff] %v6349
      %6398 = vst [vmem:[#allocation2 + $0x108] sm:$0xff] %v6350
      %6399 = vst [vmem:[#allocation2 + $0x110] sm:$0xff] %v6351
      %6400 = vst [vmem:[#allocation2 + $0x118] sm:$0xff] %v6352
      %6401 = vst [vmem:[#allocation2 + $0x120] sm:$0xff] %v6353
      %6402 = vst [vmem:[#allocation2 + $0x128] sm:$0xff] %v6354
      %6403 = vst [vmem:[#allocation2 + $0x130] sm:$0xff] %v6355
      %6404 = vst [vmem:[#allocation2 + $0x138] sm:$0xff] %v6356
      %6405 = vst [vmem:[#allocation2 + $0x140] sm:$0xff] %v6357
      %6406 = vst [vmem:[#allocation2 + $0x148] sm:$0xff] %v6358
      %6407 = vst [vmem:[#allocation2 + $0x150] sm:$0xff] %v6359
      %6408 = vst [vmem:[#allocation2 + $0x158] sm:$0xff] %v6360
      %6409 = vst [vmem:[#allocation2 + $0x160] sm:$0xff] %v6361
      %6410 = vst [vmem:[#allocation2 + $0x168] sm:$0xff] %v6362
      %6411 = vst [vmem:[#allocation2 + $0x170] sm:$0xff] %v6363
      %6412 = vst [vmem:[#allocation2 + $0x178] sm:$0xff] %v6364
      %v6413 = vld [vmem:[#allocation2] sm:$0xff]
      %v6414 = vld [vmem:[#allocation2 + $0x8] sm:$0xff]
      %v6415 = vld [vmem:[#allocation2 + $0x10] sm:$0xff]
      %v6416 = vld [vmem:[#allocation2 + $0x18] sm:$0xff]
      %v6417 = vld [vmem:[#allocation2 + $0x20] sm:$0xff]
      %v6418 = vld [vmem:[#allocation2 + $0x28] sm:$0xff]
      %v6419 = vld [vmem:[#allocation2 + $0x30] sm:$0xff]
      %v6420 = vld [vmem:[#allocation2 + $0x38] sm:$0xff]
      %v6421 = vld [vmem:[#allocation2 + $0x40] sm:$0xff]
      %v6422 = vld [vmem:[#allocation2 + $0x48] sm:$0xff]
      %v6423 = vld [vmem:[#allocation2 + $0x50] sm:$0xff]
      %v6424 = vld [vmem:[#allocation2 + $0x58] sm:$0xff]
      %v6425 = vld [vmem:[#allocation2 + $0x60] sm:$0xff]
      %v6426 = vld [vmem:[#allocation2 + $0x68] sm:$0xff]
      %v6427 = vld [vmem:[#allocation2 + $0x70] sm:$0xff]
      %v6428 = vld [vmem:[#allocation2 + $0x78] sm:$0xff]
      %v6429 = vld [vmem:[#allocation2 + $0x80] sm:$0xff]
      %v6430 = vld [vmem:[#allocation2 + $0x88] sm:$0xff]
      %v6431 = vld [vmem:[#allocation2 + $0x90] sm:$0xff]
      %v6432 = vld [vmem:[#allocation2 + $0x98] sm:$0xff]
      %v6433 = vld [vmem:[#allocation2 + $0xa0] sm:$0xff]
      %v6434 = vld [vmem:[#allocation2 + $0xa8] sm:$0xff]
      %v6435 = vld [vmem:[#allocation2 + $0xb0] sm:$0xff]
      %v6436 = vld [vmem:[#allocation2 + $0xb8] sm:$0xff]
      %v6437 = vld [vmem:[#allocation2 + $0xc0] sm:$0xff]
      %v6438 = vld [vmem:[#allocation2 + $0xc8] sm:$0xff]
      %v6439 = vld [vmem:[#allocation2 + $0xd0] sm:$0xff]
      %v6440 = vld [vmem:[#allocation2 + $0xd8] sm:$0xff]
      %v6441 = vld [vmem:[#allocation2 + $0xe0] sm:$0xff]
      %v6442 = vld [vmem:[#allocation2 + $0xe8] sm:$0xff]
      %v6443 = vld [vmem:[#allocation2 + $0xf0] sm:$0xff]
      %v6444 = vld [vmem:[#allocation2 + $0xf8] sm:$0xff]
      %v6445 = vld [vmem:[#allocation2 + $0x100] sm:$0xff]
      %v6446 = vld [vmem:[#allocation2 + $0x108] sm:$0xff]
      %v6447 = vld [vmem:[#allocation2 + $0x110] sm:$0xff]
      %v6448 = vld [vmem:[#allocation2 + $0x118] sm:$0xff]
      %v6449 = vld [vmem:[#allocation2 + $0x120] sm:$0xff]
      %v6450 = vld [vmem:[#allocation2 + $0x128] sm:$0xff]
      %v6451 = vld [vmem:[#allocation2 + $0x130] sm:$0xff]
      %v6452 = vld [vmem:[#allocation2 + $0x138] sm:$0xff]
      %v6453 = vld [vmem:[#allocation2 + $0x140] sm:$0xff]
      %v6454 = vld [vmem:[#allocation2 + $0x148] sm:$0xff]
      %v6455 = vld [vmem:[#allocation2 + $0x150] sm:$0xff]
      %v6456 = vld [vmem:[#allocation2 + $0x158] sm:$0xff]
      %v6457 = vld [vmem:[#allocation2 + $0x160] sm:$0xff]
      %v6458 = vld [vmem:[#allocation2 + $0x168] sm:$0xff]
      %v6459 = vld [vmem:[#allocation2 + $0x170] sm:$0xff]
      %v6460 = vld [vmem:[#allocation2 + $0x178] sm:$0xff]
      %v6461 = vld [vmem:[%s5] sm:$0x1]
      %v6463 = vperm.slane %v6461, 0
      %v6465 = vadd.f32 %v6413, %v6463
      %v6466 = vadd.f32 %v6414, %v6463
      %v6467 = vadd.f32 %v6415, %v6463
      %v6468 = vadd.f32 %v6416, %v6463
      %v6469 = vadd.f32 %v6417, %v6463
      %v6470 = vadd.f32 %v6418, %v6463
      %v6471 = vadd.f32 %v6419, %v6463
      %v6472 = vadd.f32 %v6420, %v6463
      %v6473 = vadd.f32 %v6421, %v6463
      %v6474 = vadd.f32 %v6422, %v6463
      %v6475 = vadd.f32 %v6423, %v6463
      %v6476 = vadd.f32 %v6424, %v6463
      %v6477 = vadd.f32 %v6425, %v6463
      %v6478 = vadd.f32 %v6426, %v6463
      %v6479 = vadd.f32 %v6427, %v6463
      %v6480 = vadd.f32 %v6428, %v6463
      %v6481 = vadd.f32 %v6429, %v6463
      %v6482 = vadd.f32 %v6430, %v6463
      %v6483 = vadd.f32 %v6431, %v6463
      %v6484 = vadd.f32 %v6432, %v6463
      %v6485 = vadd.f32 %v6433, %v6463
      %v6486 = vadd.f32 %v6434, %v6463
      %v6487 = vadd.f32 %v6435, %v6463
      %v6488 = vadd.f32 %v6436, %v6463
      %v6489 = vadd.f32 %v6437, %v6463
      %v6490 = vadd.f32 %v6438, %v6463
      %v6491 = vadd.f32 %v6439, %v6463
      %v6492 = vadd.f32 %v6440, %v6463
      %v6493 = vadd.f32 %v6441, %v6463
      %v6494 = vadd.f32 %v6442, %v6463
      %v6495 = vadd.f32 %v6443, %v6463
      %v6496 = vadd.f32 %v6444, %v6463
      %v6497 = vadd.f32 %v6445, %v6463
      %v6498 = vadd.f32 %v6446, %v6463
      %v6499 = vadd.f32 %v6447, %v6463
      %v6500 = vadd.f32 %v6448, %v6463
      %v6501 = vadd.f32 %v6449, %v6463
      %v6502 = vadd.f32 %v6450, %v6463
      %v6503 = vadd.f32 %v6451, %v6463
      %v6504 = vadd.f32 %v6452, %v6463
      %v6505 = vadd.f32 %v6453, %v6463
      %v6506 = vadd.f32 %v6454, %v6463
      %v6507 = vadd.f32 %v6455, %v6463
      %v6508 = vadd.f32 %v6456, %v6463
      %v6509 = vadd.f32 %v6457, %v6463
      %v6510 = vadd.f32 %v6458, %v6463
      %v6511 = vadd.f32 %v6459, %v6463
      %v6512 = vadd.f32 %v6460, %v6463
      %v6513 = vmax.f32 %v6465, 0.0
      %v6514 = vmax.f32 %v6466, 0.0
      %v6515 = vmax.f32 %v6467, 0.0
      %v6516 = vmax.f32 %v6468, 0.0
      %v6517 = vmax.f32 %v6469, 0.0
      %v6518 = vmax.f32 %v6470, 0.0
      %v6519 = vmax.f32 %v6471, 0.0
      %v6520 = vmax.f32 %v6472, 0.0
      %v6521 = vmax.f32 %v6473, 0.0
      %v6522 = vmax.f32 %v6474, 0.0
      %v6523 = vmax.f32 %v6475, 0.0
      %v6524 = vmax.f32 %v6476, 0.0
      %v6525 = vmax.f32 %v6477, 0.0
      %v6526 = vmax.f32 %v6478, 0.0
      %v6527 = vmax.f32 %v6479, 0.0
      %v6528 = vmax.f32 %v6480, 0.0
      %v6529 = vmax.f32 %v6481, 0.0
      %v6530 = vmax.f32 %v6482, 0.0
      %v6531 = vmax.f32 %v6483, 0.0
      %v6532 = vmax.f32 %v6484, 0.0
      %v6533 = vmax.f32 %v6485, 0.0
      %v6534 = vmax.f32 %v6486, 0.0
      %v6535 = vmax.f32 %v6487, 0.0
      %v6536 = vmax.f32 %v6488, 0.0
      %v6537 = vmax.f32 %v6489, 0.0
      %v6538 = vmax.f32 %v6490, 0.0
      %v6539 = vmax.f32 %v6491, 0.0
      %v6540 = vmax.f32 %v6492, 0.0
      %v6541 = vmax.f32 %v6493, 0.0
      %v6542 = vmax.f32 %v6494, 0.0
      %v6543 = vmax.f32 %v6495, 0.0
      %v6544 = vmax.f32 %v6496, 0.0
      %v6545 = vmax.f32 %v6497, 0.0
      %v6546 = vmax.f32 %v6498, 0.0
      %v6547 = vmax.f32 %v6499, 0.0
      %v6548 = vmax.f32 %v6500, 0.0
      %v6549 = vmax.f32 %v6501, 0.0
      %v6550 = vmax.f32 %v6502, 0.0
      %v6551 = vmax.f32 %v6503, 0.0
      %v6552 = vmax.f32 %v6504, 0.0
      %v6553 = vmax.f32 %v6505, 0.0
      %v6554 = vmax.f32 %v6506, 0.0
      %v6555 = vmax.f32 %v6507, 0.0
      %v6556 = vmax.f32 %v6508, 0.0
      %v6557 = vmax.f32 %v6509, 0.0
      %v6558 = vmax.f32 %v6510, 0.0
      %v6559 = vmax.f32 %v6511, 0.0
      %v6560 = vmax.f32 %v6512, 0.0
      %v6561 = vpack.c.bf16 %v6514, %v6513
      %v6562 = vpack.c.bf16 %v6516, %v6515
      %v6563 = vpack.c.bf16 %v6518, %v6517
      %v6564 = vpack.c.bf16 %v6520, %v6519
      %v6565 = vpack.c.bf16 %v6522, %v6521
      %v6566 = vpack.c.bf16 %v6524, %v6523
      %v6567 = vpack.c.bf16 %v6526, %v6525
      %v6568 = vpack.c.bf16 %v6528, %v6527
      %v6569 = vpack.c.bf16 %v6530, %v6529
      %v6570 = vpack.c.bf16 %v6532, %v6531
      %v6571 = vpack.c.bf16 %v6534, %v6533
      %v6572 = vpack.c.bf16 %v6536, %v6535
      %v6573 = vpack.c.bf16 %v6538, %v6537
      %v6574 = vpack.c.bf16 %v6540, %v6539
      %v6575 = vpack.c.bf16 %v6542, %v6541
      %v6576 = vpack.c.bf16 %v6544, %v6543
      %v6577 = vpack.c.bf16 %v6546, %v6545
      %v6578 = vpack.c.bf16 %v6548, %v6547
      %v6579 = vpack.c.bf16 %v6550, %v6549
      %v6580 = vpack.c.bf16 %v6552, %v6551
      %v6581 = vpack.c.bf16 %v6554, %v6553
      %v6582 = vpack.c.bf16 %v6556, %v6555
      %v6583 = vpack.c.bf16 %v6558, %v6557
      %v6584 = vpack.c.bf16 %v6560, %v6559
      %v6585 = vld [vmem:[%s3] sm:$0xf]
      %v6586 = vld [vmem:[%s3 + $0x4] sm:$0xf]
      %v6587 = vld [vmem:[%s3 + $0x8] sm:$0xf]
      %v6588 = vld [vmem:[%s3 + $0xc] sm:$0xf]
      %v6589 = vld [vmem:[%s3 + $0x10] sm:$0xf]
      %v6590 = vld [vmem:[%s3 + $0x14] sm:$0xf]
      %v6591 = vld [vmem:[%s3 + $0x18] sm:$0xf]
      %v6592 = vld [vmem:[%s3 + $0x1c] sm:$0xf]
      %v6593 = vld [vmem:[%s3 + $0x20] sm:$0xf]
      %v6594 = vld [vmem:[%s3 + $0x24] sm:$0xf]
      %v6595 = vld [vmem:[%s3 + $0x28] sm:$0xf]
      %v6596 = vld [vmem:[%s3 + $0x2c] sm:$0xf]
      %v6597 = vld [vmem:[%s3 + $0x30] sm:$0xf]
      %v6598 = vld [vmem:[%s3 + $0x34] sm:$0xf]
      %v6599 = vld [vmem:[%s3 + $0x38] sm:$0xf]
      %v6600 = vld [vmem:[%s3 + $0x3c] sm:$0xf]
      %v6601 = vld [vmem:[%s300 + $0x10] sm:$0xf]
      %v6602 = vld [vmem:[%s300 + $0x14] sm:$0xf]
      %v6603 = vld [vmem:[%s300 + $0x18] sm:$0xf]
      %v6604 = vld [vmem:[%s300 + $0x1c] sm:$0xf]
      %v6605 = vld [vmem:[%s300 + $0x20] sm:$0xf]
      %v6606 = vld [vmem:[%s300 + $0x24] sm:$0xf]
      %v6607 = vld [vmem:[%s300 + $0x28] sm:$0xf]
      %v6608 = vld [vmem:[%s300 + $0x2c] sm:$0xf]
      %v6609 = vld [vmem:[%s300 + $0x30] sm:$0xf]
      %v6610 = vld [vmem:[%s300 + $0x34] sm:$0xf]
      %v6611 = vld [vmem:[%s300 + $0x38] sm:$0xf]
      %v6612 = vld [vmem:[%s300 + $0x3c] sm:$0xf]
      %v6613 = vld [vmem:[%s300 + $0x40] sm:$0xf]
      %v6614 = vld [vmem:[%s300 + $0x44] sm:$0xf]
      %v6615 = vld [vmem:[%s300 + $0x48] sm:$0xf]
      %v6616 = vld [vmem:[%s300 + $0x4c] sm:$0xf]
      %v6617 = vld [vmem:[%s300 + $0x50] sm:$0xf]
      %v6618 = vld [vmem:[%s300 + $0x54] sm:$0xf]
      %v6619 = vld [vmem:[%s300 + $0x58] sm:$0xf]
      %v6620 = vld [vmem:[%s300 + $0x5c] sm:$0xf]
      %v6621 = vld [vmem:[%s300 + $0x60] sm:$0xf]
      %v6622 = vld [vmem:[%s300 + $0x64] sm:$0xf]
      %v6623 = vld [vmem:[%s300 + $0x68] sm:$0xf]
      %v6624 = vld [vmem:[%s300 + $0x6c] sm:$0xf]
      %v6625 = vld [vmem:[%s300 + $0x70] sm:$0xf]
      %v6626 = vld [vmem:[%s300 + $0x74] sm:$0xf]
      %v6627 = vld [vmem:[%s300 + $0x78] sm:$0xf]
      %v6628 = vld [vmem:[%s300 + $0x7c] sm:$0xf]
      %v6629 = vld [vmem:[%s300 + $0x80] sm:$0xf]
      %v6630 = vld [vmem:[%s300 + $0x84] sm:$0xf]
      %v6631 = vld [vmem:[%s300 + $0x88] sm:$0xf]
      %v6632 = vld [vmem:[%s300 + $0x8c] sm:$0xf]
      %v6633 = vld [vmem:[%s300 + $0x90] sm:$0xf]
      %v6634 = vld [vmem:[%s300 + $0x94] sm:$0xf]
      %v6635 = vld [vmem:[%s300 + $0x98] sm:$0xf]
      %v6636 = vld [vmem:[%s300 + $0x9c] sm:$0xf]
      %v6637 = vld [vmem:[%s300 + $0xa0] sm:$0xf]
      %v6638 = vld [vmem:[%s300 + $0xa4] sm:$0xf]
      %v6639 = vld [vmem:[%s300 + $0xa8] sm:$0xf]
      %v6640 = vld [vmem:[%s300 + $0xac] sm:$0xf]
      %v6641 = vld [vmem:[%s300 + $0xb0] sm:$0xf]
      %v6642 = vld [vmem:[%s300 + $0xb4] sm:$0xf]
      %v6643 = vld [vmem:[%s300 + $0xb8] sm:$0xf]
      %v6644 = vld [vmem:[%s300 + $0xbc] sm:$0xf]
      %v6645 = vld [vmem:[%s300 + $0xc0] sm:$0xf]
      %v6646 = vld [vmem:[%s300 + $0xc4] sm:$0xf]
      %v6647 = vld [vmem:[%s300 + $0xc8] sm:$0xf]
      %v6648 = vld [vmem:[%s300 + $0xcc] sm:$0xf]
      %v6649 = vunpack.c.l.bf16 %v6601
      %v6650 = vunpack.c.l.bf16 %v6602
      %v6651 = vunpack.c.l.bf16 %v6603
      %v6652 = vunpack.c.l.bf16 %v6604
      %v6653 = vunpack.c.l.bf16 %v6605
      %v6654 = vunpack.c.l.bf16 %v6606
      %v6655 = vunpack.c.l.bf16 %v6607
      %v6656 = vunpack.c.l.bf16 %v6608
      %v6657 = vunpack.c.l.bf16 %v6609
      %v6658 = vunpack.c.l.bf16 %v6610
      %v6659 = vunpack.c.l.bf16 %v6611
      %v6660 = vunpack.c.l.bf16 %v6612
      %v6661 = vunpack.c.l.bf16 %v6613
      %v6662 = vunpack.c.l.bf16 %v6614
      %v6663 = vunpack.c.l.bf16 %v6615
      %v6664 = vunpack.c.l.bf16 %v6616
      %v6665 = vunpack.c.l.bf16 %v6617
      %v6666 = vunpack.c.l.bf16 %v6618
      %v6667 = vunpack.c.l.bf16 %v6619
      %v6668 = vunpack.c.l.bf16 %v6620
      %v6669 = vunpack.c.l.bf16 %v6621
      %v6670 = vunpack.c.l.bf16 %v6622
      %v6671 = vunpack.c.l.bf16 %v6623
      %v6672 = vunpack.c.l.bf16 %v6624
      %v6673 = vunpack.c.l.bf16 %v6625
      %v6674 = vunpack.c.l.bf16 %v6626
      %v6675 = vunpack.c.l.bf16 %v6627
      %v6676 = vunpack.c.l.bf16 %v6628
      %v6677 = vunpack.c.l.bf16 %v6629
      %v6678 = vunpack.c.l.bf16 %v6630
      %v6679 = vunpack.c.l.bf16 %v6631
      %v6680 = vunpack.c.l.bf16 %v6632
      %v6681 = vunpack.c.l.bf16 %v6633
      %v6682 = vunpack.c.l.bf16 %v6634
      %v6683 = vunpack.c.l.bf16 %v6635
      %v6684 = vunpack.c.l.bf16 %v6636
      %v6685 = vunpack.c.l.bf16 %v6637
      %v6686 = vunpack.c.l.bf16 %v6638
      %v6687 = vunpack.c.l.bf16 %v6639
      %v6688 = vunpack.c.l.bf16 %v6640
      %v6689 = vunpack.c.l.bf16 %v6641
      %v6690 = vunpack.c.l.bf16 %v6642
      %v6691 = vunpack.c.l.bf16 %v6643
      %v6692 = vunpack.c.l.bf16 %v6644
      %v6693 = vunpack.c.l.bf16 %v6645
      %v6694 = vunpack.c.l.bf16 %v6646
      %v6695 = vunpack.c.l.bf16 %v6647
      %v6696 = vunpack.c.l.bf16 %v6648
      %v6697 = vld [vmem:[%s6] sm:$0x1]
      %v6699 = vperm.slane %v6697, 0
      %v6717 = vunpack.c.l.b16 %v6585
      %v6718 = vunpack.c.l.b16 %v6586
      %v6719 = vunpack.c.l.b16 %v6587
      %v6720 = vunpack.c.l.b16 %v6588
      %v6721 = vunpack.c.l.b16 %v6589
      %v6722 = vunpack.c.l.b16 %v6590
      %v6723 = vunpack.c.l.b16 %v6591
      %v6724 = vunpack.c.l.b16 %v6592
      %v6725 = vunpack.c.l.b16 %v6593
      %v6726 = vunpack.c.l.b16 %v6594
      %v6727 = vunpack.c.l.b16 %v6595
      %v6728 = vunpack.c.l.b16 %v6596
      %v6729 = vunpack.c.l.b16 %v6597
      %v6730 = vunpack.c.l.b16 %v6598
      %v6731 = vunpack.c.l.b16 %v6599
      %v6732 = vunpack.c.l.b16 %v6600
      %v6733 = vpack.c.b16 %v6718, %v6717
      %v6734 = vpack.c.b16 %v6720, %v6719
      %v6735 = vpack.c.b16 %v6722, %v6721
      %v6736 = vpack.c.b16 %v6724, %v6723
      %v6737 = vpack.c.b16 %v6726, %v6725
      %v6738 = vpack.c.b16 %v6728, %v6727
      %v6739 = vpack.c.b16 %v6730, %v6729
      %v6740 = vpack.c.b16 %v6732, %v6731
      %6749 = vmatpush.bf16.msra.mxu0 %v6740
      %6750 = vmatpush.bf16.msra.mxu0 %v6739
      %6751 = vmatpush.bf16.msra.mxu0 %v6738
      %6752 = vmatpush.bf16.msra.mxu0 %v6737
      %6753 = vmatpush.bf16.msra.mxu0 %v6736
      %6754 = vmatpush.bf16.msra.mxu0 %v6735
      %6755 = vmatpush.bf16.msra.mxu0 %v6734
      %6756 = vmatpush.bf16.msra.mxu0 %v6733
      %6757 = vmatmul.bf16.gmra.mxu0 %v6561
      %v6758 = vpop.f32.mrf.mxu0
      %v6759 = vadd.f32 %v6699, %v6758
      %v6760 = vpop.f32.mrf.mxu0
      %v6761 = vadd.f32 %v6699, %v6760
      %6762 = vmatmul.bf16.gmra.mxu0 %v6562
      %v6763 = vpop.f32.mrf.mxu0
      %v6764 = vadd.f32 %v6699, %v6763
      %v6765 = vpop.f32.mrf.mxu0
      %v6766 = vadd.f32 %v6699, %v6765
      %6767 = vmatmul.bf16.gmra.mxu0 %v6563
      %v6768 = vpop.f32.mrf.mxu0
      %v6769 = vadd.f32 %v6699, %v6768
      %v6770 = vpop.f32.mrf.mxu0
      %v6771 = vadd.f32 %v6699, %v6770
      %6772 = vmatmul.bf16.gmra.mxu0 %v6564
      %v6773 = vpop.f32.mrf.mxu0
      %v6774 = vadd.f32 %v6699, %v6773
      %v6775 = vpop.f32.mrf.mxu0
      %v6776 = vadd.f32 %v6699, %v6775
      %6777 = vmatmul.bf16.gmra.mxu0 %v6565
      %v6778 = vpop.f32.mrf.mxu0
      %v6779 = vadd.f32 %v6699, %v6778
      %v6780 = vpop.f32.mrf.mxu0
      %v6781 = vadd.f32 %v6699, %v6780
      %6782 = vmatmul.bf16.gmra.mxu0 %v6566
      %v6783 = vpop.f32.mrf.mxu0
      %v6784 = vadd.f32 %v6699, %v6783
      %v6785 = vpop.f32.mrf.mxu0
      %v6786 = vadd.f32 %v6699, %v6785
      %6787 = vmatmul.bf16.gmra.mxu0 %v6567
      %v6788 = vpop.f32.mrf.mxu0
      %v6789 = vadd.f32 %v6699, %v6788
      %v6790 = vpop.f32.mrf.mxu0
      %v6791 = vadd.f32 %v6699, %v6790
      %6792 = vmatmul.bf16.gmra.mxu0 %v6568
      %v6793 = vpop.f32.mrf.mxu0
      %v6794 = vadd.f32 %v6699, %v6793
      %v6795 = vpop.f32.mrf.mxu0
      %v6796 = vadd.f32 %v6699, %v6795
      %6797 = vmatmul.bf16.gmra.mxu0 %v6569
      %v6798 = vpop.f32.mrf.mxu0
      %v6799 = vadd.f32 %v6699, %v6798
      %v6800 = vpop.f32.mrf.mxu0
      %v6801 = vadd.f32 %v6699, %v6800
      %6802 = vmatmul.bf16.gmra.mxu0 %v6570
      %v6803 = vpop.f32.mrf.mxu0
      %v6804 = vadd.f32 %v6699, %v6803
      %v6805 = vpop.f32.mrf.mxu0
      %v6806 = vadd.f32 %v6699, %v6805
      %6807 = vmatmul.bf16.gmra.mxu0 %v6571
      %v6808 = vpop.f32.mrf.mxu0
      %v6809 = vadd.f32 %v6699, %v6808
      %v6810 = vpop.f32.mrf.mxu0
      %v6811 = vadd.f32 %v6699, %v6810
      %6812 = vmatmul.bf16.gmra.mxu0 %v6572
      %v6813 = vpop.f32.mrf.mxu0
      %v6814 = vadd.f32 %v6699, %v6813
      %v6815 = vpop.f32.mrf.mxu0
      %v6816 = vadd.f32 %v6699, %v6815
      %6817 = vmatmul.bf16.gmra.mxu0 %v6573
      %v6818 = vpop.f32.mrf.mxu0
      %v6819 = vadd.f32 %v6699, %v6818
      %v6820 = vpop.f32.mrf.mxu0
      %v6821 = vadd.f32 %v6699, %v6820
      %6822 = vmatmul.bf16.gmra.mxu0 %v6574
      %v6823 = vpop.f32.mrf.mxu0
      %v6824 = vadd.f32 %v6699, %v6823
      %v6825 = vpop.f32.mrf.mxu0
      %v6826 = vadd.f32 %v6699, %v6825
      %6827 = vmatmul.bf16.gmra.mxu0 %v6575
      %v6828 = vpop.f32.mrf.mxu0
      %v6829 = vadd.f32 %v6699, %v6828
      %v6830 = vpop.f32.mrf.mxu0
      %v6831 = vadd.f32 %v6699, %v6830
      %6832 = vmatmul.bf16.gmra.mxu0 %v6576
      %v6833 = vpop.f32.mrf.mxu0
      %v6834 = vadd.f32 %v6699, %v6833
      %v6835 = vpop.f32.mrf.mxu0
      %v6836 = vadd.f32 %v6699, %v6835
      %6837 = vmatmul.bf16.gmra.mxu0 %v6577
      %v6838 = vpop.f32.mrf.mxu0
      %v6839 = vadd.f32 %v6699, %v6838
      %v6840 = vpop.f32.mrf.mxu0
      %v6841 = vadd.f32 %v6699, %v6840
      %6842 = vmatmul.bf16.gmra.mxu0 %v6578
      %v6843 = vpop.f32.mrf.mxu0
      %v6844 = vadd.f32 %v6699, %v6843
      %v6845 = vpop.f32.mrf.mxu0
      %v6846 = vadd.f32 %v6699, %v6845
      %6847 = vmatmul.bf16.gmra.mxu0 %v6579
      %v6848 = vpop.f32.mrf.mxu0
      %v6849 = vadd.f32 %v6699, %v6848
      %v6850 = vpop.f32.mrf.mxu0
      %v6851 = vadd.f32 %v6699, %v6850
      %6852 = vmatmul.bf16.gmra.mxu0 %v6580
      %v6853 = vpop.f32.mrf.mxu0
      %v6854 = vadd.f32 %v6699, %v6853
      %v6855 = vpop.f32.mrf.mxu0
      %v6856 = vadd.f32 %v6699, %v6855
      %6857 = vmatmul.bf16.gmra.mxu0 %v6581
      %v6858 = vpop.f32.mrf.mxu0
      %v6859 = vadd.f32 %v6699, %v6858
      %v6860 = vpop.f32.mrf.mxu0
      %v6861 = vadd.f32 %v6699, %v6860
      %6862 = vmatmul.bf16.gmra.mxu0 %v6582
      %v6863 = vpop.f32.mrf.mxu0
      %v6864 = vadd.f32 %v6699, %v6863
      %v6865 = vpop.f32.mrf.mxu0
      %v6866 = vadd.f32 %v6699, %v6865
      %6867 = vmatmul.bf16.gmra.mxu0 %v6583
      %v6868 = vpop.f32.mrf.mxu0
      %v6869 = vadd.f32 %v6699, %v6868
      %v6870 = vpop.f32.mrf.mxu0
      %v6871 = vadd.f32 %v6699, %v6870
      %6872 = vmatmul.bf16.gmra.mxu0 %v6584
      %v6873 = vpop.f32.mrf.mxu0
      %v6874 = vadd.f32 %v6699, %v6873
      %v6875 = vpop.f32.mrf.mxu0
      %v6876 = vadd.f32 %v6699, %v6875
      %6877 = vdwg.mxu0
      %v6878 = vadd.f32 %v6759, %v6649
      %v6879 = vadd.f32 %v6761, %v6650
      %v6880 = vadd.f32 %v6764, %v6651
      %v6881 = vadd.f32 %v6766, %v6652
      %v6882 = vadd.f32 %v6769, %v6653
      %v6883 = vadd.f32 %v6771, %v6654
      %v6884 = vadd.f32 %v6774, %v6655
      %v6885 = vadd.f32 %v6776, %v6656
      %v6886 = vadd.f32 %v6779, %v6657
      %v6887 = vadd.f32 %v6781, %v6658
      %v6888 = vadd.f32 %v6784, %v6659
      %v6889 = vadd.f32 %v6786, %v6660
      %v6890 = vadd.f32 %v6789, %v6661
      %v6891 = vadd.f32 %v6791, %v6662
      %v6892 = vadd.f32 %v6794, %v6663
      %v6893 = vadd.f32 %v6796, %v6664
      %v6894 = vadd.f32 %v6799, %v6665
      %v6895 = vadd.f32 %v6801, %v6666
      %v6896 = vadd.f32 %v6804, %v6667
      %v6897 = vadd.f32 %v6806, %v6668
      %v6898 = vadd.f32 %v6809, %v6669
      %v6899 = vadd.f32 %v6811, %v6670
      %v6900 = vadd.f32 %v6814, %v6671
      %v6901 = vadd.f32 %v6816, %v6672
      %v6902 = vadd.f32 %v6819, %v6673
      %v6903 = vadd.f32 %v6821, %v6674
      %v6904 = vadd.f32 %v6824, %v6675
      %v6905 = vadd.f32 %v6826, %v6676
      %v6906 = vadd.f32 %v6829, %v6677
      %v6907 = vadd.f32 %v6831, %v6678
      %v6908 = vadd.f32 %v6834, %v6679
      %v6909 = vadd.f32 %v6836, %v6680
      %v6910 = vadd.f32 %v6839, %v6681
      %v6911 = vadd.f32 %v6841, %v6682
      %v6912 = vadd.f32 %v6844, %v6683
      %v6913 = vadd.f32 %v6846, %v6684
      %v6914 = vadd.f32 %v6849, %v6685
      %v6915 = vadd.f32 %v6851, %v6686
      %v6916 = vadd.f32 %v6854, %v6687
      %v6917 = vadd.f32 %v6856, %v6688
      %v6918 = vadd.f32 %v6859, %v6689
      %v6919 = vadd.f32 %v6861, %v6690
      %v6920 = vadd.f32 %v6864, %v6691
      %v6921 = vadd.f32 %v6866, %v6692
      %v6922 = vadd.f32 %v6869, %v6693
      %v6923 = vadd.f32 %v6871, %v6694
      %v6924 = vadd.f32 %v6874, %v6695
      %v6925 = vadd.f32 %v6876, %v6696
      %v6926 = vmax.f32 %v6878, 0.0
      %v6927 = vmax.f32 %v6879, 0.0
      %v6928 = vmax.f32 %v6880, 0.0
      %v6929 = vmax.f32 %v6881, 0.0
      %v6930 = vmax.f32 %v6882, 0.0
      %v6931 = vmax.f32 %v6883, 0.0
      %v6932 = vmax.f32 %v6884, 0.0
      %v6933 = vmax.f32 %v6885, 0.0
      %v6934 = vmax.f32 %v6886, 0.0
      %v6935 = vmax.f32 %v6887, 0.0
      %v6936 = vmax.f32 %v6888, 0.0
      %v6937 = vmax.f32 %v6889, 0.0
      %v6938 = vmax.f32 %v6890, 0.0
      %v6939 = vmax.f32 %v6891, 0.0
      %v6940 = vmax.f32 %v6892, 0.0
      %v6941 = vmax.f32 %v6893, 0.0
      %v6942 = vmax.f32 %v6894, 0.0
      %v6943 = vmax.f32 %v6895, 0.0
      %v6944 = vmax.f32 %v6896, 0.0
      %v6945 = vmax.f32 %v6897, 0.0
      %v6946 = vmax.f32 %v6898, 0.0
      %v6947 = vmax.f32 %v6899, 0.0
      %v6948 = vmax.f32 %v6900, 0.0
      %v6949 = vmax.f32 %v6901, 0.0
      %v6950 = vmax.f32 %v6902, 0.0
      %v6951 = vmax.f32 %v6903, 0.0
      %v6952 = vmax.f32 %v6904, 0.0
      %v6953 = vmax.f32 %v6905, 0.0
      %v6954 = vmax.f32 %v6906, 0.0
      %v6955 = vmax.f32 %v6907, 0.0
      %v6956 = vmax.f32 %v6908, 0.0
      %v6957 = vmax.f32 %v6909, 0.0
      %v6958 = vmax.f32 %v6910, 0.0
      %v6959 = vmax.f32 %v6911, 0.0
      %v6960 = vmax.f32 %v6912, 0.0
      %v6961 = vmax.f32 %v6913, 0.0
      %v6962 = vmax.f32 %v6914, 0.0
      %v6963 = vmax.f32 %v6915, 0.0
      %v6964 = vmax.f32 %v6916, 0.0
      %v6965 = vmax.f32 %v6917, 0.0
      %v6966 = vmax.f32 %v6918, 0.0
      %v6967 = vmax.f32 %v6919, 0.0
      %v6968 = vmax.f32 %v6920, 0.0
      %v6969 = vmax.f32 %v6921, 0.0
      %v6970 = vmax.f32 %v6922, 0.0
      %v6971 = vmax.f32 %v6923, 0.0
      %v6972 = vmax.f32 %v6924, 0.0
      %v6973 = vmax.f32 %v6925, 0.0
      %v6974 = vpack.c.bf16 %v6926, %v6926
      %v6975 = vpack.c.bf16 %v6927, %v6927
      %v6976 = vpack.c.bf16 %v6928, %v6928
      %v6977 = vpack.c.bf16 %v6929, %v6929
      %v6978 = vpack.c.bf16 %v6930, %v6930
      %v6979 = vpack.c.bf16 %v6931, %v6931
      %v6980 = vpack.c.bf16 %v6932, %v6932
      %v6981 = vpack.c.bf16 %v6933, %v6933
      %v6982 = vpack.c.bf16 %v6934, %v6934
      %v6983 = vpack.c.bf16 %v6935, %v6935
      %v6984 = vpack.c.bf16 %v6936, %v6936
      %v6985 = vpack.c.bf16 %v6937, %v6937
      %v6986 = vpack.c.bf16 %v6938, %v6938
      %v6987 = vpack.c.bf16 %v6939, %v6939
      %v6988 = vpack.c.bf16 %v6940, %v6940
      %v6989 = vpack.c.bf16 %v6941, %v6941
      %v6990 = vpack.c.bf16 %v6942, %v6942
      %v6991 = vpack.c.bf16 %v6943, %v6943
      %v6992 = vpack.c.bf16 %v6944, %v6944
      %v6993 = vpack.c.bf16 %v6945, %v6945
      %v6994 = vpack.c.bf16 %v6946, %v6946
      %v6995 = vpack.c.bf16 %v6947, %v6947
      %v6996 = vpack.c.bf16 %v6948, %v6948
      %v6997 = vpack.c.bf16 %v6949, %v6949
      %v6998 = vpack.c.bf16 %v6950, %v6950
      %v6999 = vpack.c.bf16 %v6951, %v6951
      %v7000 = vpack.c.bf16 %v6952, %v6952
      %v7001 = vpack.c.bf16 %v6953, %v6953
      %v7002 = vpack.c.bf16 %v6954, %v6954
      %v7003 = vpack.c.bf16 %v6955, %v6955
      %v7004 = vpack.c.bf16 %v6956, %v6956
      %v7005 = vpack.c.bf16 %v6957, %v6957
      %v7006 = vpack.c.bf16 %v6958, %v6958
      %v7007 = vpack.c.bf16 %v6959, %v6959
      %v7008 = vpack.c.bf16 %v6960, %v6960
      %v7009 = vpack.c.bf16 %v6961, %v6961
      %v7010 = vpack.c.bf16 %v6962, %v6962
      %v7011 = vpack.c.bf16 %v6963, %v6963
      %v7012 = vpack.c.bf16 %v6964, %v6964
      %v7013 = vpack.c.bf16 %v6965, %v6965
      %v7014 = vpack.c.bf16 %v6966, %v6966
      %v7015 = vpack.c.bf16 %v6967, %v6967
      %v7016 = vpack.c.bf16 %v6968, %v6968
      %v7017 = vpack.c.bf16 %v6969, %v6969
      %v7018 = vpack.c.bf16 %v6970, %v6970
      %v7019 = vpack.c.bf16 %v6971, %v6971
      %v7020 = vpack.c.bf16 %v6972, %v6972
      %v7021 = vpack.c.bf16 %v6973, %v6973
      %7022 = vst [vmem:[%s305] sm:$0xf] %v6974
      %7023 = vst [vmem:[%s305 + $0x4] sm:$0xf] %v6975
      %7024 = vst [vmem:[%s305 + $0x8] sm:$0xf] %v6976
      %7025 = vst [vmem:[%s305 + $0xc] sm:$0xf] %v6977
      %7026 = vst [vmem:[%s305 + $0x10] sm:$0xf] %v6978
      %7027 = vst [vmem:[%s305 + $0x14] sm:$0xf] %v6979
      %7028 = vst [vmem:[%s305 + $0x18] sm:$0xf] %v6980
      %7029 = vst [vmem:[%s305 + $0x1c] sm:$0xf] %v6981
      %7030 = vst [vmem:[%s305 + $0x20] sm:$0xf] %v6982
      %7031 = vst [vmem:[%s305 + $0x24] sm:$0xf] %v6983
      %7032 = vst [vmem:[%s305 + $0x28] sm:$0xf] %v6984
      %7033 = vst [vmem:[%s305 + $0x2c] sm:$0xf] %v6985
      %7034 = vst [vmem:[%s305 + $0x30] sm:$0xf] %v6986
      %7035 = vst [vmem:[%s305 + $0x34] sm:$0xf] %v6987
      %7036 = vst [vmem:[%s305 + $0x38] sm:$0xf] %v6988
      %7037 = vst [vmem:[%s305 + $0x3c] sm:$0xf] %v6989
      %7038 = vst [vmem:[%s305 + $0x40] sm:$0xf] %v6990
      %7039 = vst [vmem:[%s305 + $0x44] sm:$0xf] %v6991
      %7040 = vst [vmem:[%s305 + $0x48] sm:$0xf] %v6992
      %7041 = vst [vmem:[%s305 + $0x4c] sm:$0xf] %v6993
      %7042 = vst [vmem:[%s305 + $0x50] sm:$0xf] %v6994
      %7043 = vst [vmem:[%s305 + $0x54] sm:$0xf] %v6995
      %7044 = vst [vmem:[%s305 + $0x58] sm:$0xf] %v6996
      %7045 = vst [vmem:[%s305 + $0x5c] sm:$0xf] %v6997
      %7046 = vst [vmem:[%s305 + $0x60] sm:$0xf] %v6998
      %7047 = vst [vmem:[%s305 + $0x64] sm:$0xf] %v6999
      %7048 = vst [vmem:[%s305 + $0x68] sm:$0xf] %v7000
      %7049 = vst [vmem:[%s305 + $0x6c] sm:$0xf] %v7001
      %7050 = vst [vmem:[%s305 + $0x70] sm:$0xf] %v7002
      %7051 = vst [vmem:[%s305 + $0x74] sm:$0xf] %v7003
      %7052 = vst [vmem:[%s305 + $0x78] sm:$0xf] %v7004
      %7053 = vst [vmem:[%s305 + $0x7c] sm:$0xf] %v7005
      %7054 = vst [vmem:[%s305 + $0x80] sm:$0xf] %v7006
      %7055 = vst [vmem:[%s305 + $0x84] sm:$0xf] %v7007
      %7056 = vst [vmem:[%s305 + $0x88] sm:$0xf] %v7008
      %7057 = vst [vmem:[%s305 + $0x8c] sm:$0xf] %v7009
      %7058 = vst [vmem:[%s305 + $0x90] sm:$0xf] %v7010
      %7059 = vst [vmem:[%s305 + $0x94] sm:$0xf] %v7011
      %7060 = vst [vmem:[%s305 + $0x98] sm:$0xf] %v7012
      %7061 = vst [vmem:[%s305 + $0x9c] sm:$0xf] %v7013
      %7062 = vst [vmem:[%s305 + $0xa0] sm:$0xf] %v7014
      %7063 = vst [vmem:[%s305 + $0xa4] sm:$0xf] %v7015
      %7064 = vst [vmem:[%s305 + $0xa8] sm:$0xf] %v7016
      %7065 = vst [vmem:[%s305 + $0xac] sm:$0xf] %v7017
      %7066 = vst [vmem:[%s305 + $0xb0] sm:$0xf] %v7018
      %7067 = vst [vmem:[%s305 + $0xb4] sm:$0xf] %v7019
      %7068 = vst [vmem:[%s305 + $0xb8] sm:$0xf] %v7020
      %7069 = vst [vmem:[%s305 + $0xbc] sm:$0xf] %v7021
      %p7070 = scmp.lt.s32.totalorder %s19, 1
      %s7071 = scalar_select %p7070, %s19, 1
      %s7072 = smul.addr %s7071, 48
      %s7073 = smul.addr %s7072, 4
      %s7074 = scalar_lea.vmem %s8, %s7073
      // Predicated region
      $region53: #{bottleneck_forward.1} parent=51 // pred_check
        %p7075 = pneg %p210
      $region54: #{bottleneck_forward.1} parent=51 // pred_check_branch
        %7077 = sbr.rel (%p7075) target = $region56
      $region55: #{bottleneck_forward.1} parent=51 // pred_region
        _
      $region56: #{bottleneck_forward.1} parent=51 // pred_fallthru
        _
    $region52: #{bottleneck_forward.1} parent=5 // pred_fallthru
      _
    %p7078 = scmp.le.s32.totalorder 2, %s14
    // Predicated region
    $region57: #{bottleneck_forward.1} parent=5 // pred_check
      %p7079 = pneg %p7078
    $region58: #{bottleneck_forward.1} parent=5 // pred_check_branch
      %7081 = sbr.rel (%p7079) target = $region60
    $region59: #{bottleneck_forward.1} parent=5 // pred_region
      %s7082 = ssub.s32 %s14, 2
      // Predicated region
      $region61: #{bottleneck_forward.1} parent=59 // pred_check
        %p7083 = pneg %p216
      $region62: #{bottleneck_forward.1} parent=59 // pred_check_branch
        %7085 = sbr.rel (%p7083) target = $region64
      $region63: #{bottleneck_forward.1} parent=59 // pred_region
        %p7086 = scmp.lt.s32.totalorder %s20, 1
        %s7087 = scalar_select %p7086, %s20, 1
        %s7088 = smul.addr %s7087, 48
        %s7089 = smul.addr %s7088, 4
        %s7090 = scalar_lea.vmem %s8, %s7089
      $region64: #{bottleneck_forward.1} parent=59 // pred_fallthru
        _
    $region60: #{bottleneck_forward.1} parent=5 // pred_fallthru
      _
  $region6: #{bottleneck_forward.1} parent=0 // loop_footer
    %s18 = sadd.s32 1, %s14
  $region7: #{bottleneck_forward.1} parent=0 // loop_footer_branch
    %13 = sbr.rel target = $region3
  $region8: #{bottleneck_forward.1} parent=0 // loop_exit
    _

</llo_original>
